<compile_context>
chip_gen: v6e
topology: v6e:2x2x1
jax: 0.10.0
libtpu: 0.0.40
codegen_flags: <defaults>
</compile_context>

<pallas_src>
import jax
import jax.numpy as jnp
from jax.experimental import pallas as pl
from jax.experimental.pallas import tpu as pltpu


def _round_up(x, m):
    return ((x + m - 1) // m) * m


def _model_ias_kernel(emb_ref, lens_ref, wih_ref, whh_ref, bg_ref,
                      wslot_ref, bslot_ref, wint_ref, bint_ref,
                      slots_ref, intent_ref,
                      gx_scr, out_scr, h_scr, c_scr):
    Bt, H = h_scr.shape            # batch tile (8 sublanes), padded hidden (x128)
    T = gx_scr.shape[0] // Bt      # timesteps

    # ---- 1) Input projection hoisted out of the recurrence: one big bf16 ----
    #         MXU matmul with f32 accumulation.
    gx_scr[...] = (jnp.dot(emb_ref[...], wih_ref[...],
                           preferred_element_type=jnp.float32)
                   + bg_ref[...])                              # (T*Bt, 4H) f32

    # ---- 2) LSTM recurrence: serial over T, only h @ W_hh on the MXU. -------
    h_scr[...] = jnp.zeros_like(h_scr)
    c_scr[...] = jnp.zeros_like(c_scr)
    # Hoisted length-mask broadcast (done once, reused every step).
    len_b = jnp.broadcast_to(lens_ref[...], (Bt, H))           # (Bt, H) int32

    @pl.loop(0, T, unroll=(T <= 16))
    def _lstm_step(t):
        row = t * Bt
        if isinstance(row, jax.core.Tracer):
            row = pl.multiple_of(row, Bt)                      # aligned slices
        h = h_scr[...]
        c = c_scr[...]
        gates = gx_scr[pl.ds(row, Bt), :] + jnp.dot(
            h.astype(jnp.bfloat16), whh_ref[...],
            preferred_element_type=jnp.float32)                # (Bt, 4H) f32
        # H is a multiple of 128, so each gate slice is a lane-aligned block.
        i_g = jax.nn.sigmoid(gates[:, 0 * H:1 * H])
        f_g = jax.nn.sigmoid(gates[:, 1 * H:2 * H])
        g_g = jnp.tanh(gates[:, 2 * H:3 * H])
        o_g = jax.nn.sigmoid(gates[:, 3 * H:4 * H])
        c_new = f_g * c + i_g * g_g
        h_new = o_g * jnp.tanh(c_new)

        valid = t < len_b                                      # (Bt, H) bool, VPU
        h_scr[...] = jnp.where(valid, h_new, h)                # freeze past len
        c_scr[...] = jnp.where(valid, c_new, c)
        # pad_packed_sequence zero-fills padded steps before slot_out.
        out_scr[pl.ds(row, Bt), :] = jnp.where(valid, h_new, 0.0)

    # ---- 3) Slot head: one lane-dense bf16 matmul + one unmasked store. ------
    slots_ref[...] = (jnp.dot(out_scr[...].astype(jnp.bfloat16), wslot_ref[...],
                              preferred_element_type=jnp.float32)
                      + bslot_ref[...])                        # (T*Bt, S)

    # ---- 4) Intent head on the last valid hidden state. ----------------------
    intent_ref[...] = (jnp.dot(h_scr[...].astype(jnp.bfloat16), wint_ref[...],
                               preferred_element_type=jnp.float32)
                       + bint_ref[...])                        # (Bt, I)


def model_ias_forward(utterance, seq_lengths, params, *, batch_tile=8):
    """utterance: (B, T) int32 token ids, seq_lengths: (B,) int32."""
    B, T = utterance.shape
    V, E = params["emb"].shape
    H = params["w_hh_t"].shape[0]
    S = params["w_slot_t"].shape[1]
    I = params["w_int_t"].shape[1]

    Bt = batch_tile
    B_pad = _round_up(B, Bt)
    nb = B_pad // Bt
    E_pad = _round_up(E, 128)
    H_pad = _round_up(H, 128)
    S_pad = _round_up(S, 128)
    I_pad = _round_up(I, 128)

    f32, bf16 = jnp.float32, jnp.bfloat16

    # ---- zero-pad weights to lane/sublane-aligned shapes; matmul operands ----
    #      become bf16 (accumulation stays f32 inside the kernel).
    emb_p = jnp.zeros((V, E_pad), f32).at[:, :E].set(params["emb"]).astype(bf16)

    def pad_gate_mat(w, in_dim, in_pad):
        # (in_dim, 4H) in PyTorch gate order i,f,g,o -> (in_pad, 4*H_pad) bf16
        w4 = w.reshape(in_dim, 4, H)
        out = jnp.zeros((in_pad, 4, H_pad), f32).at[:in_dim, :, :H].set(w4)
        return out.reshape(in_pad, 4 * H_pad).astype(bf16)

    wih_p = pad_gate_mat(params["w_ih_t"], E, E_pad)
    whh_p = pad_gate_mat(params["w_hh_t"], H, H_pad)
    bg4 = params["b_gate"].reshape(4, H)
    bg_p = (jnp.zeros((4, H_pad), f32).at[:, :H].set(bg4).reshape(1, 4 * H_pad))
    wslot_p = jnp.zeros((H_pad, S_pad), f32).at[:H, :S].set(
        params["w_slot_t"]).astype(bf16)
    bslot_p = jnp.zeros((1, S_pad), f32).at[:, :S].set(params["b_slot"])
    wint_p = jnp.zeros((H_pad, I_pad), f32).at[:H, :I].set(
        params["w_int_t"]).astype(bf16)
    bint_p = jnp.zeros((1, I_pad), f32).at[:, :I].set(params["b_int"])

    # ---- embedding gather in the wrapper (batched XLA gather on bf16 table). -
    # Padded batch rows / padded timesteps use token 0 == padding_idx (zero row).
    ids_p = jnp.zeros((B_pad, T), jnp.int32).at[:B, :].set(
        utterance.astype(jnp.int32))
    ids_p = jnp.clip(ids_p, 0, V - 1)                          # guard OOB ids
    emb_seq = emb_p[ids_p.T]                                   # (T, B_pad, E_pad) bf16
    # batch-tile-major, time-major within a tile: (nb, T*Bt, E_pad)
    emb_seq = emb_seq.reshape(T, nb, Bt, E_pad).transpose(1, 0, 2, 3)
    emb_seq = emb_seq.reshape(nb, T * Bt, E_pad)

    # padded batch rows get length 0 -> never update state / never emit
    lens = jnp.zeros((B_pad, 1), jnp.int32).at[:B, 0].set(
        seq_lengths.astype(jnp.int32))

    def weight_spec(shape):
        return pl.BlockSpec(shape, lambda b: (0, 0))

    slots_flat, intent_p = pl.pallas_call(
        _model_ias_kernel,
        out_shape=(jax.ShapeDtypeStruct((nb, T * Bt, S_pad), f32),
                   jax.ShapeDtypeStruct((B_pad, I_pad), f32)),
        grid_spec=pltpu.PrefetchScalarGridSpec(
            num_scalar_prefetch=0,
            grid=(nb,),
            in_specs=[
                pl.BlockSpec((None, T * Bt, E_pad), lambda b: (b, 0, 0)),  # emb
                pl.BlockSpec((Bt, 1), lambda b: (b, 0)),                   # lens
                weight_spec((E_pad, 4 * H_pad)),                           # W_ih
                weight_spec((H_pad, 4 * H_pad)),                           # W_hh
                weight_spec((1, 4 * H_pad)),                               # b_gate
                weight_spec((H_pad, S_pad)),                               # W_slot
                weight_spec((1, S_pad)),                                   # b_slot
                weight_spec((H_pad, I_pad)),                               # W_int
                weight_spec((1, I_pad)),                                   # b_int
            ],
            out_specs=(
                pl.BlockSpec((None, T * Bt, S_pad), lambda b: (b, 0, 0)),
                pl.BlockSpec((Bt, I_pad), lambda b: (b, 0)),
            ),
            scratch_shapes=[
                pltpu.VMEM((T * Bt, 4 * H_pad), f32),   # hoisted x-projection
                pltpu.VMEM((T * Bt, H_pad), f32),       # masked hidden states
                pltpu.VMEM((Bt, H_pad), f32),           # h
                pltpu.VMEM((Bt, H_pad), f32),           # c
            ]),
        compiler_params=pltpu.CompilerParams(
            dimension_semantics=("parallel",),
            vmem_limit_bytes=64 * 1024 * 1024),
    )(emb_seq, lens, wih_p, whh_p, bg_p, wslot_p, bslot_p, wint_p, bint_p)

    slots = slots_flat.reshape(nb, T, Bt, S_pad).transpose(1, 0, 2, 3)
    slots = slots.reshape(T, B_pad, S_pad)[:, :B, :S]          # (T, B, S)
    slots = jnp.transpose(slots, (1, 2, 0))                    # (B, S, T)
    intent = intent_p[:B, :I]                                  # (B, I)
    return slots, intent


def init_params(key, vocab_len, emb_size, hid_size, out_slot, out_int):
    ks = jax.random.split(key, 9)
    emb = 0.1 * jax.random.normal(ks[0], (vocab_len, emb_size), jnp.float32)
    emb = emb.at[0].set(0.0)                                    # padding_idx = 0
    w_ih = 0.1 * jax.random.normal(ks[1], (4 * hid_size, emb_size), jnp.float32)
    w_hh = 0.1 * jax.random.normal(ks[2], (4 * hid_size, hid_size), jnp.float32)
    b_ih = 0.1 * jax.random.normal(ks[3], (4 * hid_size,), jnp.float32)
    b_hh = 0.1 * jax.random.normal(ks[4], (4 * hid_size,), jnp.float32)
    w_slot = 0.1 * jax.random.normal(ks[5], (out_slot, hid_size), jnp.float32)
    b_slot = 0.1 * jax.random.normal(ks[6], (out_slot,), jnp.float32)
    w_int = 0.1 * jax.random.normal(ks[7], (out_int, hid_size), jnp.float32)
    b_int = 0.1 * jax.random.normal(ks[8], (out_int,), jnp.float32)
    return dict(
        emb=emb,
        w_ih_t=w_ih.T, w_hh_t=w_hh.T,
        b_gate=(b_ih + b_hh).reshape(1, -1),
        w_slot_t=w_slot.T, b_slot=b_slot.reshape(1, -1),
        w_int_t=w_int.T, b_int=b_int.reshape(1, -1),
    )


def reference_forward(ids, lens, params):
    """Pure-JAX f32 reference mirroring the PyTorch semantics."""
    B, T = ids.shape
    H = params["w_hh_t"].shape[0]
    emb = params["emb"][ids]                                    # (B, T, E)
    h = jnp.zeros((B, H), jnp.float32)
    c = jnp.zeros((B, H), jnp.float32)
    outs = []
    for t in range(T):
        x = emb[:, t, :]
        gates = x @ params["w_ih_t"] + h @ params["w_hh_t"] + params["b_gate"]
        i = jax.nn.sigmoid(gates[:, :H])
        f = jax.nn.sigmoid(gates[:, H:2 * H])
        g = jnp.tanh(gates[:, 2 * H:3 * H])
        o = jax.nn.sigmoid(gates[:, 3 * H:])
        c_new = f * c + i * g
        h_new = o * jnp.tanh(c_new)
        valid = (t < lens).astype(jnp.float32)[:, None]
        h = valid * h_new + (1 - valid) * h
        c = valid * c_new + (1 - valid) * c
        outs.append(valid * h_new)
    out = jnp.stack(outs, axis=0)                               # (T, B, H)
    slots = out @ params["w_slot_t"] + params["b_slot"]         # (T, B, S)
    intent = h @ params["w_int_t"] + params["b_int"]            # (B, I)
    return jnp.transpose(slots, (1, 2, 0)), intent


if __name__ == "__main__":
    B, T = 2, 8
    vocab_len, emb_size, hid_size = 32, 16, 32
    out_slot, out_int = 8, 4

    key = jax.random.PRNGKey(0)
    k_ids, _ = jax.random.split(key)

    seq_lengths = jnp.array([8, 5], dtype=jnp.int32)            # max == T
    ids = jax.random.randint(k_ids, (B, T), 1, vocab_len, dtype=jnp.int32)
    pos = jnp.arange(T)[None, :]
    ids = jnp.where(pos < seq_lengths[:, None], ids, 0)         # pad with pad_index=0

    params = init_params(jax.random.PRNGKey(42), vocab_len, emb_size,
                         hid_size, out_slot, out_int)

    slots, intent = model_ias_forward(ids, seq_lengths, params)
    jax.block_until_ready((slots, intent))

    slots_r, intent_r = reference_forward(ids, seq_lengths, params)
    assert slots.shape == (B, out_slot, T) and intent.shape == (B, out_int)
    # bf16 matmul operands with f32 accumulation -> relaxed tolerance vs f32 ref
    assert jnp.allclose(slots, slots_r, atol=1e-2, rtol=1e-2)
    assert jnp.allclose(intent, intent_r, atol=1e-2, rtol=1e-2)

    print("KERNEL_OK")
</pallas_src>

<mosaic_0001>
module attributes {stable_mosaic.version = 11 : i64} {
  func.func @_model_ias_kernel(%arg0: i32, %arg1: memref<1x64x128xbf16, #tpu.memory_space<vmem>>, %arg2: memref<8x1xi32, #tpu.memory_space<vmem>>, %arg3: memref<128x512xbf16, #tpu.memory_space<vmem>>, %arg4: memref<128x512xbf16, #tpu.memory_space<vmem>>, %arg5: memref<1x512xf32, #tpu.memory_space<vmem>>, %arg6: memref<128x128xbf16, #tpu.memory_space<vmem>>, %arg7: memref<1x128xf32, #tpu.memory_space<vmem>>, %arg8: memref<128x128xbf16, #tpu.memory_space<vmem>>, %arg9: memref<1x128xf32, #tpu.memory_space<vmem>>, %arg10: memref<1x64x128xf32, #tpu.memory_space<vmem>>, %arg11: memref<8x128xf32, #tpu.memory_space<vmem>>, %arg12: memref<64x512xf32, #tpu.memory_space<vmem>>, %arg13: memref<64x128xf32, #tpu.memory_space<vmem>>, %arg14: memref<8x128xf32, #tpu.memory_space<vmem>>, %arg15: memref<8x128xf32, #tpu.memory_space<vmem>>) attributes {dimension_semantics = [#tpu.dimension_semantics<parallel>], iteration_bounds = array<i64: 1>, scalar_prefetch = 0 : i64, scratch_operands = 4 : i64, tpu.core_type = #tpu.core_type<tc>, window_params = [{transform_indices = @transform_0, window_bounds = array<i64: 1, 64, 128>}, {transform_indices = @transform_1, window_bounds = array<i64: 8, 1>}, {pipeline_mode = #tpu.pipeline_mode<synchronous>, transform_indices = @transform_2, window_bounds = array<i64: 128, 512>}, {pipeline_mode = #tpu.pipeline_mode<synchronous>, transform_indices = @transform_3, window_bounds = array<i64: 128, 512>}, {pipeline_mode = #tpu.pipeline_mode<synchronous>, transform_indices = @transform_4, window_bounds = array<i64: 1, 512>}, {pipeline_mode = #tpu.pipeline_mode<synchronous>, transform_indices = @transform_5, window_bounds = array<i64: 128, 128>}, {pipeline_mode = #tpu.pipeline_mode<synchronous>, transform_indices = @transform_6, window_bounds = array<i64: 1, 128>}, {pipeline_mode = #tpu.pipeline_mode<synchronous>, transform_indices = @transform_7, window_bounds = array<i64: 128, 128>}, {pipeline_mode = #tpu.pipeline_mode<synchronous>, transform_indices = @transform_8, window_bounds = array<i64: 1, 128>}, {transform_indices = @transform_9, window_bounds = array<i64: 1, 64, 128>}, {transform_indices = @transform_10, window_bounds = array<i64: 8, 128>}]} {
    %c0 = arith.constant 0 : index
    %c0_0 = arith.constant 0 : index
    %c0_1 = arith.constant 0 : index
    %0 = vector.load %arg1[%c0, %c0_0, %c0_1] : memref<1x64x128xbf16, #tpu.memory_space<vmem>>, vector<1x64x128xbf16>
    %1 = vector.shape_cast %0 : vector<1x64x128xbf16> to vector<64x128xbf16>
    %c0_2 = arith.constant 0 : index
    %c0_3 = arith.constant 0 : index
    %2 = vector.load %arg3[%c0_2, %c0_3] : memref<128x512xbf16, #tpu.memory_space<vmem>>, vector<128x512xbf16>
    %cst = arith.constant dense<0.000000e+00> : vector<64x512xf32>
    %3 = tpu.matmul %1, %2, %cst {dimension_numbers = #tpu.dot_dimension_numbers<[1], [0], [0], [1], [0, 0, 1, 1], [], []>} : vector<64x128xbf16>, vector<128x512xbf16>, vector<64x512xf32> -> vector<64x512xf32>
    %c0_4 = arith.constant 0 : index
    %c0_5 = arith.constant 0 : index
    %4 = vector.load %arg5[%c0_4, %c0_5] : memref<1x512xf32, #tpu.memory_space<vmem>>, vector<1x512xf32>
    %5 = vector.broadcast %4 : vector<1x512xf32> to vector<64x512xf32>
    %6 = arith.addf %3, %5 : vector<64x512xf32>
    %c0_6 = arith.constant 0 : index
    %c0_7 = arith.constant 0 : index
    %7 = vector.load %arg12[%c0_6, %c0_7] : memref<64x512xf32, #tpu.memory_space<vmem>>, vector<64x512xf32>
    tpu.vector_store %arg12[%c0_6, %c0_7], %6 {strides = array<i32>} : memref<64x512xf32, #tpu.memory_space<vmem>>, vector<64x512xf32>,
    %cst_8 = arith.constant 0.000000e+00 : f32
    %8 = vector.broadcast %cst_8 : f32 to vector<8x128xf32>
    %c0_9 = arith.constant 0 : index
    %c0_10 = arith.constant 0 : index
    %9 = vector.load %arg14[%c0_9, %c0_10] : memref<8x128xf32, #tpu.memory_space<vmem>>, vector<8x128xf32>
    tpu.vector_store %arg14[%c0_9, %c0_10], %8 {strides = array<i32>} : memref<8x128xf32, #tpu.memory_space<vmem>>, vector<8x128xf32>,
    %cst_11 = arith.constant 0.000000e+00 : f32
    %10 = vector.broadcast %cst_11 : f32 to vector<8x128xf32>
    %c0_12 = arith.constant 0 : index
    %c0_13 = arith.constant 0 : index
    %11 = vector.load %arg15[%c0_12, %c0_13] : memref<8x128xf32, #tpu.memory_space<vmem>>, vector<8x128xf32>
    tpu.vector_store %arg15[%c0_12, %c0_13], %10 {strides = array<i32>} : memref<8x128xf32, #tpu.memory_space<vmem>>, vector<8x128xf32>,
    %c0_14 = arith.constant 0 : index
    %c0_15 = arith.constant 0 : index
    %12 = vector.load %arg2[%c0_14, %c0_15] : memref<8x1xi32, #tpu.memory_space<vmem>>, vector<8x1xi32>
    %13 = vector.shape_cast %12 : vector<8x1xi32> to vector<8x1xi32>
    %14 = vector.broadcast %13 : vector<8x1xi32> to vector<8x128xi32>
    %c0_i32 = arith.constant 0 : i32
    %c1_i32 = arith.constant 1 : i32
    %15 = arith.muli %c0_i32, %c1_i32 : i32
    %c0_i32_16 = arith.constant 0 : i32
    %16 = arith.addi %c0_i32_16, %15 : i32
    %c8_i32 = arith.constant 8 : i32
    %17 = arith.muli %16, %c8_i32 : i32
    %18 = tpu.assume_multiple %17, 8 : i32
    %c0_17 = arith.constant 0 : index
    %c0_18 = arith.constant 0 : index
    %19 = vector.load %arg14[%c0_17, %c0_18] : memref<8x128xf32, #tpu.memory_space<vmem>>, vector<8x128xf32>
    %c0_19 = arith.constant 0 : index
    %c0_20 = arith.constant 0 : index
    %20 = vector.load %arg15[%c0_19, %c0_20] : memref<8x128xf32, #tpu.memory_space<vmem>>, vector<8x128xf32>
    %21 = arith.index_cast %18 : i32 to index
    %c0_21 = arith.constant 0 : index
    %22 = vector.load %arg12[%21, %c0_21] : memref<64x512xf32, #tpu.memory_space<vmem>>, vector<8x512xf32>
    %23 = arith.truncf %19 : vector<8x128xf32> to vector<8x128xbf16>
    %c0_22 = arith.constant 0 : index
    %c0_23 = arith.constant 0 : index
    %24 = vector.load %arg4[%c0_22, %c0_23] : memref<128x512xbf16, #tpu.memory_space<vmem>>, vector<128x512xbf16>
    %cst_24 = arith.constant dense<0.000000e+00> : vector<8x512xf32>
    %25 = tpu.matmul %23, %24, %cst_24 {dimension_numbers = #tpu.dot_dimension_numbers<[1], [0], [0], [1], [0, 0, 1, 1], [], []>} : vector<8x128xbf16>, vector<128x512xbf16>, vector<8x512xf32> -> vector<8x512xf32>
    %26 = arith.addf %22, %25 : vector<8x512xf32>
    %27 = vector.extract_strided_slice %26 {offsets = [0, 0], sizes = [8, 128], strides = [1, 1]} : vector<8x512xf32> to vector<8x128xf32>
    %28 = arith.negf %27 : vector<8x128xf32>
    %29 = math.exp %28 : vector<8x128xf32>
    %cst_25 = arith.constant 1.000000e+00 : f32
    %30 = vector.broadcast %cst_25 : f32 to vector<8x128xf32>
    %31 = arith.addf %30, %29 : vector<8x128xf32>
    %32 = arith.divf %30, %31 : vector<8x128xf32>
    %33 = vector.extract_strided_slice %26 {offsets = [0, 128], sizes = [8, 128], strides = [1, 1]} : vector<8x512xf32> to vector<8x128xf32>
    %34 = arith.negf %33 : vector<8x128xf32>
    %35 = math.exp %34 : vector<8x128xf32>
    %cst_26 = arith.constant 1.000000e+00 : f32
    %36 = vector.broadcast %cst_26 : f32 to vector<8x128xf32>
    %37 = arith.addf %36, %35 : vector<8x128xf32>
    %38 = arith.divf %36, %37 : vector<8x128xf32>
    %39 = vector.extract_strided_slice %26 {offsets = [0, 256], sizes = [8, 128], strides = [1, 1]} : vector<8x512xf32> to vector<8x128xf32>
    %40 = math.tanh %39 : vector<8x128xf32>
    %41 = vector.extract_strided_slice %26 {offsets = [0, 384], sizes = [8, 128], strides = [1, 1]} : vector<8x512xf32> to vector<8x128xf32>
    %42 = arith.negf %41 : vector<8x128xf32>
    %43 = math.exp %42 : vector<8x128xf32>
    %cst_27 = arith.constant 1.000000e+00 : f32
    %44 = vector.broadcast %cst_27 : f32 to vector<8x128xf32>
    %45 = arith.addf %44, %43 : vector<8x128xf32>
    %46 = arith.divf %44, %45 : vector<8x128xf32>
    %47 = arith.mulf %38, %20 : vector<8x128xf32>
    %48 = arith.mulf %32, %40 : vector<8x128xf32>
    %49 = arith.addf %47, %48 : vector<8x128xf32>
    %50 = math.tanh %49 : vector<8x128xf32>
    %51 = arith.mulf %46, %50 : vector<8x128xf32>
    %52 = vector.broadcast %16 : i32 to vector<8x128xi32>
    %53 = arith.cmpi slt, %52, %14 : vector<8x128xi32>
    %54 = arith.select %53, %51, %19 : vector<8x128xi1>, vector<8x128xf32>
    %c0_28 = arith.constant 0 : index
    %c0_29 = arith.constant 0 : index
    %55 = vector.load %arg14[%c0_28, %c0_29] : memref<8x128xf32, #tpu.memory_space<vmem>>, vector<8x128xf32>
    tpu.vector_store %arg14[%c0_28, %c0_29], %54 {strides = array<i32>} : memref<8x128xf32, #tpu.memory_space<vmem>>, vector<8x128xf32>,
    %56 = arith.select %53, %49, %20 : vector<8x128xi1>, vector<8x128xf32>
    %c0_30 = arith.constant 0 : index
    %c0_31 = arith.constant 0 : index
    %57 = vector.load %arg15[%c0_30, %c0_31] : memref<8x128xf32, #tpu.memory_space<vmem>>, vector<8x128xf32>
    tpu.vector_store %arg15[%c0_30, %c0_31], %56 {strides = array<i32>} : memref<8x128xf32, #tpu.memory_space<vmem>>, vector<8x128xf32>,
    %cst_32 = arith.constant 0.000000e+00 : f32
    %58 = vector.broadcast %cst_32 : f32 to vector<8x128xf32>
    %59 = arith.select %53, %51, %58 : vector<8x128xi1>, vector<8x128xf32>
    %60 = arith.index_cast %18 : i32 to index
    %c0_33 = arith.constant 0 : index
    %61 = vector.load %arg13[%60, %c0_33] : memref<64x128xf32, #tpu.memory_space<vmem>>, vector<8x128xf32>
    tpu.vector_store %arg13[%60, %c0_33], %59 {strides = array<i32>} : memref<64x128xf32, #tpu.memory_space<vmem>>, vector<8x128xf32>,
    %c1_i32_34 = arith.constant 1 : i32
    %c1_i32_35 = arith.constant 1 : i32
    %62 = arith.muli %c1_i32_34, %c1_i32_35 : i32
    %c0_i32_36 = arith.constant 0 : i32
    %63 = arith.addi %c0_i32_36, %62 : i32
    %c8_i32_37 = arith.constant 8 : i32
    %64 = arith.muli %63, %c8_i32_37 : i32
    %65 = tpu.assume_multiple %64, 8 : i32
    %c0_38 = arith.constant 0 : index
    %c0_39 = arith.constant 0 : index
    %66 = vector.load %arg14[%c0_38, %c0_39] : memref<8x128xf32, #tpu.memory_space<vmem>>, vector<8x128xf32>
    %c0_40 = arith.constant 0 : index
    %c0_41 = arith.constant 0 : index
    %67 = vector.load %arg15[%c0_40, %c0_41] : memref<8x128xf32, #tpu.memory_space<vmem>>, vector<8x128xf32>
    %68 = arith.index_cast %65 : i32 to index
    %c0_42 = arith.constant 0 : index
    %69 = vector.load %arg12[%68, %c0_42] : memref<64x512xf32, #tpu.memory_space<vmem>>, vector<8x512xf32>
    %70 = arith.truncf %66 : vector<8x128xf32> to vector<8x128xbf16>
    %c0_43 = arith.constant 0 : index
    %c0_44 = arith.constant 0 : index
    %71 = vector.load %arg4[%c0_43, %c0_44] : memref<128x512xbf16, #tpu.memory_space<vmem>>, vector<128x512xbf16>
    %cst_45 = arith.constant dense<0.000000e+00> : vector<8x512xf32>
    %72 = tpu.matmul %70, %71, %cst_45 {dimension_numbers = #tpu.dot_dimension_numbers<[1], [0], [0], [1], [0, 0, 1, 1], [], []>} : vector<8x128xbf16>, vector<128x512xbf16>, vector<8x512xf32> -> vector<8x512xf32>
    %73 = arith.addf %69, %72 : vector<8x512xf32>
    %74 = vector.extract_strided_slice %73 {offsets = [0, 0], sizes = [8, 128], strides = [1, 1]} : vector<8x512xf32> to vector<8x128xf32>
    %75 = arith.negf %74 : vector<8x128xf32>
    %76 = math.exp %75 : vector<8x128xf32>
    %cst_46 = arith.constant 1.000000e+00 : f32
    %77 = vector.broadcast %cst_46 : f32 to vector<8x128xf32>
    %78 = arith.addf %77, %76 : vector<8x128xf32>
    %79 = arith.divf %77, %78 : vector<8x128xf32>
    %80 = vector.extract_strided_slice %73 {offsets = [0, 128], sizes = [8, 128], strides = [1, 1]} : vector<8x512xf32> to vector<8x128xf32>
    %81 = arith.negf %80 : vector<8x128xf32>
    %82 = math.exp %81 : vector<8x128xf32>
    %cst_47 = arith.constant 1.000000e+00 : f32
    %83 = vector.broadcast %cst_47 : f32 to vector<8x128xf32>
    %84 = arith.addf %83, %82 : vector<8x128xf32>
    %85 = arith.divf %83, %84 : vector<8x128xf32>
    %86 = vector.extract_strided_slice %73 {offsets = [0, 256], sizes = [8, 128], strides = [1, 1]} : vector<8x512xf32> to vector<8x128xf32>
    %87 = math.tanh %86 : vector<8x128xf32>
    %88 = vector.extract_strided_slice %73 {offsets = [0, 384], sizes = [8, 128], strides = [1, 1]} : vector<8x512xf32> to vector<8x128xf32>
    %89 = arith.negf %88 : vector<8x128xf32>
    %90 = math.exp %89 : vector<8x128xf32>
    %cst_48 = arith.constant 1.000000e+00 : f32
    %91 = vector.broadcast %cst_48 : f32 to vector<8x128xf32>
    %92 = arith.addf %91, %90 : vector<8x128xf32>
    %93 = arith.divf %91, %92 : vector<8x128xf32>
    %94 = arith.mulf %85, %67 : vector<8x128xf32>
    %95 = arith.mulf %79, %87 : vector<8x128xf32>
    %96 = arith.addf %94, %95 : vector<8x128xf32>
    %97 = math.tanh %96 : vector<8x128xf32>
    %98 = arith.mulf %93, %97 : vector<8x128xf32>
    %99 = vector.broadcast %63 : i32 to vector<8x128xi32>
    %100 = arith.cmpi slt, %99, %14 : vector<8x128xi32>
    %101 = arith.select %100, %98, %66 : vector<8x128xi1>, vector<8x128xf32>
    %c0_49 = arith.constant 0 : index
    %c0_50 = arith.constant 0 : index
    %102 = vector.load %arg14[%c0_49, %c0_50] : memref<8x128xf32, #tpu.memory_space<vmem>>, vector<8x128xf32>
    tpu.vector_store %arg14[%c0_49, %c0_50], %101 {strides = array<i32>} : memref<8x128xf32, #tpu.memory_space<vmem>>, vector<8x128xf32>,
    %103 = arith.select %100, %96, %67 : vector<8x128xi1>, vector<8x128xf32>
    %c0_51 = arith.constant 0 : index
    %c0_52 = arith.constant 0 : index
    %104 = vector.load %arg15[%c0_51, %c0_52] : memref<8x128xf32, #tpu.memory_space<vmem>>, vector<8x128xf32>
    tpu.vector_store %arg15[%c0_51, %c0_52], %103 {strides = array<i32>} : memref<8x128xf32, #tpu.memory_space<vmem>>, vector<8x128xf32>,
    %cst_53 = arith.constant 0.000000e+00 : f32
    %105 = vector.broadcast %cst_53 : f32 to vector<8x128xf32>
    %106 = arith.select %100, %98, %105 : vector<8x128xi1>, vector<8x128xf32>
    %107 = arith.index_cast %65 : i32 to index
    %c0_54 = arith.constant 0 : index
    %108 = vector.load %arg13[%107, %c0_54] : memref<64x128xf32, #tpu.memory_space<vmem>>, vector<8x128xf32>
    tpu.vector_store %arg13[%107, %c0_54], %106 {strides = array<i32>} : memref<64x128xf32, #tpu.memory_space<vmem>>, vector<8x128xf32>,
    %c2_i32 = arith.constant 2 : i32
    %c1_i32_55 = arith.constant 1 : i32
    %109 = arith.muli %c2_i32, %c1_i32_55 : i32
    %c0_i32_56 = arith.constant 0 : i32
    %110 = arith.addi %c0_i32_56, %109 : i32
    %c8_i32_57 = arith.constant 8 : i32
    %111 = arith.muli %110, %c8_i32_57 : i32
    %112 = tpu.assume_multiple %111, 8 : i32
    %c0_58 = arith.constant 0 : index
    %c0_59 = arith.constant 0 : index
    %113 = vector.load %arg14[%c0_58, %c0_59] : memref<8x128xf32, #tpu.memory_space<vmem>>, vector<8x128xf32>
    %c0_60 = arith.constant 0 : index
    %c0_61 = arith.constant 0 : index
    %114 = vector.load %arg15[%c0_60, %c0_61] : memref<8x128xf32, #tpu.memory_space<vmem>>, vector<8x128xf32>
    %115 = arith.index_cast %112 : i32 to index
    %c0_62 = arith.constant 0 : index
    %116 = vector.load %arg12[%115, %c0_62] : memref<64x512xf32, #tpu.memory_space<vmem>>, vector<8x512xf32>
    %117 = arith.truncf %113 : vector<8x128xf32> to vector<8x128xbf16>
    %c0_63 = arith.constant 0 : index
    %c0_64 = arith.constant 0 : index
    %118 = vector.load %arg4[%c0_63, %c0_64] : memref<128x512xbf16, #tpu.memory_space<vmem>>, vector<128x512xbf16>
    %cst_65 = arith.constant dense<0.000000e+00> : vector<8x512xf32>
    %119 = tpu.matmul %117, %118, %cst_65 {dimension_numbers = #tpu.dot_dimension_numbers<[1], [0], [0], [1], [0, 0, 1, 1], [], []>} : vector<8x128xbf16>, vector<128x512xbf16>, vector<8x512xf32> -> vector<8x512xf32>
    %120 = arith.addf %116, %119 : vector<8x512xf32>
    %121 = vector.extract_strided_slice %120 {offsets = [0, 0], sizes = [8, 128], strides = [1, 1]} : vector<8x512xf32> to vector<8x128xf32>
    %122 = arith.negf %121 : vector<8x128xf32>
    %123 = math.exp %122 : vector<8x128xf32>
    %cst_66 = arith.constant 1.000000e+00 : f32
    %124 = vector.broadcast %cst_66 : f32 to vector<8x128xf32>
    %125 = arith.addf %124, %123 : vector<8x128xf32>
    %126 = arith.divf %124, %125 : vector<8x128xf32>
    %127 = vector.extract_strided_slice %120 {offsets = [0, 128], sizes = [8, 128], strides = [1, 1]} : vector<8x512xf32> to vector<8x128xf32>
    %128 = arith.negf %127 : vector<8x128xf32>
    %129 = math.exp %128 : vector<8x128xf32>
    %cst_67 = arith.constant 1.000000e+00 : f32
    %130 = vector.broadcast %cst_67 : f32 to vector<8x128xf32>
    %131 = arith.addf %130, %129 : vector<8x128xf32>
    %132 = arith.divf %130, %131 : vector<8x128xf32>
    %133 = vector.extract_strided_slice %120 {offsets = [0, 256], sizes = [8, 128], strides = [1, 1]} : vector<8x512xf32> to vector<8x128xf32>
    %134 = math.tanh %133 : vector<8x128xf32>
    %135 = vector.extract_strided_slice %120 {offsets = [0, 384], sizes = [8, 128], strides = [1, 1]} : vector<8x512xf32> to vector<8x128xf32>
    %136 = arith.negf %135 : vector<8x128xf32>
    %137 = math.exp %136 : vector<8x128xf32>
    %cst_68 = arith.constant 1.000000e+00 : f32
    %138 = vector.broadcast %cst_68 : f32 to vector<8x128xf32>
    %139 = arith.addf %138, %137 : vector<8x128xf32>
    %140 = arith.divf %138, %139 : vector<8x128xf32>
    %141 = arith.mulf %132, %114 : vector<8x128xf32>
    %142 = arith.mulf %126, %134 : vector<8x128xf32>
    %143 = arith.addf %141, %142 : vector<8x128xf32>
    %144 = math.tanh %143 : vector<8x128xf32>
    %145 = arith.mulf %140, %144 : vector<8x128xf32>
    %146 = vector.broadcast %110 : i32 to vector<8x128xi32>
    %147 = arith.cmpi slt, %146, %14 : vector<8x128xi32>
    %148 = arith.select %147, %145, %113 : vector<8x128xi1>, vector<8x128xf32>
    %c0_69 = arith.constant 0 : index
    %c0_70 = arith.constant 0 : index
    %149 = vector.load %arg14[%c0_69, %c0_70] : memref<8x128xf32, #tpu.memory_space<vmem>>, vector<8x128xf32>
    tpu.vector_store %arg14[%c0_69, %c0_70], %148 {strides = array<i32>} : memref<8x128xf32, #tpu.memory_space<vmem>>, vector<8x128xf32>,
    %150 = arith.select %147, %143, %114 : vector<8x128xi1>, vector<8x128xf32>
    %c0_71 = arith.constant 0 : index
    %c0_72 = arith.constant 0 : index
    %151 = vector.load %arg15[%c0_71, %c0_72] : memref<8x128xf32, #tpu.memory_space<vmem>>, vector<8x128xf32>
    tpu.vector_store %arg15[%c0_71, %c0_72], %150 {strides = array<i32>} : memref<8x128xf32, #tpu.memory_space<vmem>>, vector<8x128xf32>,
    %cst_73 = arith.constant 0.000000e+00 : f32
    %152 = vector.broadcast %cst_73 : f32 to vector<8x128xf32>
    %153 = arith.select %147, %145, %152 : vector<8x128xi1>, vector<8x128xf32>
    %154 = arith.index_cast %112 : i32 to index
    %c0_74 = arith.constant 0 : index
    %155 = vector.load %arg13[%154, %c0_74] : memref<64x128xf32, #tpu.memory_space<vmem>>, vector<8x128xf32>
    tpu.vector_store %arg13[%154, %c0_74], %153 {strides = array<i32>} : memref<64x128xf32, #tpu.memory_space<vmem>>, vector<8x128xf32>,
    %c3_i32 = arith.constant 3 : i32
    %c1_i32_75 = arith.constant 1 : i32
    %156 = arith.muli %c3_i32, %c1_i32_75 : i32
    %c0_i32_76 = arith.constant 0 : i32
    %157 = arith.addi %c0_i32_76, %156 : i32
    %c8_i32_77 = arith.constant 8 : i32
    %158 = arith.muli %157, %c8_i32_77 : i32
    %159 = tpu.assume_multiple %158, 8 : i32
    %c0_78 = arith.constant 0 : index
    %c0_79 = arith.constant 0 : index
    %160 = vector.load %arg14[%c0_78, %c0_79] : memref<8x128xf32, #tpu.memory_space<vmem>>, vector<8x128xf32>
    %c0_80 = arith.constant 0 : index
    %c0_81 = arith.constant 0 : index
    %161 = vector.load %arg15[%c0_80, %c0_81] : memref<8x128xf32, #tpu.memory_space<vmem>>, vector<8x128xf32>
    %162 = arith.index_cast %159 : i32 to index
    %c0_82 = arith.constant 0 : index
    %163 = vector.load %arg12[%162, %c0_82] : memref<64x512xf32, #tpu.memory_space<vmem>>, vector<8x512xf32>
    %164 = arith.truncf %160 : vector<8x128xf32> to vector<8x128xbf16>
    %c0_83 = arith.constant 0 : index
    %c0_84 = arith.constant 0 : index
    %165 = vector.load %arg4[%c0_83, %c0_84] : memref<128x512xbf16, #tpu.memory_space<vmem>>, vector<128x512xbf16>
    %cst_85 = arith.constant dense<0.000000e+00> : vector<8x512xf32>
    %166 = tpu.matmul %164, %165, %cst_85 {dimension_numbers = #tpu.dot_dimension_numbers<[1], [0], [0], [1], [0, 0, 1, 1], [], []>} : vector<8x128xbf16>, vector<128x512xbf16>, vector<8x512xf32> -> vector<8x512xf32>
    %167 = arith.addf %163, %166 : vector<8x512xf32>
    %168 = vector.extract_strided_slice %167 {offsets = [0, 0], sizes = [8, 128], strides = [1, 1]} : vector<8x512xf32> to vector<8x128xf32>
    %169 = arith.negf %168 : vector<8x128xf32>
    %170 = math.exp %169 : vector<8x128xf32>
    %cst_86 = arith.constant 1.000000e+00 : f32
    %171 = vector.broadcast %cst_86 : f32 to vector<8x128xf32>
    %172 = arith.addf %171, %170 : vector<8x128xf32>
    %173 = arith.divf %171, %172 : vector<8x128xf32>
    %174 = vector.extract_strided_slice %167 {offsets = [0, 128], sizes = [8, 128], strides = [1, 1]} : vector<8x512xf32> to vector<8x128xf32>
    %175 = arith.negf %174 : vector<8x128xf32>
    %176 = math.exp %175 : vector<8x128xf32>
    %cst_87 = arith.constant 1.000000e+00 : f32
    %177 = vector.broadcast %cst_87 : f32 to vector<8x128xf32>
    %178 = arith.addf %177, %176 : vector<8x128xf32>
    %179 = arith.divf %177, %178 : vector<8x128xf32>
    %180 = vector.extract_strided_slice %167 {offsets = [0, 256], sizes = [8, 128], strides = [1, 1]} : vector<8x512xf32> to vector<8x128xf32>
    %181 = math.tanh %180 : vector<8x128xf32>
    %182 = vector.extract_strided_slice %167 {offsets = [0, 384], sizes = [8, 128], strides = [1, 1]} : vector<8x512xf32> to vector<8x128xf32>
    %183 = arith.negf %182 : vector<8x128xf32>
    %184 = math.exp %183 : vector<8x128xf32>
    %cst_88 = arith.constant 1.000000e+00 : f32
    %185 = vector.broadcast %cst_88 : f32 to vector<8x128xf32>
    %186 = arith.addf %185, %184 : vector<8x128xf32>
    %187 = arith.divf %185, %186 : vector<8x128xf32>
    %188 = arith.mulf %179, %161 : vector<8x128xf32>
    %189 = arith.mulf %173, %181 : vector<8x128xf32>
    %190 = arith.addf %188, %189 : vector<8x128xf32>
    %191 = math.tanh %190 : vector<8x128xf32>
    %192 = arith.mulf %187, %191 : vector<8x128xf32>
    %193 = vector.broadcast %157 : i32 to vector<8x128xi32>
    %194 = arith.cmpi slt, %193, %14 : vector<8x128xi32>
    %195 = arith.select %194, %192, %160 : vector<8x128xi1>, vector<8x128xf32>
    %c0_89 = arith.constant 0 : index
    %c0_90 = arith.constant 0 : index
    %196 = vector.load %arg14[%c0_89, %c0_90] : memref<8x128xf32, #tpu.memory_space<vmem>>, vector<8x128xf32>
    tpu.vector_store %arg14[%c0_89, %c0_90], %195 {strides = array<i32>} : memref<8x128xf32, #tpu.memory_space<vmem>>, vector<8x128xf32>,
    %197 = arith.select %194, %190, %161 : vector<8x128xi1>, vector<8x128xf32>
    %c0_91 = arith.constant 0 : index
    %c0_92 = arith.constant 0 : index
    %198 = vector.load %arg15[%c0_91, %c0_92] : memref<8x128xf32, #tpu.memory_space<vmem>>, vector<8x128xf32>
    tpu.vector_store %arg15[%c0_91, %c0_92], %197 {strides = array<i32>} : memref<8x128xf32, #tpu.memory_space<vmem>>, vector<8x128xf32>,
    %cst_93 = arith.constant 0.000000e+00 : f32
    %199 = vector.broadcast %cst_93 : f32 to vector<8x128xf32>
    %200 = arith.select %194, %192, %199 : vector<8x128xi1>, vector<8x128xf32>
    %201 = arith.index_cast %159 : i32 to index
    %c0_94 = arith.constant 0 : index
    %202 = vector.load %arg13[%201, %c0_94] : memref<64x128xf32, #tpu.memory_space<vmem>>, vector<8x128xf32>
    tpu.vector_store %arg13[%201, %c0_94], %200 {strides = array<i32>} : memref<64x128xf32, #tpu.memory_space<vmem>>, vector<8x128xf32>,
    %c4_i32 = arith.constant 4 : i32
    %c1_i32_95 = arith.constant 1 : i32
    %203 = arith.muli %c4_i32, %c1_i32_95 : i32
    %c0_i32_96 = arith.constant 0 : i32
    %204 = arith.addi %c0_i32_96, %203 : i32
    %c8_i32_97 = arith.constant 8 : i32
    %205 = arith.muli %204, %c8_i32_97 : i32
    %206 = tpu.assume_multiple %205, 8 : i32
    %c0_98 = arith.constant 0 : index
    %c0_99 = arith.constant 0 : index
    %207 = vector.load %arg14[%c0_98, %c0_99] : memref<8x128xf32, #tpu.memory_space<vmem>>, vector<8x128xf32>
    %c0_100 = arith.constant 0 : index
    %c0_101 = arith.constant 0 : index
    %208 = vector.load %arg15[%c0_100, %c0_101] : memref<8x128xf32, #tpu.memory_space<vmem>>, vector<8x128xf32>
    %209 = arith.index_cast %206 : i32 to index
    %c0_102 = arith.constant 0 : index
    %210 = vector.load %arg12[%209, %c0_102] : memref<64x512xf32, #tpu.memory_space<vmem>>, vector<8x512xf32>
    %211 = arith.truncf %207 : vector<8x128xf32> to vector<8x128xbf16>
    %c0_103 = arith.constant 0 : index
    %c0_104 = arith.constant 0 : index
    %212 = vector.load %arg4[%c0_103, %c0_104] : memref<128x512xbf16, #tpu.memory_space<vmem>>, vector<128x512xbf16>
    %cst_105 = arith.constant dense<0.000000e+00> : vector<8x512xf32>
    %213 = tpu.matmul %211, %212, %cst_105 {dimension_numbers = #tpu.dot_dimension_numbers<[1], [0], [0], [1], [0, 0, 1, 1], [], []>} : vector<8x128xbf16>, vector<128x512xbf16>, vector<8x512xf32> -> vector<8x512xf32>
    %214 = arith.addf %210, %213 : vector<8x512xf32>
    %215 = vector.extract_strided_slice %214 {offsets = [0, 0], sizes = [8, 128], strides = [1, 1]} : vector<8x512xf32> to vector<8x128xf32>
    %216 = arith.negf %215 : vector<8x128xf32>
    %217 = math.exp %216 : vector<8x128xf32>
    %cst_106 = arith.constant 1.000000e+00 : f32
    %218 = vector.broadcast %cst_106 : f32 to vector<8x128xf32>
    %219 = arith.addf %218, %217 : vector<8x128xf32>
    %220 = arith.divf %218, %219 : vector<8x128xf32>
    %221 = vector.extract_strided_slice %214 {offsets = [0, 128], sizes = [8, 128], strides = [1, 1]} : vector<8x512xf32> to vector<8x128xf32>
    %222 = arith.negf %221 : vector<8x128xf32>
    %223 = math.exp %222 : vector<8x128xf32>
    %cst_107 = arith.constant 1.000000e+00 : f32
    %224 = vector.broadcast %cst_107 : f32 to vector<8x128xf32>
    %225 = arith.addf %224, %223 : vector<8x128xf32>
    %226 = arith.divf %224, %225 : vector<8x128xf32>
    %227 = vector.extract_strided_slice %214 {offsets = [0, 256], sizes = [8, 128], strides = [1, 1]} : vector<8x512xf32> to vector<8x128xf32>
    %228 = math.tanh %227 : vector<8x128xf32>
    %229 = vector.extract_strided_slice %214 {offsets = [0, 384], sizes = [8, 128], strides = [1, 1]} : vector<8x512xf32> to vector<8x128xf32>
    %230 = arith.negf %229 : vector<8x128xf32>
    %231 = math.exp %230 : vector<8x128xf32>
    %cst_108 = arith.constant 1.000000e+00 : f32
    %232 = vector.broadcast %cst_108 : f32 to vector<8x128xf32>
    %233 = arith.addf %232, %231 : vector<8x128xf32>
    %234 = arith.divf %232, %233 : vector<8x128xf32>
    %235 = arith.mulf %226, %208 : vector<8x128xf32>
    %236 = arith.mulf %220, %228 : vector<8x128xf32>
    %237 = arith.addf %235, %236 : vector<8x128xf32>
    %238 = math.tanh %237 : vector<8x128xf32>
    %239 = arith.mulf %234, %238 : vector<8x128xf32>
    %240 = vector.broadcast %204 : i32 to vector<8x128xi32>
    %241 = arith.cmpi slt, %240, %14 : vector<8x128xi32>
    %242 = arith.select %241, %239, %207 : vector<8x128xi1>, vector<8x128xf32>
    %c0_109 = arith.constant 0 : index
    %c0_110 = arith.constant 0 : index
    %243 = vector.load %arg14[%c0_109, %c0_110] : memref<8x128xf32, #tpu.memory_space<vmem>>, vector<8x128xf32>
    tpu.vector_store %arg14[%c0_109, %c0_110], %242 {strides = array<i32>} : memref<8x128xf32, #tpu.memory_space<vmem>>, vector<8x128xf32>,
    %244 = arith.select %241, %237, %208 : vector<8x128xi1>, vector<8x128xf32>
    %c0_111 = arith.constant 0 : index
    %c0_112 = arith.constant 0 : index
    %245 = vector.load %arg15[%c0_111, %c0_112] : memref<8x128xf32, #tpu.memory_space<vmem>>, vector<8x128xf32>
    tpu.vector_store %arg15[%c0_111, %c0_112], %244 {strides = array<i32>} : memref<8x128xf32, #tpu.memory_space<vmem>>, vector<8x128xf32>,
    %cst_113 = arith.constant 0.000000e+00 : f32
    %246 = vector.broadcast %cst_113 : f32 to vector<8x128xf32>
    %247 = arith.select %241, %239, %246 : vector<8x128xi1>, vector<8x128xf32>
    %248 = arith.index_cast %206 : i32 to index
    %c0_114 = arith.constant 0 : index
    %249 = vector.load %arg13[%248, %c0_114] : memref<64x128xf32, #tpu.memory_space<vmem>>, vector<8x128xf32>
    tpu.vector_store %arg13[%248, %c0_114], %247 {strides = array<i32>} : memref<64x128xf32, #tpu.memory_space<vmem>>, vector<8x128xf32>,
    %c5_i32 = arith.constant 5 : i32
    %c1_i32_115 = arith.constant 1 : i32
    %250 = arith.muli %c5_i32, %c1_i32_115 : i32
    %c0_i32_116 = arith.constant 0 : i32
    %251 = arith.addi %c0_i32_116, %250 : i32
    %c8_i32_117 = arith.constant 8 : i32
    %252 = arith.muli %251, %c8_i32_117 : i32
    %253 = tpu.assume_multiple %252, 8 : i32
    %c0_118 = arith.constant 0 : index
    %c0_119 = arith.constant 0 : index
    %254 = vector.load %arg14[%c0_118, %c0_119] : memref<8x128xf32, #tpu.memory_space<vmem>>, vector<8x128xf32>
    %c0_120 = arith.constant 0 : index
    %c0_121 = arith.constant 0 : index
    %255 = vector.load %arg15[%c0_120, %c0_121] : memref<8x128xf32, #tpu.memory_space<vmem>>, vector<8x128xf32>
    %256 = arith.index_cast %253 : i32 to index
    %c0_122 = arith.constant 0 : index
    %257 = vector.load %arg12[%256, %c0_122] : memref<64x512xf32, #tpu.memory_space<vmem>>, vector<8x512xf32>
    %258 = arith.truncf %254 : vector<8x128xf32> to vector<8x128xbf16>
    %c0_123 = arith.constant 0 : index
    %c0_124 = arith.constant 0 : index
    %259 = vector.load %arg4[%c0_123, %c0_124] : memref<128x512xbf16, #tpu.memory_space<vmem>>, vector<128x512xbf16>
    %cst_125 = arith.constant dense<0.000000e+00> : vector<8x512xf32>
    %260 = tpu.matmul %258, %259, %cst_125 {dimension_numbers = #tpu.dot_dimension_numbers<[1], [0], [0], [1], [0, 0, 1, 1], [], []>} : vector<8x128xbf16>, vector<128x512xbf16>, vector<8x512xf32> -> vector<8x512xf32>
    %261 = arith.addf %257, %260 : vector<8x512xf32>
    %262 = vector.extract_strided_slice %261 {offsets = [0, 0], sizes = [8, 128], strides = [1, 1]} : vector<8x512xf32> to vector<8x128xf32>
    %263 = arith.negf %262 : vector<8x128xf32>
    %264 = math.exp %263 : vector<8x128xf32>
    %cst_126 = arith.constant 1.000000e+00 : f32
    %265 = vector.broadcast %cst_126 : f32 to vector<8x128xf32>
    %266 = arith.addf %265, %264 : vector<8x128xf32>
    %267 = arith.divf %265, %266 : vector<8x128xf32>
    %268 = vector.extract_strided_slice %261 {offsets = [0, 128], sizes = [8, 128], strides = [1, 1]} : vector<8x512xf32> to vector<8x128xf32>
    %269 = arith.negf %268 : vector<8x128xf32>
    %270 = math.exp %269 : vector<8x128xf32>
    %cst_127 = arith.constant 1.000000e+00 : f32
    %271 = vector.broadcast %cst_127 : f32 to vector<8x128xf32>
    %272 = arith.addf %271, %270 : vector<8x128xf32>
    %273 = arith.divf %271, %272 : vector<8x128xf32>
    %274 = vector.extract_strided_slice %261 {offsets = [0, 256], sizes = [8, 128], strides = [1, 1]} : vector<8x512xf32> to vector<8x128xf32>
    %275 = math.tanh %274 : vector<8x128xf32>
    %276 = vector.extract_strided_slice %261 {offsets = [0, 384], sizes = [8, 128], strides = [1, 1]} : vector<8x512xf32> to vector<8x128xf32>
    %277 = arith.negf %276 : vector<8x128xf32>
    %278 = math.exp %277 : vector<8x128xf32>
    %cst_128 = arith.constant 1.000000e+00 : f32
    %279 = vector.broadcast %cst_128 : f32 to vector<8x128xf32>
    %280 = arith.addf %279, %278 : vector<8x128xf32>
    %281 = arith.divf %279, %280 : vector<8x128xf32>
    %282 = arith.mulf %273, %255 : vector<8x128xf32>
    %283 = arith.mulf %267, %275 : vector<8x128xf32>
    %284 = arith.addf %282, %283 : vector<8x128xf32>
    %285 = math.tanh %284 : vector<8x128xf32>
    %286 = arith.mulf %281, %285 : vector<8x128xf32>
    %287 = vector.broadcast %251 : i32 to vector<8x128xi32>
    %288 = arith.cmpi slt, %287, %14 : vector<8x128xi32>
    %289 = arith.select %288, %286, %254 : vector<8x128xi1>, vector<8x128xf32>
    %c0_129 = arith.constant 0 : index
    %c0_130 = arith.constant 0 : index
    %290 = vector.load %arg14[%c0_129, %c0_130] : memref<8x128xf32, #tpu.memory_space<vmem>>, vector<8x128xf32>
    tpu.vector_store %arg14[%c0_129, %c0_130], %289 {strides = array<i32>} : memref<8x128xf32, #tpu.memory_space<vmem>>, vector<8x128xf32>,
    %291 = arith.select %288, %284, %255 : vector<8x128xi1>, vector<8x128xf32>
    %c0_131 = arith.constant 0 : index
    %c0_132 = arith.constant 0 : index
    %292 = vector.load %arg15[%c0_131, %c0_132] : memref<8x128xf32, #tpu.memory_space<vmem>>, vector<8x128xf32>
    tpu.vector_store %arg15[%c0_131, %c0_132], %291 {strides = array<i32>} : memref<8x128xf32, #tpu.memory_space<vmem>>, vector<8x128xf32>,
    %cst_133 = arith.constant 0.000000e+00 : f32
    %293 = vector.broadcast %cst_133 : f32 to vector<8x128xf32>
    %294 = arith.select %288, %286, %293 : vector<8x128xi1>, vector<8x128xf32>
    %295 = arith.index_cast %253 : i32 to index
    %c0_134 = arith.constant 0 : index
    %296 = vector.load %arg13[%295, %c0_134] : memref<64x128xf32, #tpu.memory_space<vmem>>, vector<8x128xf32>
    tpu.vector_store %arg13[%295, %c0_134], %294 {strides = array<i32>} : memref<64x128xf32, #tpu.memory_space<vmem>>, vector<8x128xf32>,
    %c6_i32 = arith.constant 6 : i32
    %c1_i32_135 = arith.constant 1 : i32
    %297 = arith.muli %c6_i32, %c1_i32_135 : i32
    %c0_i32_136 = arith.constant 0 : i32
    %298 = arith.addi %c0_i32_136, %297 : i32
    %c8_i32_137 = arith.constant 8 : i32
    %299 = arith.muli %298, %c8_i32_137 : i32
    %300 = tpu.assume_multiple %299, 8 : i32
    %c0_138 = arith.constant 0 : index
    %c0_139 = arith.constant 0 : index
    %301 = vector.load %arg14[%c0_138, %c0_139] : memref<8x128xf32, #tpu.memory_space<vmem>>, vector<8x128xf32>
    %c0_140 = arith.constant 0 : index
    %c0_141 = arith.constant 0 : index
    %302 = vector.load %arg15[%c0_140, %c0_141] : memref<8x128xf32, #tpu.memory_space<vmem>>, vector<8x128xf32>
    %303 = arith.index_cast %300 : i32 to index
    %c0_142 = arith.constant 0 : index
    %304 = vector.load %arg12[%303, %c0_142] : memref<64x512xf32, #tpu.memory_space<vmem>>, vector<8x512xf32>
    %305 = arith.truncf %301 : vector<8x128xf32> to vector<8x128xbf16>
    %c0_143 = arith.constant 0 : index
    %c0_144 = arith.constant 0 : index
    %306 = vector.load %arg4[%c0_143, %c0_144] : memref<128x512xbf16, #tpu.memory_space<vmem>>, vector<128x512xbf16>
    %cst_145 = arith.constant dense<0.000000e+00> : vector<8x512xf32>
    %307 = tpu.matmul %305, %306, %cst_145 {dimension_numbers = #tpu.dot_dimension_numbers<[1], [0], [0], [1], [0, 0, 1, 1], [], []>} : vector<8x128xbf16>, vector<128x512xbf16>, vector<8x512xf32> -> vector<8x512xf32>
    %308 = arith.addf %304, %307 : vector<8x512xf32>
    %309 = vector.extract_strided_slice %308 {offsets = [0, 0], sizes = [8, 128], strides = [1, 1]} : vector<8x512xf32> to vector<8x128xf32>
    %310 = arith.negf %309 : vector<8x128xf32>
    %311 = math.exp %310 : vector<8x128xf32>
    %cst_146 = arith.constant 1.000000e+00 : f32
    %312 = vector.broadcast %cst_146 : f32 to vector<8x128xf32>
    %313 = arith.addf %312, %311 : vector<8x128xf32>
    %314 = arith.divf %312, %313 : vector<8x128xf32>
    %315 = vector.extract_strided_slice %308 {offsets = [0, 128], sizes = [8, 128], strides = [1, 1]} : vector<8x512xf32> to vector<8x128xf32>
    %316 = arith.negf %315 : vector<8x128xf32>
    %317 = math.exp %316 : vector<8x128xf32>
    %cst_147 = arith.constant 1.000000e+00 : f32
    %318 = vector.broadcast %cst_147 : f32 to vector<8x128xf32>
    %319 = arith.addf %318, %317 : vector<8x128xf32>
    %320 = arith.divf %318, %319 : vector<8x128xf32>
    %321 = vector.extract_strided_slice %308 {offsets = [0, 256], sizes = [8, 128], strides = [1, 1]} : vector<8x512xf32> to vector<8x128xf32>
    %322 = math.tanh %321 : vector<8x128xf32>
    %323 = vector.extract_strided_slice %308 {offsets = [0, 384], sizes = [8, 128], strides = [1, 1]} : vector<8x512xf32> to vector<8x128xf32>
    %324 = arith.negf %323 : vector<8x128xf32>
    %325 = math.exp %324 : vector<8x128xf32>
    %cst_148 = arith.constant 1.000000e+00 : f32
    %326 = vector.broadcast %cst_148 : f32 to vector<8x128xf32>
    %327 = arith.addf %326, %325 : vector<8x128xf32>
    %328 = arith.divf %326, %327 : vector<8x128xf32>
    %329 = arith.mulf %320, %302 : vector<8x128xf32>
    %330 = arith.mulf %314, %322 : vector<8x128xf32>
    %331 = arith.addf %329, %330 : vector<8x128xf32>
    %332 = math.tanh %331 : vector<8x128xf32>
    %333 = arith.mulf %328, %332 : vector<8x128xf32>
    %334 = vector.broadcast %298 : i32 to vector<8x128xi32>
    %335 = arith.cmpi slt, %334, %14 : vector<8x128xi32>
    %336 = arith.select %335, %333, %301 : vector<8x128xi1>, vector<8x128xf32>
    %c0_149 = arith.constant 0 : index
    %c0_150 = arith.constant 0 : index
    %337 = vector.load %arg14[%c0_149, %c0_150] : memref<8x128xf32, #tpu.memory_space<vmem>>, vector<8x128xf32>
    tpu.vector_store %arg14[%c0_149, %c0_150], %336 {strides = array<i32>} : memref<8x128xf32, #tpu.memory_space<vmem>>, vector<8x128xf32>,
    %338 = arith.select %335, %331, %302 : vector<8x128xi1>, vector<8x128xf32>
    %c0_151 = arith.constant 0 : index
    %c0_152 = arith.constant 0 : index
    %339 = vector.load %arg15[%c0_151, %c0_152] : memref<8x128xf32, #tpu.memory_space<vmem>>, vector<8x128xf32>
    tpu.vector_store %arg15[%c0_151, %c0_152], %338 {strides = array<i32>} : memref<8x128xf32, #tpu.memory_space<vmem>>, vector<8x128xf32>,
    %cst_153 = arith.constant 0.000000e+00 : f32
    %340 = vector.broadcast %cst_153 : f32 to vector<8x128xf32>
    %341 = arith.select %335, %333, %340 : vector<8x128xi1>, vector<8x128xf32>
    %342 = arith.index_cast %300 : i32 to index
    %c0_154 = arith.constant 0 : index
    %343 = vector.load %arg13[%342, %c0_154] : memref<64x128xf32, #tpu.memory_space<vmem>>, vector<8x128xf32>
    tpu.vector_store %arg13[%342, %c0_154], %341 {strides = array<i32>} : memref<64x128xf32, #tpu.memory_space<vmem>>, vector<8x128xf32>,
    %c7_i32 = arith.constant 7 : i32
    %c1_i32_155 = arith.constant 1 : i32
    %344 = arith.muli %c7_i32, %c1_i32_155 : i32
    %c0_i32_156 = arith.constant 0 : i32
    %345 = arith.addi %c0_i32_156, %344 : i32
    %c8_i32_157 = arith.constant 8 : i32
    %346 = arith.muli %345, %c8_i32_157 : i32
    %347 = tpu.assume_multiple %346, 8 : i32
    %c0_158 = arith.constant 0 : index
    %c0_159 = arith.constant 0 : index
    %348 = vector.load %arg14[%c0_158, %c0_159] : memref<8x128xf32, #tpu.memory_space<vmem>>, vector<8x128xf32>
    %c0_160 = arith.constant 0 : index
    %c0_161 = arith.constant 0 : index
    %349 = vector.load %arg15[%c0_160, %c0_161] : memref<8x128xf32, #tpu.memory_space<vmem>>, vector<8x128xf32>
    %350 = arith.index_cast %347 : i32 to index
    %c0_162 = arith.constant 0 : index
    %351 = vector.load %arg12[%350, %c0_162] : memref<64x512xf32, #tpu.memory_space<vmem>>, vector<8x512xf32>
    %352 = arith.truncf %348 : vector<8x128xf32> to vector<8x128xbf16>
    %c0_163 = arith.constant 0 : index
    %c0_164 = arith.constant 0 : index
    %353 = vector.load %arg4[%c0_163, %c0_164] : memref<128x512xbf16, #tpu.memory_space<vmem>>, vector<128x512xbf16>
    %cst_165 = arith.constant dense<0.000000e+00> : vector<8x512xf32>
    %354 = tpu.matmul %352, %353, %cst_165 {dimension_numbers = #tpu.dot_dimension_numbers<[1], [0], [0], [1], [0, 0, 1, 1], [], []>} : vector<8x128xbf16>, vector<128x512xbf16>, vector<8x512xf32> -> vector<8x512xf32>
    %355 = arith.addf %351, %354 : vector<8x512xf32>
    %356 = vector.extract_strided_slice %355 {offsets = [0, 0], sizes = [8, 128], strides = [1, 1]} : vector<8x512xf32> to vector<8x128xf32>
    %357 = arith.negf %356 : vector<8x128xf32>
    %358 = math.exp %357 : vector<8x128xf32>
    %cst_166 = arith.constant 1.000000e+00 : f32
    %359 = vector.broadcast %cst_166 : f32 to vector<8x128xf32>
    %360 = arith.addf %359, %358 : vector<8x128xf32>
    %361 = arith.divf %359, %360 : vector<8x128xf32>
    %362 = vector.extract_strided_slice %355 {offsets = [0, 128], sizes = [8, 128], strides = [1, 1]} : vector<8x512xf32> to vector<8x128xf32>
    %363 = arith.negf %362 : vector<8x128xf32>
    %364 = math.exp %363 : vector<8x128xf32>
    %cst_167 = arith.constant 1.000000e+00 : f32
    %365 = vector.broadcast %cst_167 : f32 to vector<8x128xf32>
    %366 = arith.addf %365, %364 : vector<8x128xf32>
    %367 = arith.divf %365, %366 : vector<8x128xf32>
    %368 = vector.extract_strided_slice %355 {offsets = [0, 256], sizes = [8, 128], strides = [1, 1]} : vector<8x512xf32> to vector<8x128xf32>
    %369 = math.tanh %368 : vector<8x128xf32>
    %370 = vector.extract_strided_slice %355 {offsets = [0, 384], sizes = [8, 128], strides = [1, 1]} : vector<8x512xf32> to vector<8x128xf32>
    %371 = arith.negf %370 : vector<8x128xf32>
    %372 = math.exp %371 : vector<8x128xf32>
    %cst_168 = arith.constant 1.000000e+00 : f32
    %373 = vector.broadcast %cst_168 : f32 to vector<8x128xf32>
    %374 = arith.addf %373, %372 : vector<8x128xf32>
    %375 = arith.divf %373, %374 : vector<8x128xf32>
    %376 = arith.mulf %367, %349 : vector<8x128xf32>
    %377 = arith.mulf %361, %369 : vector<8x128xf32>
    %378 = arith.addf %376, %377 : vector<8x128xf32>
    %379 = math.tanh %378 : vector<8x128xf32>
    %380 = arith.mulf %375, %379 : vector<8x128xf32>
    %381 = vector.broadcast %345 : i32 to vector<8x128xi32>
    %382 = arith.cmpi slt, %381, %14 : vector<8x128xi32>
    %383 = arith.select %382, %380, %348 : vector<8x128xi1>, vector<8x128xf32>
    %c0_169 = arith.constant 0 : index
    %c0_170 = arith.constant 0 : index
    %384 = vector.load %arg14[%c0_169, %c0_170] : memref<8x128xf32, #tpu.memory_space<vmem>>, vector<8x128xf32>
    tpu.vector_store %arg14[%c0_169, %c0_170], %383 {strides = array<i32>} : memref<8x128xf32, #tpu.memory_space<vmem>>, vector<8x128xf32>,
    %385 = arith.select %382, %378, %349 : vector<8x128xi1>, vector<8x128xf32>
    %c0_171 = arith.constant 0 : index
    %c0_172 = arith.constant 0 : index
    %386 = vector.load %arg15[%c0_171, %c0_172] : memref<8x128xf32, #tpu.memory_space<vmem>>, vector<8x128xf32>
    tpu.vector_store %arg15[%c0_171, %c0_172], %385 {strides = array<i32>} : memref<8x128xf32, #tpu.memory_space<vmem>>, vector<8x128xf32>,
    %cst_173 = arith.constant 0.000000e+00 : f32
    %387 = vector.broadcast %cst_173 : f32 to vector<8x128xf32>
    %388 = arith.select %382, %380, %387 : vector<8x128xi1>, vector<8x128xf32>
    %389 = arith.index_cast %347 : i32 to index
    %c0_174 = arith.constant 0 : index
    %390 = vector.load %arg13[%389, %c0_174] : memref<64x128xf32, #tpu.memory_space<vmem>>, vector<8x128xf32>
    tpu.vector_store %arg13[%389, %c0_174], %388 {strides = array<i32>} : memref<64x128xf32, #tpu.memory_space<vmem>>, vector<8x128xf32>,
    %c8_i32_175 = arith.constant 8 : i32
    %c0_176 = arith.constant 0 : index
    %c0_177 = arith.constant 0 : index
    %391 = vector.load %arg13[%c0_176, %c0_177] : memref<64x128xf32, #tpu.memory_space<vmem>>, vector<64x128xf32>
    %392 = arith.truncf %391 : vector<64x128xf32> to vector<64x128xbf16>
    %c0_178 = arith.constant 0 : index
    %c0_179 = arith.constant 0 : index
    %393 = vector.load %arg6[%c0_178, %c0_179] : memref<128x128xbf16, #tpu.memory_space<vmem>>, vector<128x128xbf16>
    %cst_180 = arith.constant dense<0.000000e+00> : vector<64x128xf32>
    %394 = tpu.matmul %392, %393, %cst_180 {dimension_numbers = #tpu.dot_dimension_numbers<[1], [0], [0], [1], [0, 0, 1, 1], [], []>} : vector<64x128xbf16>, vector<128x128xbf16>, vector<64x128xf32> -> vector<64x128xf32>
    %c0_181 = arith.constant 0 : index
    %c0_182 = arith.constant 0 : index
    %395 = vector.load %arg7[%c0_181, %c0_182] : memref<1x128xf32, #tpu.memory_space<vmem>>, vector<1x128xf32>
    %396 = vector.broadcast %395 : vector<1x128xf32> to vector<64x128xf32>
    %397 = arith.addf %394, %396 : vector<64x128xf32>
    %c0_183 = arith.constant 0 : index
    %c0_184 = arith.constant 0 : index
    %c0_185 = arith.constant 0 : index
    %398 = vector.load %arg10[%c0_183, %c0_184, %c0_185] : memref<1x64x128xf32, #tpu.memory_space<vmem>>, vector<1x64x128xf32>
    %399 = vector.shape_cast %398 : vector<1x64x128xf32> to vector<64x128xf32>
    %400 = vector.shape_cast %397 : vector<64x128xf32> to vector<1x64x128xf32>
    tpu.vector_store %arg10[%c0_183, %c0_184, %c0_185], %400 {strides = array<i32>} : memref<1x64x128xf32, #tpu.memory_space<vmem>>, vector<1x64x128xf32>,
    %c0_186 = arith.constant 0 : index
    %c0_187 = arith.constant 0 : index
    %401 = vector.load %arg14[%c0_186, %c0_187] : memref<8x128xf32, #tpu.memory_space<vmem>>, vector<8x128xf32>
    %402 = arith.truncf %401 : vector<8x128xf32> to vector<8x128xbf16>
    %c0_188 = arith.constant 0 : index
    %c0_189 = arith.constant 0 : index
    %403 = vector.load %arg8[%c0_188, %c0_189] : memref<128x128xbf16, #tpu.memory_space<vmem>>, vector<128x128xbf16>
    %cst_190 = arith.constant dense<0.000000e+00> : vector<8x128xf32>
    %404 = tpu.matmul %402, %403, %cst_190 {dimension_numbers = #tpu.dot_dimension_numbers<[1], [0], [0], [1], [0, 0, 1, 1], [], []>} : vector<8x128xbf16>, vector<128x128xbf16>, vector<8x128xf32> -> vector<8x128xf32>
    %c0_191 = arith.constant 0 : index
    %c0_192 = arith.constant 0 : index
    %405 = vector.load %arg9[%c0_191, %c0_192] : memref<1x128xf32, #tpu.memory_space<vmem>>, vector<1x128xf32>
    %406 = vector.broadcast %405 : vector<1x128xf32> to vector<8x128xf32>
    %407 = arith.addf %404, %406 : vector<8x128xf32>
    %c0_193 = arith.constant 0 : index
    %c0_194 = arith.constant 0 : index
    %408 = vector.load %arg11[%c0_193, %c0_194] : memref<8x128xf32, #tpu.memory_space<vmem>>, vector<8x128xf32>
    tpu.vector_store %arg11[%c0_193, %c0_194], %407 {strides = array<i32>} : memref<8x128xf32, #tpu.memory_space<vmem>>, vector<8x128xf32>,
    return
  }
  func.func @transform_0(%arg0: i32) -> (i32, i32, i32) {
    %c0_i32 = arith.constant 0 : i32
    %c0_i32_0 = arith.constant 0 : i32
    %c0_i32_1 = arith.constant 0 : i32
    return %arg0, %c0_i32, %c0_i32_0 : i32, i32, i32
  }
  func.func @transform_1(%arg0: i32) -> (i32, i32) {
    %c0_i32 = arith.constant 0 : i32
    %c0_i32_0 = arith.constant 0 : i32
    return %arg0, %c0_i32 : i32, i32
  }
  func.func @transform_2(%arg0: i32) -> (i32, i32) {
    %c0_i32 = arith.constant 0 : i32
    %c0_i32_0 = arith.constant 0 : i32
    %c0_i32_1 = arith.constant 0 : i32
    return %c0_i32, %c0_i32_0 : i32, i32
  }
  func.func @transform_3(%arg0: i32) -> (i32, i32) {
    %c0_i32 = arith.constant 0 : i32
    %c0_i32_0 = arith.constant 0 : i32
    %c0_i32_1 = arith.constant 0 : i32
    return %c0_i32, %c0_i32_0 : i32, i32
  }
  func.func @transform_4(%arg0: i32) -> (i32, i32) {
    %c0_i32 = arith.constant 0 : i32
    %c0_i32_0 = arith.constant 0 : i32
    %c0_i32_1 = arith.constant 0 : i32
    return %c0_i32, %c0_i32_0 : i32, i32
  }
  func.func @transform_5(%arg0: i32) -> (i32, i32) {
    %c0_i32 = arith.constant 0 : i32
    %c0_i32_0 = arith.constant 0 : i32
    %c0_i32_1 = arith.constant 0 : i32
    return %c0_i32, %c0_i32_0 : i32, i32
  }
  func.func @transform_6(%arg0: i32) -> (i32, i32) {
    %c0_i32 = arith.constant 0 : i32
    %c0_i32_0 = arith.constant 0 : i32
    %c0_i32_1 = arith.constant 0 : i32
    return %c0_i32, %c0_i32_0 : i32, i32
  }
  func.func @transform_7(%arg0: i32) -> (i32, i32) {
    %c0_i32 = arith.constant 0 : i32
    %c0_i32_0 = arith.constant 0 : i32
    %c0_i32_1 = arith.constant 0 : i32
    return %c0_i32, %c0_i32_0 : i32, i32
  }
  func.func @transform_8(%arg0: i32) -> (i32, i32) {
    %c0_i32 = arith.constant 0 : i32
    %c0_i32_0 = arith.constant 0 : i32
    %c0_i32_1 = arith.constant 0 : i32
    return %c0_i32, %c0_i32_0 : i32, i32
  }
  func.func @transform_9(%arg0: i32) -> (i32, i32, i32) {
    %c0_i32 = arith.constant 0 : i32
    %c0_i32_0 = arith.constant 0 : i32
    %c0_i32_1 = arith.constant 0 : i32
    return %arg0, %c0_i32, %c0_i32_0 : i32, i32, i32
  }
  func.func @transform_10(%arg0: i32) -> (i32, i32) {
    %c0_i32 = arith.constant 0 : i32
    %c0_i32_0 = arith.constant 0 : i32
    return %arg0, %c0_i32 : i32, i32
  }
}

</mosaic_0001>

<llo_original>
// kernel: tpu_custom_call.1
$region0: #{tpu_custom_call.1}
  #allocation0 [shape = 'u32[]', space=smem, size = 0x4, offset = 0x4, fixed_abs, tag = 'smem constant byte address 0x4 - core index']
  #allocation1 [shape = 'u32[144,128]{1,0:T(1,128)}', space=vmem, size = 0x12000, scoped, tag = 'internal scratch']
  #allocation2 [shape = 'f32[64,512]{1,0:T(8,128)}', space=vmem, size = 0x20000, scoped, tag = 'scratch operand']
  #allocation3 [shape = 'f32[64,128]{1,0:T(8,128)}', space=vmem, size = 0x8000, scoped, tag = 'scratch operand']
  #allocation4 [shape = 'f32[8,128]{1,0:T(8,128)}', space=vmem, size = 0x1000, scoped, tag = 'scratch operand']
  #allocation5 [shape = 'f32[8,128]{1,0:T(8,128)}', space=vmem, size = 0x1000, scoped, tag = 'scratch operand']
  %s0 = inlined_call_operand.hbm [shape: bf16[1,64,128], index: 0, kind: input, shape index: {}]
  %s1 = inlined_call_operand.vmem [shape: s32[8,1], index: 1, kind: input, shape index: {}]
  %s2 = inlined_call_operand.hbm [shape: bf16[128,512], index: 2, kind: input, shape index: {}]
  %s3 = inlined_call_operand.hbm [shape: bf16[128,512], index: 3, kind: input, shape index: {}]
  %s4 = inlined_call_operand.vmem [shape: f32[1,512], index: 4, kind: input, shape index: {}]
  %s5 = inlined_call_operand.hbm [shape: bf16[128,128], index: 5, kind: input, shape index: {}]
  %s6 = inlined_call_operand.vmem [shape: f32[1,128], index: 6, kind: input, shape index: {}]
  %s7 = inlined_call_operand.hbm [shape: bf16[128,128], index: 7, kind: input, shape index: {}]
  %s8 = inlined_call_operand.vmem [shape: f32[1,128], index: 8, kind: input, shape index: {}]
  %s9 = inlined_call_operand.hbm [shape: f32[1,64,128], index: 9, kind: output, shape index: {0}]
  %s10 = inlined_call_operand.hbm [shape: f32[8,128], index: 10, kind: output, shape index: {1}]
  %11 = xla_tuple %s9, %s10
  %s12 = sld [smem:[#allocation0]]
  $region74: #{tpu_custom_call.1} parent=0
    _
  %s14 = ssub.s32 1, %s12
  %s15 = scalar_select 0, %s14, %s12
  $region1: #{tpu_custom_call.1} parent=0
    #allocation6 [shape = 'u8[16384]{0}', space=vmem, size = 0x4000, scoped, tag = 'input window, operand 0, single buffered']
    #allocation7 [shape = 's32[1]{0}', space=sflag, size = 0x4, scoped, tag = 'scoped memory for tpu_custom_call.1']
    #allocation8 [shape = 's32[1]{0}', space=sflag, size = 0x4, scoped, tag = 'scoped memory for tpu_custom_call.1']
    #allocation9 [shape = 'u8[131072]{0}', space=vmem, size = 0x20000, scoped, tag = 'input window, operand 2, single buffered']
    #allocation10 [shape = 's32[1]{0}', space=sflag, size = 0x4, scoped, tag = 'scoped memory for tpu_custom_call.1']
    #allocation11 [shape = 'u8[131072]{0}', space=vmem, size = 0x20000, scoped, tag = 'input window, operand 3, single buffered']
    #allocation12 [shape = 'u8[32768]{0}', space=vmem, size = 0x8000, scoped, tag = 'input window, operand 5, single buffered']
    #allocation13 [shape = 's32[1]{0}', space=sflag, size = 0x4, scoped, tag = 'scoped memory for tpu_custom_call.1']
    #allocation14 [shape = 'u8[32768]{0}', space=vmem, size = 0x8000, scoped, tag = 'input window, operand 7, single buffered']
    #allocation15 [shape = 'u8[32768]{0}', space=vmem, size = 0x8000, scoped, tag = 'output window, operand 0, single buffered']
    #allocation16 [shape = 'u8[4096]{0}', space=vmem, size = 0x1000, scoped, tag = 'output window, operand 1, single buffered']
    #allocation17 [shape = 's32[1]{0}', space=sflag, size = 0x4, scoped, tag = 'scoped memory for tpu_custom_call.1']
    %16 = vsyncpa [#allocation7], 0
    %17 = vsyncpa [#allocation10], 0
    %18 = vsyncpa [#allocation13], 0
    %19 = vsyncpa [#allocation8], 0
    %20 = vsyncpa [#allocation17], 0
    // Predicated region
    $region2: #{tpu_custom_call.1} parent=1 // pred_check
      _
    $region3: #{tpu_custom_call.1} parent=1 // pred_check_branch
      %22 = sbr.rel (0) target = $region5
    $region4: #{tpu_custom_call.1} parent=1 // pred_region
      %s24 = ssub.s32 512, 512
      %25 = vsyncadd [#allocation7], %s24
      %s26 = sshll.u32 [#allocation6], 4
      %s27 = int_to_ptr.vmem [resolvable:$true] %s26
      %32 = dma.hbm_to_vmem [thread:$0]  %s0, 512, %s27, [#allocation7], 64, 64, 4
    $region5: #{tpu_custom_call.1} parent=1 // pred_fallthru
      _
    // Predicated region
    $region6: #{tpu_custom_call.1} parent=1 // pred_check
      _
    $region7: #{tpu_custom_call.1} parent=1 // pred_check_branch
      %34 = sbr.rel (0) target = $region9
    $region8: #{tpu_custom_call.1} parent=1 // pred_region
      _
    $region9: #{tpu_custom_call.1} parent=1 // pred_fallthru
      _
    // Predicated region
    $region10: #{tpu_custom_call.1} parent=1 // pred_check
      _
    $region11: #{tpu_custom_call.1} parent=1 // pred_check_branch
      %36 = sbr.rel (0) target = $region13
    $region12: #{tpu_custom_call.1} parent=1 // pred_region
      %s38 = ssub.s32 4096, 4096
      %39 = vsyncadd [#allocation10], %s38
      %s40 = sshll.u32 [#allocation9], 4
      %s41 = int_to_ptr.vmem [resolvable:$true] %s40
      %46 = dma.hbm_to_vmem [thread:$0]  %s2, 4096, %s41, [#allocation10], 256, 256, 16
    $region13: #{tpu_custom_call.1} parent=1 // pred_fallthru
      _
    // Predicated region
    $region14: #{tpu_custom_call.1} parent=1 // pred_check
      _
    $region15: #{tpu_custom_call.1} parent=1 // pred_check_branch
      %48 = sbr.rel (0) target = $region17
    $region16: #{tpu_custom_call.1} parent=1 // pred_region
      %s50 = ssub.s32 4096, 4096
      %51 = vsyncadd [#allocation10], %s50
      %s52 = sshll.u32 [#allocation11], 4
      %s53 = int_to_ptr.vmem [resolvable:$true] %s52
      %58 = dma.hbm_to_vmem [thread:$0]  %s3, 4096, %s53, [#allocation10], 256, 256, 16
    $region17: #{tpu_custom_call.1} parent=1 // pred_fallthru
      _
    // Predicated region
    $region18: #{tpu_custom_call.1} parent=1 // pred_check
      _
    $region19: #{tpu_custom_call.1} parent=1 // pred_check_branch
      %60 = sbr.rel (0) target = $region21
    $region20: #{tpu_custom_call.1} parent=1 // pred_region
      _
    $region21: #{tpu_custom_call.1} parent=1 // pred_fallthru
      _
    // Predicated region
    $region22: #{tpu_custom_call.1} parent=1 // pred_check
      _
    $region23: #{tpu_custom_call.1} parent=1 // pred_check_branch
      %62 = sbr.rel (0) target = $region25
    $region24: #{tpu_custom_call.1} parent=1 // pred_region
      %s64 = ssub.s32 1024, 1024
      %65 = vsyncadd [#allocation13], %s64
      %s66 = sshll.u32 [#allocation12], 4
      %s67 = int_to_ptr.vmem [resolvable:$true] %s66
      %72 = dma.hbm_to_vmem [thread:$0]  %s5, 1024, %s67, [#allocation13], 64, 64, 4
    $region25: #{tpu_custom_call.1} parent=1 // pred_fallthru
      _
    // Predicated region
    $region26: #{tpu_custom_call.1} parent=1 // pred_check
      _
    $region27: #{tpu_custom_call.1} parent=1 // pred_check_branch
      %74 = sbr.rel (0) target = $region29
    $region28: #{tpu_custom_call.1} parent=1 // pred_region
      _
    $region29: #{tpu_custom_call.1} parent=1 // pred_fallthru
      _
    // Predicated region
    $region30: #{tpu_custom_call.1} parent=1 // pred_check
      _
    $region31: #{tpu_custom_call.1} parent=1 // pred_check_branch
      %76 = sbr.rel (0) target = $region33
    $region32: #{tpu_custom_call.1} parent=1 // pred_region
      %s78 = ssub.s32 1024, 1024
      %79 = vsyncadd [#allocation13], %s78
      %s80 = sshll.u32 [#allocation14], 4
      %s81 = int_to_ptr.vmem [resolvable:$true] %s80
      %86 = dma.hbm_to_vmem [thread:$0]  %s7, 1024, %s81, [#allocation13], 64, 64, 4
    $region33: #{tpu_custom_call.1} parent=1 // pred_fallthru
      _
    // Predicated region
    $region34: #{tpu_custom_call.1} parent=1 // pred_check
      _
    $region35: #{tpu_custom_call.1} parent=1 // pred_check_branch
      %88 = sbr.rel (0) target = $region37
    $region36: #{tpu_custom_call.1} parent=1 // pred_region
      _
    $region37: #{tpu_custom_call.1} parent=1 // pred_fallthru
      _
    // Predicated region
    $region38: #{tpu_custom_call.1} parent=1 // pred_check
      _
    $region39: #{tpu_custom_call.1} parent=1 // pred_check_branch
      %90 = sbr.rel (0) target = $region41
    $region40: #{tpu_custom_call.1} parent=1 // pred_region
      %91 = dma.done [#allocation7], 512
    $region41: #{tpu_custom_call.1} parent=1 // pred_fallthru
      _
    // Predicated region
    $region42: #{tpu_custom_call.1} parent=1 // pred_check
      _
    $region43: #{tpu_custom_call.1} parent=1 // pred_check_branch
      %93 = sbr.rel (0) target = $region45
    $region44: #{tpu_custom_call.1} parent=1 // pred_region
      %94 = dma.done [#allocation10], 4096
    $region45: #{tpu_custom_call.1} parent=1 // pred_fallthru
      _
    // Predicated region
    $region46: #{tpu_custom_call.1} parent=1 // pred_check
      _
    $region47: #{tpu_custom_call.1} parent=1 // pred_check_branch
      %96 = sbr.rel (0) target = $region49
    $region48: #{tpu_custom_call.1} parent=1 // pred_region
      %97 = dma.done [#allocation10], 4096
    $region49: #{tpu_custom_call.1} parent=1 // pred_fallthru
      _
    // Predicated region
    $region50: #{tpu_custom_call.1} parent=1 // pred_check
      _
    $region51: #{tpu_custom_call.1} parent=1 // pred_check_branch
      %99 = sbr.rel (0) target = $region53
    $region52: #{tpu_custom_call.1} parent=1 // pred_region
      %100 = dma.done [#allocation13], 1024
    $region53: #{tpu_custom_call.1} parent=1 // pred_fallthru
      _
    // Predicated region
    $region54: #{tpu_custom_call.1} parent=1 // pred_check
      _
    $region55: #{tpu_custom_call.1} parent=1 // pred_check_branch
      %102 = sbr.rel (0) target = $region57
    $region56: #{tpu_custom_call.1} parent=1 // pred_region
      %103 = dma.done [#allocation13], 1024
    $region57: #{tpu_custom_call.1} parent=1 // pred_fallthru
      _
    %v105 = vld [vmem:[#allocation6] sm:$0xf]
    %v106 = vld [vmem:[#allocation6 + $0x4] sm:$0xf]
    %v107 = vld [vmem:[#allocation6 + $0x8] sm:$0xf]
    %v108 = vld [vmem:[#allocation6 + $0xc] sm:$0xf]
    %v109 = vld [vmem:[#allocation6 + $0x10] sm:$0xf]
    %v110 = vld [vmem:[#allocation6 + $0x14] sm:$0xf]
    %v111 = vld [vmem:[#allocation6 + $0x18] sm:$0xf]
    %v112 = vld [vmem:[#allocation6 + $0x1c] sm:$0xf]
    %v113 = vld [vmem:[#allocation9] sm:$0xff]
    %v114 = vld [vmem:[#allocation9 + $0x8] sm:$0xff]
    %v115 = vld [vmem:[#allocation9 + $0x10] sm:$0xff]
    %v116 = vld [vmem:[#allocation9 + $0x18] sm:$0xff]
    %v117 = vld [vmem:[#allocation9 + $0x20] sm:$0xff]
    %v118 = vld [vmem:[#allocation9 + $0x28] sm:$0xff]
    %v119 = vld [vmem:[#allocation9 + $0x30] sm:$0xff]
    %v120 = vld [vmem:[#allocation9 + $0x38] sm:$0xff]
    %v121 = vld [vmem:[#allocation9 + $0x40] sm:$0xff]
    %v122 = vld [vmem:[#allocation9 + $0x48] sm:$0xff]
    %v123 = vld [vmem:[#allocation9 + $0x50] sm:$0xff]
    %v124 = vld [vmem:[#allocation9 + $0x58] sm:$0xff]
    %v125 = vld [vmem:[#allocation9 + $0x60] sm:$0xff]
    %v126 = vld [vmem:[#allocation9 + $0x68] sm:$0xff]
    %v127 = vld [vmem:[#allocation9 + $0x70] sm:$0xff]
    %v128 = vld [vmem:[#allocation9 + $0x78] sm:$0xff]
    %v129 = vld [vmem:[#allocation9 + $0x80] sm:$0xff]
    %v130 = vld [vmem:[#allocation9 + $0x88] sm:$0xff]
    %v131 = vld [vmem:[#allocation9 + $0x90] sm:$0xff]
    %v132 = vld [vmem:[#allocation9 + $0x98] sm:$0xff]
    %v133 = vld [vmem:[#allocation9 + $0xa0] sm:$0xff]
    %v134 = vld [vmem:[#allocation9 + $0xa8] sm:$0xff]
    %v135 = vld [vmem:[#allocation9 + $0xb0] sm:$0xff]
    %v136 = vld [vmem:[#allocation9 + $0xb8] sm:$0xff]
    %v137 = vld [vmem:[#allocation9 + $0xc0] sm:$0xff]
    %v138 = vld [vmem:[#allocation9 + $0xc8] sm:$0xff]
    %v139 = vld [vmem:[#allocation9 + $0xd0] sm:$0xff]
    %v140 = vld [vmem:[#allocation9 + $0xd8] sm:$0xff]
    %v141 = vld [vmem:[#allocation9 + $0xe0] sm:$0xff]
    %v142 = vld [vmem:[#allocation9 + $0xe8] sm:$0xff]
    %v143 = vld [vmem:[#allocation9 + $0xf0] sm:$0xff]
    %v144 = vld [vmem:[#allocation9 + $0xf8] sm:$0xff]
    %v145 = vld [vmem:[%s4] sm:$0xf]
    %v147 = vlaneseq
    %v148 = vshrl.u32 %v147, 7
    %v149 = vsub.s32 0, %v148
    %v150 = vrot.slane %v145, %v149
    %v151 = vlaneseq
    %v152 = vshrl.u32 %v151, 7
    %v153 = vsub.s32 1, %v152
    %v154 = vrot.slane %v145, %v153
    %v155 = vlaneseq
    %v156 = vshrl.u32 %v155, 7
    %v157 = vsub.s32 2, %v156
    %v158 = vrot.slane %v145, %v157
    %v159 = vlaneseq
    %v160 = vshrl.u32 %v159, 7
    %v161 = vsub.s32 3, %v160
    %v162 = vrot.slane %v145, %v161
    %v175 = vunpack.c.l.b16 %v105
    %v176 = vunpack.c.l.b16 %v106
    %v177 = vunpack.c.l.b16 %v107
    %v178 = vunpack.c.l.b16 %v108
    %v179 = vunpack.c.l.b16 %v109
    %v180 = vunpack.c.l.b16 %v110
    %v181 = vunpack.c.l.b16 %v111
    %v182 = vunpack.c.l.b16 %v112
    %v183 = vpack.c.b16 %v176, %v175
    %v184 = vpack.c.b16 %v178, %v177
    %v185 = vpack.c.b16 %v180, %v179
    %v186 = vpack.c.b16 %v182, %v181
    %v223 = vunpack.c.l.b16 %v113
    %v224 = vunpack.c.h.b16 %v113
    %v225 = vunpack.c.l.b16 %v114
    %v226 = vunpack.c.h.b16 %v114
    %v227 = vunpack.c.l.b16 %v115
    %v228 = vunpack.c.h.b16 %v115
    %v229 = vunpack.c.l.b16 %v116
    %v230 = vunpack.c.h.b16 %v116
    %v231 = vunpack.c.l.b16 %v117
    %v232 = vunpack.c.h.b16 %v117
    %v233 = vunpack.c.l.b16 %v118
    %v234 = vunpack.c.h.b16 %v118
    %v235 = vunpack.c.l.b16 %v119
    %v236 = vunpack.c.h.b16 %v119
    %v237 = vunpack.c.l.b16 %v120
    %v238 = vunpack.c.h.b16 %v120
    %v239 = vunpack.c.l.b16 %v121
    %v240 = vunpack.c.h.b16 %v121
    %v241 = vunpack.c.l.b16 %v122
    %v242 = vunpack.c.h.b16 %v122
    %v243 = vunpack.c.l.b16 %v123
    %v244 = vunpack.c.h.b16 %v123
    %v245 = vunpack.c.l.b16 %v124
    %v246 = vunpack.c.h.b16 %v124
    %v247 = vunpack.c.l.b16 %v125
    %v248 = vunpack.c.h.b16 %v125
    %v249 = vunpack.c.l.b16 %v126
    %v250 = vunpack.c.h.b16 %v126
    %v251 = vunpack.c.l.b16 %v127
    %v252 = vunpack.c.h.b16 %v127
    %v253 = vunpack.c.l.b16 %v128
    %v254 = vunpack.c.h.b16 %v128
    %v255 = vunpack.c.l.b16 %v129
    %v256 = vunpack.c.h.b16 %v129
    %v257 = vunpack.c.l.b16 %v130
    %v258 = vunpack.c.h.b16 %v130
    %v259 = vunpack.c.l.b16 %v131
    %v260 = vunpack.c.h.b16 %v131
    %v261 = vunpack.c.l.b16 %v132
    %v262 = vunpack.c.h.b16 %v132
    %v263 = vunpack.c.l.b16 %v133
    %v264 = vunpack.c.h.b16 %v133
    %v265 = vunpack.c.l.b16 %v134
    %v266 = vunpack.c.h.b16 %v134
    %v267 = vunpack.c.l.b16 %v135
    %v268 = vunpack.c.h.b16 %v135
    %v269 = vunpack.c.l.b16 %v136
    %v270 = vunpack.c.h.b16 %v136
    %v271 = vunpack.c.l.b16 %v137
    %v272 = vunpack.c.h.b16 %v137
    %v273 = vunpack.c.l.b16 %v138
    %v274 = vunpack.c.h.b16 %v138
    %v275 = vunpack.c.l.b16 %v139
    %v276 = vunpack.c.h.b16 %v139
    %v277 = vunpack.c.l.b16 %v140
    %v278 = vunpack.c.h.b16 %v140
    %v279 = vunpack.c.l.b16 %v141
    %v280 = vunpack.c.h.b16 %v141
    %v281 = vunpack.c.l.b16 %v142
    %v282 = vunpack.c.h.b16 %v142
    %v283 = vunpack.c.l.b16 %v143
    %v284 = vunpack.c.h.b16 %v143
    %v285 = vunpack.c.l.b16 %v144
    %v286 = vunpack.c.h.b16 %v144
    %v287 = vpack.c.b16 %v227, %v223
    %v288 = vpack.c.b16 %v228, %v224
    %v289 = vpack.c.b16 %v229, %v225
    %v290 = vpack.c.b16 %v230, %v226
    %v291 = vpack.c.b16 %v235, %v231
    %v292 = vpack.c.b16 %v236, %v232
    %v293 = vpack.c.b16 %v237, %v233
    %v294 = vpack.c.b16 %v238, %v234
    %v295 = vpack.c.b16 %v243, %v239
    %v296 = vpack.c.b16 %v244, %v240
    %v297 = vpack.c.b16 %v245, %v241
    %v298 = vpack.c.b16 %v246, %v242
    %v299 = vpack.c.b16 %v251, %v247
    %v300 = vpack.c.b16 %v252, %v248
    %v301 = vpack.c.b16 %v253, %v249
    %v302 = vpack.c.b16 %v254, %v250
    %v303 = vpack.c.b16 %v259, %v255
    %v304 = vpack.c.b16 %v260, %v256
    %v305 = vpack.c.b16 %v261, %v257
    %v306 = vpack.c.b16 %v262, %v258
    %v307 = vpack.c.b16 %v267, %v263
    %v308 = vpack.c.b16 %v268, %v264
    %v309 = vpack.c.b16 %v269, %v265
    %v310 = vpack.c.b16 %v270, %v266
    %v311 = vpack.c.b16 %v275, %v271
    %v312 = vpack.c.b16 %v276, %v272
    %v313 = vpack.c.b16 %v277, %v273
    %v314 = vpack.c.b16 %v278, %v274
    %v315 = vpack.c.b16 %v283, %v279
    %v316 = vpack.c.b16 %v284, %v280
    %v317 = vpack.c.b16 %v285, %v281
    %v318 = vpack.c.b16 %v286, %v282
    %351 = vmatprep.subr.bf16.mxu0 %v316
    %352 = vmatpush1.bf16.msra.mxu0 %v315
    %353 = vmatprep.subr.bf16.mxu0 %v312
    %354 = vmatpush1.bf16.msra.mxu0 %v311
    %355 = vmatprep.subr.bf16.mxu0 %v308
    %356 = vmatpush1.bf16.msra.mxu0 %v307
    %357 = vmatprep.subr.bf16.mxu0 %v304
    %358 = vmatpush1.bf16.msra.mxu0 %v303
    %359 = vmatprep.subr.bf16.mxu0 %v300
    %360 = vmatpush1.bf16.msra.mxu0 %v299
    %361 = vmatprep.subr.bf16.mxu0 %v296
    %362 = vmatpush1.bf16.msra.mxu0 %v295
    %363 = vmatprep.subr.bf16.mxu0 %v292
    %364 = vmatpush1.bf16.msra.mxu0 %v291
    %365 = vmatprep.subr.bf16.mxu0 %v288
    %366 = vmatpush1.bf16.msra.mxu0 %v287
    %367 = vmatprep.subr.bf16.mxu0 0
    %368 = vmatpush2.bf16.msra.mxu0 0
    %369 = vmatprep.subr.bf16.mxu0 0
    %370 = vmatpush2.bf16.msra.mxu0 0
    %371 = vmatprep.subr.bf16.mxu0 0
    %372 = vmatpush2.bf16.msra.mxu0 0
    %373 = vmatprep.subr.bf16.mxu0 0
    %374 = vmatpush2.bf16.msra.mxu0 0
    %375 = vmatprep.subr.bf16.mxu0 0
    %376 = vmatpush2.bf16.msra.mxu0 0
    %377 = vmatprep.subr.bf16.mxu0 0
    %378 = vmatpush2.bf16.msra.mxu0 0
    %379 = vmatprep.subr.bf16.mxu0 0
    %380 = vmatpush2.bf16.msra.mxu0 0
    %381 = vmatprep.subr.bf16.mxu0 0
    %382 = vmatpush2.bf16.msra.mxu0 0
    %383 = vmatprep.mubr.bf16.mxu0 0
    %384 = vmatmul.mubr.bf16.gmra.mxu0 %v183
    %v385 = vpop.f32.mrf.mxu0
    %v386 = vadd.f32 %v150, %v385
    %v387 = vpop.f32.mrf.mxu0
    %v388 = vadd.f32 %v154, %v387
    %v389 = vpop.f32.mrf.mxu0
    %v390 = vadd.f32 %v150, %v389
    %v391 = vpop.f32.mrf.mxu0
    %v392 = vadd.f32 %v154, %v391
    %393 = vmatprep.mubr.bf16.mxu0 0
    %394 = vmatmul.mubr.bf16.gmra.mxu0 %v184
    %v395 = vpop.f32.mrf.mxu0
    %v396 = vadd.f32 %v150, %v395
    %v397 = vpop.f32.mrf.mxu0
    %v398 = vadd.f32 %v154, %v397
    %v399 = vpop.f32.mrf.mxu0
    %v400 = vadd.f32 %v150, %v399
    %v401 = vpop.f32.mrf.mxu0
    %v402 = vadd.f32 %v154, %v401
    %403 = vmatprep.mubr.bf16.mxu0 0
    %404 = vmatmul.mubr.bf16.gmra.mxu0 %v185
    %v405 = vpop.f32.mrf.mxu0
    %v406 = vadd.f32 %v150, %v405
    %v407 = vpop.f32.mrf.mxu0
    %v408 = vadd.f32 %v154, %v407
    %v409 = vpop.f32.mrf.mxu0
    %v410 = vadd.f32 %v150, %v409
    %v411 = vpop.f32.mrf.mxu0
    %v412 = vadd.f32 %v154, %v411
    %413 = vmatprep.mubr.bf16.mxu0 0
    %414 = vmatmul.mubr.bf16.gmra.mxu0 %v186
    %v415 = vpop.f32.mrf.mxu0
    %v416 = vadd.f32 %v150, %v415
    %v417 = vpop.f32.mrf.mxu0
    %v418 = vadd.f32 %v154, %v417
    %v419 = vpop.f32.mrf.mxu0
    %v420 = vadd.f32 %v150, %v419
    %v421 = vpop.f32.mrf.mxu0
    %v422 = vadd.f32 %v154, %v421
    %423 = vdwg.mxu0
    %424 = vmatprep.subr.bf16.mxu0 %v318
    %425 = vmatpush1.bf16.msra.mxu0 %v317
    %426 = vmatprep.subr.bf16.mxu0 %v314
    %427 = vmatpush1.bf16.msra.mxu0 %v313
    %428 = vmatprep.subr.bf16.mxu0 %v310
    %429 = vmatpush1.bf16.msra.mxu0 %v309
    %430 = vmatprep.subr.bf16.mxu0 %v306
    %431 = vmatpush1.bf16.msra.mxu0 %v305
    %432 = vmatprep.subr.bf16.mxu0 %v302
    %433 = vmatpush1.bf16.msra.mxu0 %v301
    %434 = vmatprep.subr.bf16.mxu0 %v298
    %435 = vmatpush1.bf16.msra.mxu0 %v297
    %436 = vmatprep.subr.bf16.mxu0 %v294
    %437 = vmatpush1.bf16.msra.mxu0 %v293
    %438 = vmatprep.subr.bf16.mxu0 %v290
    %439 = vmatpush1.bf16.msra.mxu0 %v289
    %440 = vmatprep.subr.bf16.mxu0 0
    %441 = vmatpush2.bf16.msra.mxu0 0
    %442 = vmatprep.subr.bf16.mxu0 0
    %443 = vmatpush2.bf16.msra.mxu0 0
    %444 = vmatprep.subr.bf16.mxu0 0
    %445 = vmatpush2.bf16.msra.mxu0 0
    %446 = vmatprep.subr.bf16.mxu0 0
    %447 = vmatpush2.bf16.msra.mxu0 0
    %448 = vmatprep.subr.bf16.mxu0 0
    %449 = vmatpush2.bf16.msra.mxu0 0
    %450 = vmatprep.subr.bf16.mxu0 0
    %451 = vmatpush2.bf16.msra.mxu0 0
    %452 = vmatprep.subr.bf16.mxu0 0
    %453 = vmatpush2.bf16.msra.mxu0 0
    %454 = vmatprep.subr.bf16.mxu0 0
    %455 = vmatpush2.bf16.msra.mxu0 0
    %456 = vmatprep.mubr.bf16.mxu0 0
    %457 = vmatmul.mubr.bf16.gmra.mxu0 %v183
    %v458 = vpop.f32.mrf.mxu0
    %v459 = vadd.f32 %v158, %v458
    %v460 = vpop.f32.mrf.mxu0
    %v461 = vadd.f32 %v162, %v460
    %v462 = vpop.f32.mrf.mxu0
    %v463 = vadd.f32 %v158, %v462
    %v464 = vpop.f32.mrf.mxu0
    %v465 = vadd.f32 %v162, %v464
    %466 = vmatprep.mubr.bf16.mxu0 0
    %467 = vmatmul.mubr.bf16.gmra.mxu0 %v184
    %v468 = vpop.f32.mrf.mxu0
    %v469 = vadd.f32 %v158, %v468
    %v470 = vpop.f32.mrf.mxu0
    %v471 = vadd.f32 %v162, %v470
    %v472 = vpop.f32.mrf.mxu0
    %v473 = vadd.f32 %v158, %v472
    %v474 = vpop.f32.mrf.mxu0
    %v475 = vadd.f32 %v162, %v474
    %476 = vmatprep.mubr.bf16.mxu0 0
    %477 = vmatmul.mubr.bf16.gmra.mxu0 %v185
    %v478 = vpop.f32.mrf.mxu0
    %v479 = vadd.f32 %v158, %v478
    %v480 = vpop.f32.mrf.mxu0
    %v481 = vadd.f32 %v162, %v480
    %v482 = vpop.f32.mrf.mxu0
    %v483 = vadd.f32 %v158, %v482
    %v484 = vpop.f32.mrf.mxu0
    %v485 = vadd.f32 %v162, %v484
    %486 = vmatprep.mubr.bf16.mxu0 0
    %487 = vmatmul.mubr.bf16.gmra.mxu0 %v186
    %v488 = vpop.f32.mrf.mxu0
    %v489 = vadd.f32 %v158, %v488
    %v490 = vpop.f32.mrf.mxu0
    %v491 = vadd.f32 %v162, %v490
    %v492 = vpop.f32.mrf.mxu0
    %v493 = vadd.f32 %v158, %v492
    %v494 = vpop.f32.mrf.mxu0
    %v495 = vadd.f32 %v162, %v494
    %496 = vdwg.mxu0
    %497 = vst [vmem:[#allocation2] sm:$0xff] %v386
    %498 = vst [vmem:[#allocation2 + $0x8] sm:$0xff] %v388
    %499 = vst [vmem:[#allocation2 + $0x10] sm:$0xff] %v459
    %500 = vst [vmem:[#allocation2 + $0x18] sm:$0xff] %v461
    %501 = vst [vmem:[#allocation2 + $0x20] sm:$0xff] %v390
    %502 = vst [vmem:[#allocation2 + $0x28] sm:$0xff] %v392
    %503 = vst [vmem:[#allocation2 + $0x30] sm:$0xff] %v463
    %504 = vst [vmem:[#allocation2 + $0x38] sm:$0xff] %v465
    %505 = vst [vmem:[#allocation2 + $0x40] sm:$0xff] %v396
    %506 = vst [vmem:[#allocation2 + $0x48] sm:$0xff] %v398
    %507 = vst [vmem:[#allocation2 + $0x50] sm:$0xff] %v469
    %508 = vst [vmem:[#allocation2 + $0x58] sm:$0xff] %v471
    %509 = vst [vmem:[#allocation2 + $0x60] sm:$0xff] %v400
    %510 = vst [vmem:[#allocation2 + $0x68] sm:$0xff] %v402
    %511 = vst [vmem:[#allocation2 + $0x70] sm:$0xff] %v473
    %512 = vst [vmem:[#allocation2 + $0x78] sm:$0xff] %v475
    %513 = vst [vmem:[#allocation2 + $0x80] sm:$0xff] %v406
    %514 = vst [vmem:[#allocation2 + $0x88] sm:$0xff] %v408
    %515 = vst [vmem:[#allocation2 + $0x90] sm:$0xff] %v479
    %516 = vst [vmem:[#allocation2 + $0x98] sm:$0xff] %v481
    %517 = vst [vmem:[#allocation2 + $0xa0] sm:$0xff] %v410
    %518 = vst [vmem:[#allocation2 + $0xa8] sm:$0xff] %v412
    %519 = vst [vmem:[#allocation2 + $0xb0] sm:$0xff] %v483
    %520 = vst [vmem:[#allocation2 + $0xb8] sm:$0xff] %v485
    %521 = vst [vmem:[#allocation2 + $0xc0] sm:$0xff] %v416
    %522 = vst [vmem:[#allocation2 + $0xc8] sm:$0xff] %v418
    %523 = vst [vmem:[#allocation2 + $0xd0] sm:$0xff] %v489
    %524 = vst [vmem:[#allocation2 + $0xd8] sm:$0xff] %v491
    %525 = vst [vmem:[#allocation2 + $0xe0] sm:$0xff] %v420
    %526 = vst [vmem:[#allocation2 + $0xe8] sm:$0xff] %v422
    %527 = vst [vmem:[#allocation2 + $0xf0] sm:$0xff] %v493
    %528 = vst [vmem:[#allocation2 + $0xf8] sm:$0xff] %v495
    %529 = vst [vmem:[#allocation4] sm:$0xff] 0.0
    %530 = vst [vmem:[#allocation5] sm:$0xff] 0.0
    %v531 = vld [vmem:[%s1] sm:$0xff]
    %532 = vset.pattern.permute.xlu0 0
    %533 = vperm.xlu0 %532, %v531
    %v534 = vpop.permute.xlu0 %533
    %v535 = vld [vmem:[#allocation4] sm:$0xff]
    %v536 = vld [vmem:[#allocation5] sm:$0xff]
    %s537 = smul.u32 0, 4
    %s538 = smul.addr %s537, 8
    %s539 = scalar_lea.vmem [#allocation2], %s538
    %v540 = vld [vmem:[%s539] sm:$0xff]
    %v541 = vld [vmem:[%s539 + $0x8] sm:$0xff]
    %v542 = vld [vmem:[%s539 + $0x10] sm:$0xff]
    %v543 = vld [vmem:[%s539 + $0x18] sm:$0xff]
    %v544 = vpack.c.bf16 %v535, %v535
    %v545 = vld [vmem:[#allocation11] sm:$0xff]
    %v546 = vld [vmem:[#allocation11 + $0x8] sm:$0xff]
    %v547 = vld [vmem:[#allocation11 + $0x10] sm:$0xff]
    %v548 = vld [vmem:[#allocation11 + $0x18] sm:$0xff]
    %v549 = vld [vmem:[#allocation11 + $0x20] sm:$0xff]
    %v550 = vld [vmem:[#allocation11 + $0x28] sm:$0xff]
    %v551 = vld [vmem:[#allocation11 + $0x30] sm:$0xff]
    %v552 = vld [vmem:[#allocation11 + $0x38] sm:$0xff]
    %v553 = vld [vmem:[#allocation11 + $0x40] sm:$0xff]
    %v554 = vld [vmem:[#allocation11 + $0x48] sm:$0xff]
    %v555 = vld [vmem:[#allocation11 + $0x50] sm:$0xff]
    %v556 = vld [vmem:[#allocation11 + $0x58] sm:$0xff]
    %v557 = vld [vmem:[#allocation11 + $0x60] sm:$0xff]
    %v558 = vld [vmem:[#allocation11 + $0x68] sm:$0xff]
    %v559 = vld [vmem:[#allocation11 + $0x70] sm:$0xff]
    %v560 = vld [vmem:[#allocation11 + $0x78] sm:$0xff]
    %v561 = vld [vmem:[#allocation11 + $0x80] sm:$0xff]
    %v562 = vld [vmem:[#allocation11 + $0x88] sm:$0xff]
    %v563 = vld [vmem:[#allocation11 + $0x90] sm:$0xff]
    %v564 = vld [vmem:[#allocation11 + $0x98] sm:$0xff]
    %v565 = vld [vmem:[#allocation11 + $0xa0] sm:$0xff]
    %v566 = vld [vmem:[#allocation11 + $0xa8] sm:$0xff]
    %v567 = vld [vmem:[#allocation11 + $0xb0] sm:$0xff]
    %v568 = vld [vmem:[#allocation11 + $0xb8] sm:$0xff]
    %v569 = vld [vmem:[#allocation11 + $0xc0] sm:$0xff]
    %v570 = vld [vmem:[#allocation11 + $0xc8] sm:$0xff]
    %v571 = vld [vmem:[#allocation11 + $0xd0] sm:$0xff]
    %v572 = vld [vmem:[#allocation11 + $0xd8] sm:$0xff]
    %v573 = vld [vmem:[#allocation11 + $0xe0] sm:$0xff]
    %v574 = vld [vmem:[#allocation11 + $0xe8] sm:$0xff]
    %v575 = vld [vmem:[#allocation11 + $0xf0] sm:$0xff]
    %v576 = vld [vmem:[#allocation11 + $0xf8] sm:$0xff]
    %v609 = vunpack.c.l.b16 %v545
    %v610 = vunpack.c.h.b16 %v545
    %v611 = vunpack.c.l.b16 %v546
    %v612 = vunpack.c.h.b16 %v546
    %v613 = vunpack.c.l.b16 %v547
    %v614 = vunpack.c.h.b16 %v547
    %v615 = vunpack.c.l.b16 %v548
    %v616 = vunpack.c.h.b16 %v548
    %v617 = vunpack.c.l.b16 %v549
    %v618 = vunpack.c.h.b16 %v549
    %v619 = vunpack.c.l.b16 %v550
    %v620 = vunpack.c.h.b16 %v550
    %v621 = vunpack.c.l.b16 %v551
    %v622 = vunpack.c.h.b16 %v551
    %v623 = vunpack.c.l.b16 %v552
    %v624 = vunpack.c.h.b16 %v552
    %v625 = vunpack.c.l.b16 %v553
    %v626 = vunpack.c.h.b16 %v553
    %v627 = vunpack.c.l.b16 %v554
    %v628 = vunpack.c.h.b16 %v554
    %v629 = vunpack.c.l.b16 %v555
    %v630 = vunpack.c.h.b16 %v555
    %v631 = vunpack.c.l.b16 %v556
    %v632 = vunpack.c.h.b16 %v556
    %v633 = vunpack.c.l.b16 %v557
    %v634 = vunpack.c.h.b16 %v557
    %v635 = vunpack.c.l.b16 %v558
    %v636 = vunpack.c.h.b16 %v558
    %v637 = vunpack.c.l.b16 %v559
    %v638 = vunpack.c.h.b16 %v559
    %v639 = vunpack.c.l.b16 %v560
    %v640 = vunpack.c.h.b16 %v560
    %v641 = vunpack.c.l.b16 %v561
    %v642 = vunpack.c.h.b16 %v561
    %v643 = vunpack.c.l.b16 %v562
    %v644 = vunpack.c.h.b16 %v562
    %v645 = vunpack.c.l.b16 %v563
    %v646 = vunpack.c.h.b16 %v563
    %v647 = vunpack.c.l.b16 %v564
    %v648 = vunpack.c.h.b16 %v564
    %v649 = vunpack.c.l.b16 %v565
    %v650 = vunpack.c.h.b16 %v565
    %v651 = vunpack.c.l.b16 %v566
    %v652 = vunpack.c.h.b16 %v566
    %v653 = vunpack.c.l.b16 %v567
    %v654 = vunpack.c.h.b16 %v567
    %v655 = vunpack.c.l.b16 %v568
    %v656 = vunpack.c.h.b16 %v568
    %v657 = vunpack.c.l.b16 %v569
    %v658 = vunpack.c.h.b16 %v569
    %v659 = vunpack.c.l.b16 %v570
    %v660 = vunpack.c.h.b16 %v570
    %v661 = vunpack.c.l.b16 %v571
    %v662 = vunpack.c.h.b16 %v571
    %v663 = vunpack.c.l.b16 %v572
    %v664 = vunpack.c.h.b16 %v572
    %v665 = vunpack.c.l.b16 %v573
    %v666 = vunpack.c.h.b16 %v573
    %v667 = vunpack.c.l.b16 %v574
    %v668 = vunpack.c.h.b16 %v574
    %v669 = vunpack.c.l.b16 %v575
    %v670 = vunpack.c.h.b16 %v575
    %v671 = vunpack.c.l.b16 %v576
    %v672 = vunpack.c.h.b16 %v576
    %v673 = vpack.c.b16 %v613, %v609
    %v674 = vpack.c.b16 %v614, %v610
    %v675 = vpack.c.b16 %v615, %v611
    %v676 = vpack.c.b16 %v616, %v612
    %v677 = vpack.c.b16 %v621, %v617
    %v678 = vpack.c.b16 %v622, %v618
    %v679 = vpack.c.b16 %v623, %v619
    %v680 = vpack.c.b16 %v624, %v620
    %v681 = vpack.c.b16 %v629, %v625
    %v682 = vpack.c.b16 %v630, %v626
    %v683 = vpack.c.b16 %v631, %v627
    %v684 = vpack.c.b16 %v632, %v628
    %v685 = vpack.c.b16 %v637, %v633
    %v686 = vpack.c.b16 %v638, %v634
    %v687 = vpack.c.b16 %v639, %v635
    %v688 = vpack.c.b16 %v640, %v636
    %v689 = vpack.c.b16 %v645, %v641
    %v690 = vpack.c.b16 %v646, %v642
    %v691 = vpack.c.b16 %v647, %v643
    %v692 = vpack.c.b16 %v648, %v644
    %v693 = vpack.c.b16 %v653, %v649
    %v694 = vpack.c.b16 %v654, %v650
    %v695 = vpack.c.b16 %v655, %v651
    %v696 = vpack.c.b16 %v656, %v652
    %v697 = vpack.c.b16 %v661, %v657
    %v698 = vpack.c.b16 %v662, %v658
    %v699 = vpack.c.b16 %v663, %v659
    %v700 = vpack.c.b16 %v664, %v660
    %v701 = vpack.c.b16 %v669, %v665
    %v702 = vpack.c.b16 %v670, %v666
    %v703 = vpack.c.b16 %v671, %v667
    %v704 = vpack.c.b16 %v672, %v668
    %737 = vmatprep.subr.bf16.mxu0 %v702
    %738 = vmatpush1.bf16.msra.mxu0 %v701
    %739 = vmatprep.subr.bf16.mxu0 %v698
    %740 = vmatpush1.bf16.msra.mxu0 %v697
    %741 = vmatprep.subr.bf16.mxu0 %v694
    %742 = vmatpush1.bf16.msra.mxu0 %v693
    %743 = vmatprep.subr.bf16.mxu0 %v690
    %744 = vmatpush1.bf16.msra.mxu0 %v689
    %745 = vmatprep.subr.bf16.mxu0 %v686
    %746 = vmatpush1.bf16.msra.mxu0 %v685
    %747 = vmatprep.subr.bf16.mxu0 %v682
    %748 = vmatpush1.bf16.msra.mxu0 %v681
    %749 = vmatprep.subr.bf16.mxu0 %v678
    %750 = vmatpush1.bf16.msra.mxu0 %v677
    %751 = vmatprep.subr.bf16.mxu0 %v674
    %752 = vmatpush1.bf16.msra.mxu0 %v673
    %753 = vmatprep.subr.bf16.mxu0 0
    %754 = vmatpush2.bf16.msra.mxu0 0
    %755 = vmatprep.subr.bf16.mxu0 0
    %756 = vmatpush2.bf16.msra.mxu0 0
    %757 = vmatprep.subr.bf16.mxu0 0
    %758 = vmatpush2.bf16.msra.mxu0 0
    %759 = vmatprep.subr.bf16.mxu0 0
    %760 = vmatpush2.bf16.msra.mxu0 0
    %761 = vmatprep.subr.bf16.mxu0 0
    %762 = vmatpush2.bf16.msra.mxu0 0
    %763 = vmatprep.subr.bf16.mxu0 0
    %764 = vmatpush2.bf16.msra.mxu0 0
    %765 = vmatprep.subr.bf16.mxu0 0
    %766 = vmatpush2.bf16.msra.mxu0 0
    %767 = vmatprep.subr.bf16.mxu0 0
    %768 = vmatpush2.bf16.msra.mxu0 0
    %769 = vmatprep.mubr.bf16.mxu0 0
    %770 = vmatmul.mubr.bf16.gmra.mxu0 %v544
    %v771 = vpop.f32.mrf.mxu0
    %v772 = vadd.f32 0.0, %v771
    %v773 = vpop.f32.mrf.mxu0
    %v774 = vadd.f32 0.0, %v773
    %v775 = vpop.f32.mrf.mxu0
    %v776 = vpop.f32.mrf.mxu0
    %777 = vdwg.mxu0
    %778 = vmatprep.subr.bf16.mxu0 %v704
    %779 = vmatpush1.bf16.msra.mxu0 %v703
    %780 = vmatprep.subr.bf16.mxu0 %v700
    %781 = vmatpush1.bf16.msra.mxu0 %v699
    %782 = vmatprep.subr.bf16.mxu0 %v696
    %783 = vmatpush1.bf16.msra.mxu0 %v695
    %784 = vmatprep.subr.bf16.mxu0 %v692
    %785 = vmatpush1.bf16.msra.mxu0 %v691
    %786 = vmatprep.subr.bf16.mxu0 %v688
    %787 = vmatpush1.bf16.msra.mxu0 %v687
    %788 = vmatprep.subr.bf16.mxu0 %v684
    %789 = vmatpush1.bf16.msra.mxu0 %v683
    %790 = vmatprep.subr.bf16.mxu0 %v680
    %791 = vmatpush1.bf16.msra.mxu0 %v679
    %792 = vmatprep.subr.bf16.mxu0 %v676
    %793 = vmatpush1.bf16.msra.mxu0 %v675
    %794 = vmatprep.subr.bf16.mxu0 0
    %795 = vmatpush2.bf16.msra.mxu0 0
    %796 = vmatprep.subr.bf16.mxu0 0
    %797 = vmatpush2.bf16.msra.mxu0 0
    %798 = vmatprep.subr.bf16.mxu0 0
    %799 = vmatpush2.bf16.msra.mxu0 0
    %800 = vmatprep.subr.bf16.mxu0 0
    %801 = vmatpush2.bf16.msra.mxu0 0
    %802 = vmatprep.subr.bf16.mxu0 0
    %803 = vmatpush2.bf16.msra.mxu0 0
    %804 = vmatprep.subr.bf16.mxu0 0
    %805 = vmatpush2.bf16.msra.mxu0 0
    %806 = vmatprep.subr.bf16.mxu0 0
    %807 = vmatpush2.bf16.msra.mxu0 0
    %808 = vmatprep.subr.bf16.mxu0 0
    %809 = vmatpush2.bf16.msra.mxu0 0
    %810 = vmatprep.mubr.bf16.mxu0 0
    %811 = vmatmul.mubr.bf16.gmra.mxu0 %v544
    %v812 = vpop.f32.mrf.mxu0
    %v813 = vadd.f32 0.0, %v812
    %v814 = vpop.f32.mrf.mxu0
    %v815 = vadd.f32 0.0, %v814
    %v816 = vpop.f32.mrf.mxu0
    %v817 = vpop.f32.mrf.mxu0
    %818 = vdwg.mxu0
    %v819 = vadd.f32 %v540, %v772
    %v820 = vadd.f32 %v541, %v774
    %v821 = vadd.f32 %v542, %v813
    %v822 = vadd.f32 %v543, %v815
    %v823 = vxor.u32 %v819, 2147483648
    %v824 = vmul.f32 %v823, 1.442695
    %v825 = vpow.pop %v824
    %v826 = vadd.f32 %v825, 1.0
    %v827 = vrcp.pop %v826
    %v828 = vmul.f32 1.0, %v827
    %v829 = vxor.u32 %v820, 2147483648
    %v830 = vmul.f32 %v829, 1.442695
    %v831 = vpow.pop %v830
    %v832 = vadd.f32 %v831, 1.0
    %v833 = vrcp.pop %v832
    %v834 = vmul.f32 1.0, %v833
    %v835 = vtanh.pop %v821
    %v836 = vxor.u32 %v822, 2147483648
    %v837 = vmul.f32 %v836, 1.442695
    %v838 = vpow.pop %v837
    %v839 = vadd.f32 %v838, 1.0
    %v840 = vrcp.pop %v839
    %v841 = vmul.f32 1.0, %v840
    %v842 = vmul.f32 %v834, %v536
    %v843 = vmul.f32 %v828, %v835
    %v844 = vadd.f32 %v842, %v843
    %v845 = vtanh.pop %v844
    %v846 = vmul.f32 %v841, %v845
    %vm847 = vcmp.gt.s32.totalorder %v534, 0
    %v848 = vsel %vm847, %v846, %v535
    %849 = vst [vmem:[#allocation4] sm:$0xff] %v848
    %v850 = vsel %vm847, %v844, %v536
    %851 = vst [vmem:[#allocation5] sm:$0xff] %v850
    %v852 = vsel %vm847, %v846, 0.0
    %853 = vst [vmem:[#allocation3] sm:$0xff] %v852
    %v854 = vld [vmem:[#allocation4] sm:$0xff]
    %v855 = vld [vmem:[#allocation5] sm:$0xff]
    %s856 = smul.u32 1, 4
    %s857 = smul.addr %s856, 8
    %s858 = scalar_lea.vmem [#allocation2], %s857
    %v859 = vld [vmem:[%s858] sm:$0xff]
    %v860 = vld [vmem:[%s858 + $0x8] sm:$0xff]
    %v861 = vld [vmem:[%s858 + $0x10] sm:$0xff]
    %v862 = vld [vmem:[%s858 + $0x18] sm:$0xff]
    %v863 = vpack.c.bf16 %v854, %v854
    %v864 = vld [vmem:[#allocation11] sm:$0xff]
    %v865 = vld [vmem:[#allocation11 + $0x8] sm:$0xff]
    %v866 = vld [vmem:[#allocation11 + $0x10] sm:$0xff]
    %v867 = vld [vmem:[#allocation11 + $0x18] sm:$0xff]
    %v868 = vld [vmem:[#allocation11 + $0x20] sm:$0xff]
    %v869 = vld [vmem:[#allocation11 + $0x28] sm:$0xff]
    %v870 = vld [vmem:[#allocation11 + $0x30] sm:$0xff]
    %v871 = vld [vmem:[#allocation11 + $0x38] sm:$0xff]
    %v872 = vld [vmem:[#allocation11 + $0x40] sm:$0xff]
    %v873 = vld [vmem:[#allocation11 + $0x48] sm:$0xff]
    %v874 = vld [vmem:[#allocation11 + $0x50] sm:$0xff]
    %v875 = vld [vmem:[#allocation11 + $0x58] sm:$0xff]
    %v876 = vld [vmem:[#allocation11 + $0x60] sm:$0xff]
    %v877 = vld [vmem:[#allocation11 + $0x68] sm:$0xff]
    %v878 = vld [vmem:[#allocation11 + $0x70] sm:$0xff]
    %v879 = vld [vmem:[#allocation11 + $0x78] sm:$0xff]
    %v880 = vld [vmem:[#allocation11 + $0x80] sm:$0xff]
    %v881 = vld [vmem:[#allocation11 + $0x88] sm:$0xff]
    %v882 = vld [vmem:[#allocation11 + $0x90] sm:$0xff]
    %v883 = vld [vmem:[#allocation11 + $0x98] sm:$0xff]
    %v884 = vld [vmem:[#allocation11 + $0xa0] sm:$0xff]
    %v885 = vld [vmem:[#allocation11 + $0xa8] sm:$0xff]
    %v886 = vld [vmem:[#allocation11 + $0xb0] sm:$0xff]
    %v887 = vld [vmem:[#allocation11 + $0xb8] sm:$0xff]
    %v888 = vld [vmem:[#allocation11 + $0xc0] sm:$0xff]
    %v889 = vld [vmem:[#allocation11 + $0xc8] sm:$0xff]
    %v890 = vld [vmem:[#allocation11 + $0xd0] sm:$0xff]
    %v891 = vld [vmem:[#allocation11 + $0xd8] sm:$0xff]
    %v892 = vld [vmem:[#allocation11 + $0xe0] sm:$0xff]
    %v893 = vld [vmem:[#allocation11 + $0xe8] sm:$0xff]
    %v894 = vld [vmem:[#allocation11 + $0xf0] sm:$0xff]
    %v895 = vld [vmem:[#allocation11 + $0xf8] sm:$0xff]
    %v928 = vunpack.c.l.b16 %v864
    %v929 = vunpack.c.h.b16 %v864
    %v930 = vunpack.c.l.b16 %v865
    %v931 = vunpack.c.h.b16 %v865
    %v932 = vunpack.c.l.b16 %v866
    %v933 = vunpack.c.h.b16 %v866
    %v934 = vunpack.c.l.b16 %v867
    %v935 = vunpack.c.h.b16 %v867
    %v936 = vunpack.c.l.b16 %v868
    %v937 = vunpack.c.h.b16 %v868
    %v938 = vunpack.c.l.b16 %v869
    %v939 = vunpack.c.h.b16 %v869
    %v940 = vunpack.c.l.b16 %v870
    %v941 = vunpack.c.h.b16 %v870
    %v942 = vunpack.c.l.b16 %v871
    %v943 = vunpack.c.h.b16 %v871
    %v944 = vunpack.c.l.b16 %v872
    %v945 = vunpack.c.h.b16 %v872
    %v946 = vunpack.c.l.b16 %v873
    %v947 = vunpack.c.h.b16 %v873
    %v948 = vunpack.c.l.b16 %v874
    %v949 = vunpack.c.h.b16 %v874
    %v950 = vunpack.c.l.b16 %v875
    %v951 = vunpack.c.h.b16 %v875
    %v952 = vunpack.c.l.b16 %v876
    %v953 = vunpack.c.h.b16 %v876
    %v954 = vunpack.c.l.b16 %v877
    %v955 = vunpack.c.h.b16 %v877
    %v956 = vunpack.c.l.b16 %v878
    %v957 = vunpack.c.h.b16 %v878
    %v958 = vunpack.c.l.b16 %v879
    %v959 = vunpack.c.h.b16 %v879
    %v960 = vunpack.c.l.b16 %v880
    %v961 = vunpack.c.h.b16 %v880
    %v962 = vunpack.c.l.b16 %v881
    %v963 = vunpack.c.h.b16 %v881
    %v964 = vunpack.c.l.b16 %v882
    %v965 = vunpack.c.h.b16 %v882
    %v966 = vunpack.c.l.b16 %v883
    %v967 = vunpack.c.h.b16 %v883
    %v968 = vunpack.c.l.b16 %v884
    %v969 = vunpack.c.h.b16 %v884
    %v970 = vunpack.c.l.b16 %v885
    %v971 = vunpack.c.h.b16 %v885
    %v972 = vunpack.c.l.b16 %v886
    %v973 = vunpack.c.h.b16 %v886
    %v974 = vunpack.c.l.b16 %v887
    %v975 = vunpack.c.h.b16 %v887
    %v976 = vunpack.c.l.b16 %v888
    %v977 = vunpack.c.h.b16 %v888
    %v978 = vunpack.c.l.b16 %v889
    %v979 = vunpack.c.h.b16 %v889
    %v980 = vunpack.c.l.b16 %v890
    %v981 = vunpack.c.h.b16 %v890
    %v982 = vunpack.c.l.b16 %v891
    %v983 = vunpack.c.h.b16 %v891
    %v984 = vunpack.c.l.b16 %v892
    %v985 = vunpack.c.h.b16 %v892
    %v986 = vunpack.c.l.b16 %v893
    %v987 = vunpack.c.h.b16 %v893
    %v988 = vunpack.c.l.b16 %v894
    %v989 = vunpack.c.h.b16 %v894
    %v990 = vunpack.c.l.b16 %v895
    %v991 = vunpack.c.h.b16 %v895
    %v992 = vpack.c.b16 %v932, %v928
    %v993 = vpack.c.b16 %v933, %v929
    %v994 = vpack.c.b16 %v934, %v930
    %v995 = vpack.c.b16 %v935, %v931
    %v996 = vpack.c.b16 %v940, %v936
    %v997 = vpack.c.b16 %v941, %v937
    %v998 = vpack.c.b16 %v942, %v938
    %v999 = vpack.c.b16 %v943, %v939
    %v1000 = vpack.c.b16 %v948, %v944
    %v1001 = vpack.c.b16 %v949, %v945
    %v1002 = vpack.c.b16 %v950, %v946
    %v1003 = vpack.c.b16 %v951, %v947
    %v1004 = vpack.c.b16 %v956, %v952
    %v1005 = vpack.c.b16 %v957, %v953
    %v1006 = vpack.c.b16 %v958, %v954
    %v1007 = vpack.c.b16 %v959, %v955
    %v1008 = vpack.c.b16 %v964, %v960
    %v1009 = vpack.c.b16 %v965, %v961
    %v1010 = vpack.c.b16 %v966, %v962
    %v1011 = vpack.c.b16 %v967, %v963
    %v1012 = vpack.c.b16 %v972, %v968
    %v1013 = vpack.c.b16 %v973, %v969
    %v1014 = vpack.c.b16 %v974, %v970
    %v1015 = vpack.c.b16 %v975, %v971
    %v1016 = vpack.c.b16 %v980, %v976
    %v1017 = vpack.c.b16 %v981, %v977
    %v1018 = vpack.c.b16 %v982, %v978
    %v1019 = vpack.c.b16 %v983, %v979
    %v1020 = vpack.c.b16 %v988, %v984
    %v1021 = vpack.c.b16 %v989, %v985
    %v1022 = vpack.c.b16 %v990, %v986
    %v1023 = vpack.c.b16 %v991, %v987
    %1056 = vmatprep.subr.bf16.mxu0 %v1021
    %1057 = vmatpush1.bf16.msra.mxu0 %v1020
    %1058 = vmatprep.subr.bf16.mxu0 %v1017
    %1059 = vmatpush1.bf16.msra.mxu0 %v1016
    %1060 = vmatprep.subr.bf16.mxu0 %v1013
    %1061 = vmatpush1.bf16.msra.mxu0 %v1012
    %1062 = vmatprep.subr.bf16.mxu0 %v1009
    %1063 = vmatpush1.bf16.msra.mxu0 %v1008
    %1064 = vmatprep.subr.bf16.mxu0 %v1005
    %1065 = vmatpush1.bf16.msra.mxu0 %v1004
    %1066 = vmatprep.subr.bf16.mxu0 %v1001
    %1067 = vmatpush1.bf16.msra.mxu0 %v1000
    %1068 = vmatprep.subr.bf16.mxu0 %v997
    %1069 = vmatpush1.bf16.msra.mxu0 %v996
    %1070 = vmatprep.subr.bf16.mxu0 %v993
    %1071 = vmatpush1.bf16.msra.mxu0 %v992
    %1072 = vmatprep.subr.bf16.mxu0 0
    %1073 = vmatpush2.bf16.msra.mxu0 0
    %1074 = vmatprep.subr.bf16.mxu0 0
    %1075 = vmatpush2.bf16.msra.mxu0 0
    %1076 = vmatprep.subr.bf16.mxu0 0
    %1077 = vmatpush2.bf16.msra.mxu0 0
    %1078 = vmatprep.subr.bf16.mxu0 0
    %1079 = vmatpush2.bf16.msra.mxu0 0
    %1080 = vmatprep.subr.bf16.mxu0 0
    %1081 = vmatpush2.bf16.msra.mxu0 0
    %1082 = vmatprep.subr.bf16.mxu0 0
    %1083 = vmatpush2.bf16.msra.mxu0 0
    %1084 = vmatprep.subr.bf16.mxu0 0
    %1085 = vmatpush2.bf16.msra.mxu0 0
    %1086 = vmatprep.subr.bf16.mxu0 0
    %1087 = vmatpush2.bf16.msra.mxu0 0
    %1088 = vmatprep.mubr.bf16.mxu0 0
    %1089 = vmatmul.mubr.bf16.gmra.mxu0 %v863
    %v1090 = vpop.f32.mrf.mxu0
    %v1091 = vadd.f32 0.0, %v1090
    %v1092 = vpop.f32.mrf.mxu0
    %v1093 = vadd.f32 0.0, %v1092
    %v1094 = vpop.f32.mrf.mxu0
    %v1095 = vpop.f32.mrf.mxu0
    %1096 = vdwg.mxu0
    %1097 = vmatprep.subr.bf16.mxu0 %v1023
    %1098 = vmatpush1.bf16.msra.mxu0 %v1022
    %1099 = vmatprep.subr.bf16.mxu0 %v1019
    %1100 = vmatpush1.bf16.msra.mxu0 %v1018
    %1101 = vmatprep.subr.bf16.mxu0 %v1015
    %1102 = vmatpush1.bf16.msra.mxu0 %v1014
    %1103 = vmatprep.subr.bf16.mxu0 %v1011
    %1104 = vmatpush1.bf16.msra.mxu0 %v1010
    %1105 = vmatprep.subr.bf16.mxu0 %v1007
    %1106 = vmatpush1.bf16.msra.mxu0 %v1006
    %1107 = vmatprep.subr.bf16.mxu0 %v1003
    %1108 = vmatpush1.bf16.msra.mxu0 %v1002
    %1109 = vmatprep.subr.bf16.mxu0 %v999
    %1110 = vmatpush1.bf16.msra.mxu0 %v998
    %1111 = vmatprep.subr.bf16.mxu0 %v995
    %1112 = vmatpush1.bf16.msra.mxu0 %v994
    %1113 = vmatprep.subr.bf16.mxu0 0
    %1114 = vmatpush2.bf16.msra.mxu0 0
    %1115 = vmatprep.subr.bf16.mxu0 0
    %1116 = vmatpush2.bf16.msra.mxu0 0
    %1117 = vmatprep.subr.bf16.mxu0 0
    %1118 = vmatpush2.bf16.msra.mxu0 0
    %1119 = vmatprep.subr.bf16.mxu0 0
    %1120 = vmatpush2.bf16.msra.mxu0 0
    %1121 = vmatprep.subr.bf16.mxu0 0
    %1122 = vmatpush2.bf16.msra.mxu0 0
    %1123 = vmatprep.subr.bf16.mxu0 0
    %1124 = vmatpush2.bf16.msra.mxu0 0
    %1125 = vmatprep.subr.bf16.mxu0 0
    %1126 = vmatpush2.bf16.msra.mxu0 0
    %1127 = vmatprep.subr.bf16.mxu0 0
    %1128 = vmatpush2.bf16.msra.mxu0 0
    %1129 = vmatprep.mubr.bf16.mxu0 0
    %1130 = vmatmul.mubr.bf16.gmra.mxu0 %v863
    %v1131 = vpop.f32.mrf.mxu0
    %v1132 = vadd.f32 0.0, %v1131
    %v1133 = vpop.f32.mrf.mxu0
    %v1134 = vadd.f32 0.0, %v1133
    %v1135 = vpop.f32.mrf.mxu0
    %v1136 = vpop.f32.mrf.mxu0
    %1137 = vdwg.mxu0
    %v1138 = vadd.f32 %v859, %v1091
    %v1139 = vadd.f32 %v860, %v1093
    %v1140 = vadd.f32 %v861, %v1132
    %v1141 = vadd.f32 %v862, %v1134
    %v1142 = vxor.u32 %v1138, 2147483648
    %v1143 = vmul.f32 %v1142, 1.442695
    %v1144 = vpow.pop %v1143
    %v1145 = vadd.f32 %v1144, 1.0
    %v1146 = vrcp.pop %v1145
    %v1147 = vmul.f32 1.0, %v1146
    %v1148 = vxor.u32 %v1139, 2147483648
    %v1149 = vmul.f32 %v1148, 1.442695
    %v1150 = vpow.pop %v1149
    %v1151 = vadd.f32 %v1150, 1.0
    %v1152 = vrcp.pop %v1151
    %v1153 = vmul.f32 1.0, %v1152
    %v1154 = vtanh.pop %v1140
    %v1155 = vxor.u32 %v1141, 2147483648
    %v1156 = vmul.f32 %v1155, 1.442695
    %v1157 = vpow.pop %v1156
    %v1158 = vadd.f32 %v1157, 1.0
    %v1159 = vrcp.pop %v1158
    %v1160 = vmul.f32 1.0, %v1159
    %v1161 = vmul.f32 %v1153, %v855
    %v1162 = vmul.f32 %v1147, %v1154
    %v1163 = vadd.f32 %v1161, %v1162
    %v1164 = vtanh.pop %v1163
    %v1165 = vmul.f32 %v1160, %v1164
    %vm1166 = vcmp.gt.s32.totalorder %v534, 1
    %v1167 = vsel %vm1166, %v1165, %v854
    %1168 = vst [vmem:[#allocation4] sm:$0xff] %v1167
    %v1169 = vsel %vm1166, %v1163, %v855
    %1170 = vst [vmem:[#allocation5] sm:$0xff] %v1169
    %v1171 = vsel %vm1166, %v1165, 0.0
    %s1172 = scalar_lea.vmem [#allocation3], 8
    %1173 = vst [vmem:[%s1172] sm:$0xff] %v1171
    %v1174 = vld [vmem:[#allocation4] sm:$0xff]
    %v1175 = vld [vmem:[#allocation5] sm:$0xff]
    %s1176 = smul.u32 2, 4
    %s1177 = smul.addr %s1176, 8
    %s1178 = scalar_lea.vmem [#allocation2], %s1177
    %v1179 = vld [vmem:[%s1178] sm:$0xff]
    %v1180 = vld [vmem:[%s1178 + $0x8] sm:$0xff]
    %v1181 = vld [vmem:[%s1178 + $0x10] sm:$0xff]
    %v1182 = vld [vmem:[%s1178 + $0x18] sm:$0xff]
    %v1183 = vpack.c.bf16 %v1174, %v1174
    %v1184 = vld [vmem:[#allocation11] sm:$0xff]
    %v1185 = vld [vmem:[#allocation11 + $0x8] sm:$0xff]
    %v1186 = vld [vmem:[#allocation11 + $0x10] sm:$0xff]
    %v1187 = vld [vmem:[#allocation11 + $0x18] sm:$0xff]
    %v1188 = vld [vmem:[#allocation11 + $0x20] sm:$0xff]
    %v1189 = vld [vmem:[#allocation11 + $0x28] sm:$0xff]
    %v1190 = vld [vmem:[#allocation11 + $0x30] sm:$0xff]
    %v1191 = vld [vmem:[#allocation11 + $0x38] sm:$0xff]
    %v1192 = vld [vmem:[#allocation11 + $0x40] sm:$0xff]
    %v1193 = vld [vmem:[#allocation11 + $0x48] sm:$0xff]
    %v1194 = vld [vmem:[#allocation11 + $0x50] sm:$0xff]
    %v1195 = vld [vmem:[#allocation11 + $0x58] sm:$0xff]
    %v1196 = vld [vmem:[#allocation11 + $0x60] sm:$0xff]
    %v1197 = vld [vmem:[#allocation11 + $0x68] sm:$0xff]
    %v1198 = vld [vmem:[#allocation11 + $0x70] sm:$0xff]
    %v1199 = vld [vmem:[#allocation11 + $0x78] sm:$0xff]
    %v1200 = vld [vmem:[#allocation11 + $0x80] sm:$0xff]
    %v1201 = vld [vmem:[#allocation11 + $0x88] sm:$0xff]
    %v1202 = vld [vmem:[#allocation11 + $0x90] sm:$0xff]
    %v1203 = vld [vmem:[#allocation11 + $0x98] sm:$0xff]
    %v1204 = vld [vmem:[#allocation11 + $0xa0] sm:$0xff]
    %v1205 = vld [vmem:[#allocation11 + $0xa8] sm:$0xff]
    %v1206 = vld [vmem:[#allocation11 + $0xb0] sm:$0xff]
    %v1207 = vld [vmem:[#allocation11 + $0xb8] sm:$0xff]
    %v1208 = vld [vmem:[#allocation11 + $0xc0] sm:$0xff]
    %v1209 = vld [vmem:[#allocation11 + $0xc8] sm:$0xff]
    %v1210 = vld [vmem:[#allocation11 + $0xd0] sm:$0xff]
    %v1211 = vld [vmem:[#allocation11 + $0xd8] sm:$0xff]
    %v1212 = vld [vmem:[#allocation11 + $0xe0] sm:$0xff]
    %v1213 = vld [vmem:[#allocation11 + $0xe8] sm:$0xff]
    %v1214 = vld [vmem:[#allocation11 + $0xf0] sm:$0xff]
    %v1215 = vld [vmem:[#allocation11 + $0xf8] sm:$0xff]
    %v1248 = vunpack.c.l.b16 %v1184
    %v1249 = vunpack.c.h.b16 %v1184
    %v1250 = vunpack.c.l.b16 %v1185
    %v1251 = vunpack.c.h.b16 %v1185
    %v1252 = vunpack.c.l.b16 %v1186
    %v1253 = vunpack.c.h.b16 %v1186
    %v1254 = vunpack.c.l.b16 %v1187
    %v1255 = vunpack.c.h.b16 %v1187
    %v1256 = vunpack.c.l.b16 %v1188
    %v1257 = vunpack.c.h.b16 %v1188
    %v1258 = vunpack.c.l.b16 %v1189
    %v1259 = vunpack.c.h.b16 %v1189
    %v1260 = vunpack.c.l.b16 %v1190
    %v1261 = vunpack.c.h.b16 %v1190
    %v1262 = vunpack.c.l.b16 %v1191
    %v1263 = vunpack.c.h.b16 %v1191
    %v1264 = vunpack.c.l.b16 %v1192
    %v1265 = vunpack.c.h.b16 %v1192
    %v1266 = vunpack.c.l.b16 %v1193
    %v1267 = vunpack.c.h.b16 %v1193
    %v1268 = vunpack.c.l.b16 %v1194
    %v1269 = vunpack.c.h.b16 %v1194
    %v1270 = vunpack.c.l.b16 %v1195
    %v1271 = vunpack.c.h.b16 %v1195
    %v1272 = vunpack.c.l.b16 %v1196
    %v1273 = vunpack.c.h.b16 %v1196
    %v1274 = vunpack.c.l.b16 %v1197
    %v1275 = vunpack.c.h.b16 %v1197
    %v1276 = vunpack.c.l.b16 %v1198
    %v1277 = vunpack.c.h.b16 %v1198
    %v1278 = vunpack.c.l.b16 %v1199
    %v1279 = vunpack.c.h.b16 %v1199
    %v1280 = vunpack.c.l.b16 %v1200
    %v1281 = vunpack.c.h.b16 %v1200
    %v1282 = vunpack.c.l.b16 %v1201
    %v1283 = vunpack.c.h.b16 %v1201
    %v1284 = vunpack.c.l.b16 %v1202
    %v1285 = vunpack.c.h.b16 %v1202
    %v1286 = vunpack.c.l.b16 %v1203
    %v1287 = vunpack.c.h.b16 %v1203
    %v1288 = vunpack.c.l.b16 %v1204
    %v1289 = vunpack.c.h.b16 %v1204
    %v1290 = vunpack.c.l.b16 %v1205
    %v1291 = vunpack.c.h.b16 %v1205
    %v1292 = vunpack.c.l.b16 %v1206
    %v1293 = vunpack.c.h.b16 %v1206
    %v1294 = vunpack.c.l.b16 %v1207
    %v1295 = vunpack.c.h.b16 %v1207
    %v1296 = vunpack.c.l.b16 %v1208
    %v1297 = vunpack.c.h.b16 %v1208
    %v1298 = vunpack.c.l.b16 %v1209
    %v1299 = vunpack.c.h.b16 %v1209
    %v1300 = vunpack.c.l.b16 %v1210
    %v1301 = vunpack.c.h.b16 %v1210
    %v1302 = vunpack.c.l.b16 %v1211
    %v1303 = vunpack.c.h.b16 %v1211
    %v1304 = vunpack.c.l.b16 %v1212
    %v1305 = vunpack.c.h.b16 %v1212
    %v1306 = vunpack.c.l.b16 %v1213
    %v1307 = vunpack.c.h.b16 %v1213
    %v1308 = vunpack.c.l.b16 %v1214
    %v1309 = vunpack.c.h.b16 %v1214
    %v1310 = vunpack.c.l.b16 %v1215
    %v1311 = vunpack.c.h.b16 %v1215
    %v1312 = vpack.c.b16 %v1252, %v1248
    %v1313 = vpack.c.b16 %v1253, %v1249
    %v1314 = vpack.c.b16 %v1254, %v1250
    %v1315 = vpack.c.b16 %v1255, %v1251
    %v1316 = vpack.c.b16 %v1260, %v1256
    %v1317 = vpack.c.b16 %v1261, %v1257
    %v1318 = vpack.c.b16 %v1262, %v1258
    %v1319 = vpack.c.b16 %v1263, %v1259
    %v1320 = vpack.c.b16 %v1268, %v1264
    %v1321 = vpack.c.b16 %v1269, %v1265
    %v1322 = vpack.c.b16 %v1270, %v1266
    %v1323 = vpack.c.b16 %v1271, %v1267
    %v1324 = vpack.c.b16 %v1276, %v1272
    %v1325 = vpack.c.b16 %v1277, %v1273
    %v1326 = vpack.c.b16 %v1278, %v1274
    %v1327 = vpack.c.b16 %v1279, %v1275
    %v1328 = vpack.c.b16 %v1284, %v1280
    %v1329 = vpack.c.b16 %v1285, %v1281
    %v1330 = vpack.c.b16 %v1286, %v1282
    %v1331 = vpack.c.b16 %v1287, %v1283
    %v1332 = vpack.c.b16 %v1292, %v1288
    %v1333 = vpack.c.b16 %v1293, %v1289
    %v1334 = vpack.c.b16 %v1294, %v1290
    %v1335 = vpack.c.b16 %v1295, %v1291
    %v1336 = vpack.c.b16 %v1300, %v1296
    %v1337 = vpack.c.b16 %v1301, %v1297
    %v1338 = vpack.c.b16 %v1302, %v1298
    %v1339 = vpack.c.b16 %v1303, %v1299
    %v1340 = vpack.c.b16 %v1308, %v1304
    %v1341 = vpack.c.b16 %v1309, %v1305
    %v1342 = vpack.c.b16 %v1310, %v1306
    %v1343 = vpack.c.b16 %v1311, %v1307
    %1376 = vmatprep.subr.bf16.mxu0 %v1341
    %1377 = vmatpush1.bf16.msra.mxu0 %v1340
    %1378 = vmatprep.subr.bf16.mxu0 %v1337
    %1379 = vmatpush1.bf16.msra.mxu0 %v1336
    %1380 = vmatprep.subr.bf16.mxu0 %v1333
    %1381 = vmatpush1.bf16.msra.mxu0 %v1332
    %1382 = vmatprep.subr.bf16.mxu0 %v1329
    %1383 = vmatpush1.bf16.msra.mxu0 %v1328
    %1384 = vmatprep.subr.bf16.mxu0 %v1325
    %1385 = vmatpush1.bf16.msra.mxu0 %v1324
    %1386 = vmatprep.subr.bf16.mxu0 %v1321
    %1387 = vmatpush1.bf16.msra.mxu0 %v1320
    %1388 = vmatprep.subr.bf16.mxu0 %v1317
    %1389 = vmatpush1.bf16.msra.mxu0 %v1316
    %1390 = vmatprep.subr.bf16.mxu0 %v1313
    %1391 = vmatpush1.bf16.msra.mxu0 %v1312
    %1392 = vmatprep.subr.bf16.mxu0 0
    %1393 = vmatpush2.bf16.msra.mxu0 0
    %1394 = vmatprep.subr.bf16.mxu0 0
    %1395 = vmatpush2.bf16.msra.mxu0 0
    %1396 = vmatprep.subr.bf16.mxu0 0
    %1397 = vmatpush2.bf16.msra.mxu0 0
    %1398 = vmatprep.subr.bf16.mxu0 0
    %1399 = vmatpush2.bf16.msra.mxu0 0
    %1400 = vmatprep.subr.bf16.mxu0 0
    %1401 = vmatpush2.bf16.msra.mxu0 0
    %1402 = vmatprep.subr.bf16.mxu0 0
    %1403 = vmatpush2.bf16.msra.mxu0 0
    %1404 = vmatprep.subr.bf16.mxu0 0
    %1405 = vmatpush2.bf16.msra.mxu0 0
    %1406 = vmatprep.subr.bf16.mxu0 0
    %1407 = vmatpush2.bf16.msra.mxu0 0
    %1408 = vmatprep.mubr.bf16.mxu0 0
    %1409 = vmatmul.mubr.bf16.gmra.mxu0 %v1183
    %v1410 = vpop.f32.mrf.mxu0
    %v1411 = vadd.f32 0.0, %v1410
    %v1412 = vpop.f32.mrf.mxu0
    %v1413 = vadd.f32 0.0, %v1412
    %v1414 = vpop.f32.mrf.mxu0
    %v1415 = vpop.f32.mrf.mxu0
    %1416 = vdwg.mxu0
    %1417 = vmatprep.subr.bf16.mxu0 %v1343
    %1418 = vmatpush1.bf16.msra.mxu0 %v1342
    %1419 = vmatprep.subr.bf16.mxu0 %v1339
    %1420 = vmatpush1.bf16.msra.mxu0 %v1338
    %1421 = vmatprep.subr.bf16.mxu0 %v1335
    %1422 = vmatpush1.bf16.msra.mxu0 %v1334
    %1423 = vmatprep.subr.bf16.mxu0 %v1331
    %1424 = vmatpush1.bf16.msra.mxu0 %v1330
    %1425 = vmatprep.subr.bf16.mxu0 %v1327
    %1426 = vmatpush1.bf16.msra.mxu0 %v1326
    %1427 = vmatprep.subr.bf16.mxu0 %v1323
    %1428 = vmatpush1.bf16.msra.mxu0 %v1322
    %1429 = vmatprep.subr.bf16.mxu0 %v1319
    %1430 = vmatpush1.bf16.msra.mxu0 %v1318
    %1431 = vmatprep.subr.bf16.mxu0 %v1315
    %1432 = vmatpush1.bf16.msra.mxu0 %v1314
    %1433 = vmatprep.subr.bf16.mxu0 0
    %1434 = vmatpush2.bf16.msra.mxu0 0
    %1435 = vmatprep.subr.bf16.mxu0 0
    %1436 = vmatpush2.bf16.msra.mxu0 0
    %1437 = vmatprep.subr.bf16.mxu0 0
    %1438 = vmatpush2.bf16.msra.mxu0 0
    %1439 = vmatprep.subr.bf16.mxu0 0
    %1440 = vmatpush2.bf16.msra.mxu0 0
    %1441 = vmatprep.subr.bf16.mxu0 0
    %1442 = vmatpush2.bf16.msra.mxu0 0
    %1443 = vmatprep.subr.bf16.mxu0 0
    %1444 = vmatpush2.bf16.msra.mxu0 0
    %1445 = vmatprep.subr.bf16.mxu0 0
    %1446 = vmatpush2.bf16.msra.mxu0 0
    %1447 = vmatprep.subr.bf16.mxu0 0
    %1448 = vmatpush2.bf16.msra.mxu0 0
    %1449 = vmatprep.mubr.bf16.mxu0 0
    %1450 = vmatmul.mubr.bf16.gmra.mxu0 %v1183
    %v1451 = vpop.f32.mrf.mxu0
    %v1452 = vadd.f32 0.0, %v1451
    %v1453 = vpop.f32.mrf.mxu0
    %v1454 = vadd.f32 0.0, %v1453
    %v1455 = vpop.f32.mrf.mxu0
    %v1456 = vpop.f32.mrf.mxu0
    %1457 = vdwg.mxu0
    %v1458 = vadd.f32 %v1179, %v1411
    %v1459 = vadd.f32 %v1180, %v1413
    %v1460 = vadd.f32 %v1181, %v1452
    %v1461 = vadd.f32 %v1182, %v1454
    %v1462 = vxor.u32 %v1458, 2147483648
    %v1463 = vmul.f32 %v1462, 1.442695
    %v1464 = vpow.pop %v1463
    %v1465 = vadd.f32 %v1464, 1.0
    %v1466 = vrcp.pop %v1465
    %v1467 = vmul.f32 1.0, %v1466
    %v1468 = vxor.u32 %v1459, 2147483648
    %v1469 = vmul.f32 %v1468, 1.442695
    %v1470 = vpow.pop %v1469
    %v1471 = vadd.f32 %v1470, 1.0
    %v1472 = vrcp.pop %v1471
    %v1473 = vmul.f32 1.0, %v1472
    %v1474 = vtanh.pop %v1460
    %v1475 = vxor.u32 %v1461, 2147483648
    %v1476 = vmul.f32 %v1475, 1.442695
    %v1477 = vpow.pop %v1476
    %v1478 = vadd.f32 %v1477, 1.0
    %v1479 = vrcp.pop %v1478
    %v1480 = vmul.f32 1.0, %v1479
    %v1481 = vmul.f32 %v1473, %v1175
    %v1482 = vmul.f32 %v1467, %v1474
    %v1483 = vadd.f32 %v1481, %v1482
    %v1484 = vtanh.pop %v1483
    %v1485 = vmul.f32 %v1480, %v1484
    %vm1486 = vcmp.gt.s32.totalorder %v534, 2
    %v1487 = vsel %vm1486, %v1485, %v1174
    %1488 = vst [vmem:[#allocation4] sm:$0xff] %v1487
    %v1489 = vsel %vm1486, %v1483, %v1175
    %1490 = vst [vmem:[#allocation5] sm:$0xff] %v1489
    %v1491 = vsel %vm1486, %v1485, 0.0
    %s1492 = scalar_lea.vmem [#allocation3], 16
    %1493 = vst [vmem:[%s1492] sm:$0xff] %v1491
    %v1494 = vld [vmem:[#allocation4] sm:$0xff]
    %v1495 = vld [vmem:[#allocation5] sm:$0xff]
    %s1496 = smul.u32 3, 4
    %s1497 = smul.addr %s1496, 8
    %s1498 = scalar_lea.vmem [#allocation2], %s1497
    %v1499 = vld [vmem:[%s1498] sm:$0xff]
    %v1500 = vld [vmem:[%s1498 + $0x8] sm:$0xff]
    %v1501 = vld [vmem:[%s1498 + $0x10] sm:$0xff]
    %v1502 = vld [vmem:[%s1498 + $0x18] sm:$0xff]
    %v1503 = vpack.c.bf16 %v1494, %v1494
    %v1504 = vld [vmem:[#allocation11] sm:$0xff]
    %v1505 = vld [vmem:[#allocation11 + $0x8] sm:$0xff]
    %v1506 = vld [vmem:[#allocation11 + $0x10] sm:$0xff]
    %v1507 = vld [vmem:[#allocation11 + $0x18] sm:$0xff]
    %v1508 = vld [vmem:[#allocation11 + $0x20] sm:$0xff]
    %v1509 = vld [vmem:[#allocation11 + $0x28] sm:$0xff]
    %v1510 = vld [vmem:[#allocation11 + $0x30] sm:$0xff]
    %v1511 = vld [vmem:[#allocation11 + $0x38] sm:$0xff]
    %v1512 = vld [vmem:[#allocation11 + $0x40] sm:$0xff]
    %v1513 = vld [vmem:[#allocation11 + $0x48] sm:$0xff]
    %v1514 = vld [vmem:[#allocation11 + $0x50] sm:$0xff]
    %v1515 = vld [vmem:[#allocation11 + $0x58] sm:$0xff]
    %v1516 = vld [vmem:[#allocation11 + $0x60] sm:$0xff]
    %v1517 = vld [vmem:[#allocation11 + $0x68] sm:$0xff]
    %v1518 = vld [vmem:[#allocation11 + $0x70] sm:$0xff]
    %v1519 = vld [vmem:[#allocation11 + $0x78] sm:$0xff]
    %v1520 = vld [vmem:[#allocation11 + $0x80] sm:$0xff]
    %v1521 = vld [vmem:[#allocation11 + $0x88] sm:$0xff]
    %v1522 = vld [vmem:[#allocation11 + $0x90] sm:$0xff]
    %v1523 = vld [vmem:[#allocation11 + $0x98] sm:$0xff]
    %v1524 = vld [vmem:[#allocation11 + $0xa0] sm:$0xff]
    %v1525 = vld [vmem:[#allocation11 + $0xa8] sm:$0xff]
    %v1526 = vld [vmem:[#allocation11 + $0xb0] sm:$0xff]
    %v1527 = vld [vmem:[#allocation11 + $0xb8] sm:$0xff]
    %v1528 = vld [vmem:[#allocation11 + $0xc0] sm:$0xff]
    %v1529 = vld [vmem:[#allocation11 + $0xc8] sm:$0xff]
    %v1530 = vld [vmem:[#allocation11 + $0xd0] sm:$0xff]
    %v1531 = vld [vmem:[#allocation11 + $0xd8] sm:$0xff]
    %v1532 = vld [vmem:[#allocation11 + $0xe0] sm:$0xff]
    %v1533 = vld [vmem:[#allocation11 + $0xe8] sm:$0xff]
    %v1534 = vld [vmem:[#allocation11 + $0xf0] sm:$0xff]
    %v1535 = vld [vmem:[#allocation11 + $0xf8] sm:$0xff]
    %v1568 = vunpack.c.l.b16 %v1504
    %v1569 = vunpack.c.h.b16 %v1504
    %v1570 = vunpack.c.l.b16 %v1505
    %v1571 = vunpack.c.h.b16 %v1505
    %v1572 = vunpack.c.l.b16 %v1506
    %v1573 = vunpack.c.h.b16 %v1506
    %v1574 = vunpack.c.l.b16 %v1507
    %v1575 = vunpack.c.h.b16 %v1507
    %v1576 = vunpack.c.l.b16 %v1508
    %v1577 = vunpack.c.h.b16 %v1508
    %v1578 = vunpack.c.l.b16 %v1509
    %v1579 = vunpack.c.h.b16 %v1509
    %v1580 = vunpack.c.l.b16 %v1510
    %v1581 = vunpack.c.h.b16 %v1510
    %v1582 = vunpack.c.l.b16 %v1511
    %v1583 = vunpack.c.h.b16 %v1511
    %v1584 = vunpack.c.l.b16 %v1512
    %v1585 = vunpack.c.h.b16 %v1512
    %v1586 = vunpack.c.l.b16 %v1513
    %v1587 = vunpack.c.h.b16 %v1513
    %v1588 = vunpack.c.l.b16 %v1514
    %v1589 = vunpack.c.h.b16 %v1514
    %v1590 = vunpack.c.l.b16 %v1515
    %v1591 = vunpack.c.h.b16 %v1515
    %v1592 = vunpack.c.l.b16 %v1516
    %v1593 = vunpack.c.h.b16 %v1516
    %v1594 = vunpack.c.l.b16 %v1517
    %v1595 = vunpack.c.h.b16 %v1517
    %v1596 = vunpack.c.l.b16 %v1518
    %v1597 = vunpack.c.h.b16 %v1518
    %v1598 = vunpack.c.l.b16 %v1519
    %v1599 = vunpack.c.h.b16 %v1519
    %v1600 = vunpack.c.l.b16 %v1520
    %v1601 = vunpack.c.h.b16 %v1520
    %v1602 = vunpack.c.l.b16 %v1521
    %v1603 = vunpack.c.h.b16 %v1521
    %v1604 = vunpack.c.l.b16 %v1522
    %v1605 = vunpack.c.h.b16 %v1522
    %v1606 = vunpack.c.l.b16 %v1523
    %v1607 = vunpack.c.h.b16 %v1523
    %v1608 = vunpack.c.l.b16 %v1524
    %v1609 = vunpack.c.h.b16 %v1524
    %v1610 = vunpack.c.l.b16 %v1525
    %v1611 = vunpack.c.h.b16 %v1525
    %v1612 = vunpack.c.l.b16 %v1526
    %v1613 = vunpack.c.h.b16 %v1526
    %v1614 = vunpack.c.l.b16 %v1527
    %v1615 = vunpack.c.h.b16 %v1527
    %v1616 = vunpack.c.l.b16 %v1528
    %v1617 = vunpack.c.h.b16 %v1528
    %v1618 = vunpack.c.l.b16 %v1529
    %v1619 = vunpack.c.h.b16 %v1529
    %v1620 = vunpack.c.l.b16 %v1530
    %v1621 = vunpack.c.h.b16 %v1530
    %v1622 = vunpack.c.l.b16 %v1531
    %v1623 = vunpack.c.h.b16 %v1531
    %v1624 = vunpack.c.l.b16 %v1532
    %v1625 = vunpack.c.h.b16 %v1532
    %v1626 = vunpack.c.l.b16 %v1533
    %v1627 = vunpack.c.h.b16 %v1533
    %v1628 = vunpack.c.l.b16 %v1534
    %v1629 = vunpack.c.h.b16 %v1534
    %v1630 = vunpack.c.l.b16 %v1535
    %v1631 = vunpack.c.h.b16 %v1535
    %v1632 = vpack.c.b16 %v1572, %v1568
    %v1633 = vpack.c.b16 %v1573, %v1569
    %v1634 = vpack.c.b16 %v1574, %v1570
    %v1635 = vpack.c.b16 %v1575, %v1571
    %v1636 = vpack.c.b16 %v1580, %v1576
    %v1637 = vpack.c.b16 %v1581, %v1577
    %v1638 = vpack.c.b16 %v1582, %v1578
    %v1639 = vpack.c.b16 %v1583, %v1579
    %v1640 = vpack.c.b16 %v1588, %v1584
    %v1641 = vpack.c.b16 %v1589, %v1585
    %v1642 = vpack.c.b16 %v1590, %v1586
    %v1643 = vpack.c.b16 %v1591, %v1587
    %v1644 = vpack.c.b16 %v1596, %v1592
    %v1645 = vpack.c.b16 %v1597, %v1593
    %v1646 = vpack.c.b16 %v1598, %v1594
    %v1647 = vpack.c.b16 %v1599, %v1595
    %v1648 = vpack.c.b16 %v1604, %v1600
    %v1649 = vpack.c.b16 %v1605, %v1601
    %v1650 = vpack.c.b16 %v1606, %v1602
    %v1651 = vpack.c.b16 %v1607, %v1603
    %v1652 = vpack.c.b16 %v1612, %v1608
    %v1653 = vpack.c.b16 %v1613, %v1609
    %v1654 = vpack.c.b16 %v1614, %v1610
    %v1655 = vpack.c.b16 %v1615, %v1611
    %v1656 = vpack.c.b16 %v1620, %v1616
    %v1657 = vpack.c.b16 %v1621, %v1617
    %v1658 = vpack.c.b16 %v1622, %v1618
    %v1659 = vpack.c.b16 %v1623, %v1619
    %v1660 = vpack.c.b16 %v1628, %v1624
    %v1661 = vpack.c.b16 %v1629, %v1625
    %v1662 = vpack.c.b16 %v1630, %v1626
    %v1663 = vpack.c.b16 %v1631, %v1627
    %1696 = vmatprep.subr.bf16.mxu0 %v1661
    %1697 = vmatpush1.bf16.msra.mxu0 %v1660
    %1698 = vmatprep.subr.bf16.mxu0 %v1657
    %1699 = vmatpush1.bf16.msra.mxu0 %v1656
    %1700 = vmatprep.subr.bf16.mxu0 %v1653
    %1701 = vmatpush1.bf16.msra.mxu0 %v1652
    %1702 = vmatprep.subr.bf16.mxu0 %v1649
    %1703 = vmatpush1.bf16.msra.mxu0 %v1648
    %1704 = vmatprep.subr.bf16.mxu0 %v1645
    %1705 = vmatpush1.bf16.msra.mxu0 %v1644
    %1706 = vmatprep.subr.bf16.mxu0 %v1641
    %1707 = vmatpush1.bf16.msra.mxu0 %v1640
    %1708 = vmatprep.subr.bf16.mxu0 %v1637
    %1709 = vmatpush1.bf16.msra.mxu0 %v1636
    %1710 = vmatprep.subr.bf16.mxu0 %v1633
    %1711 = vmatpush1.bf16.msra.mxu0 %v1632
    %1712 = vmatprep.subr.bf16.mxu0 0
    %1713 = vmatpush2.bf16.msra.mxu0 0
    %1714 = vmatprep.subr.bf16.mxu0 0
    %1715 = vmatpush2.bf16.msra.mxu0 0
    %1716 = vmatprep.subr.bf16.mxu0 0
    %1717 = vmatpush2.bf16.msra.mxu0 0
    %1718 = vmatprep.subr.bf16.mxu0 0
    %1719 = vmatpush2.bf16.msra.mxu0 0
    %1720 = vmatprep.subr.bf16.mxu0 0
    %1721 = vmatpush2.bf16.msra.mxu0 0
    %1722 = vmatprep.subr.bf16.mxu0 0
    %1723 = vmatpush2.bf16.msra.mxu0 0
    %1724 = vmatprep.subr.bf16.mxu0 0
    %1725 = vmatpush2.bf16.msra.mxu0 0
    %1726 = vmatprep.subr.bf16.mxu0 0
    %1727 = vmatpush2.bf16.msra.mxu0 0
    %1728 = vmatprep.mubr.bf16.mxu0 0
    %1729 = vmatmul.mubr.bf16.gmra.mxu0 %v1503
    %v1730 = vpop.f32.mrf.mxu0
    %v1731 = vadd.f32 0.0, %v1730
    %v1732 = vpop.f32.mrf.mxu0
    %v1733 = vadd.f32 0.0, %v1732
    %v1734 = vpop.f32.mrf.mxu0
    %v1735 = vpop.f32.mrf.mxu0
    %1736 = vdwg.mxu0
    %1737 = vmatprep.subr.bf16.mxu0 %v1663
    %1738 = vmatpush1.bf16.msra.mxu0 %v1662
    %1739 = vmatprep.subr.bf16.mxu0 %v1659
    %1740 = vmatpush1.bf16.msra.mxu0 %v1658
    %1741 = vmatprep.subr.bf16.mxu0 %v1655
    %1742 = vmatpush1.bf16.msra.mxu0 %v1654
    %1743 = vmatprep.subr.bf16.mxu0 %v1651
    %1744 = vmatpush1.bf16.msra.mxu0 %v1650
    %1745 = vmatprep.subr.bf16.mxu0 %v1647
    %1746 = vmatpush1.bf16.msra.mxu0 %v1646
    %1747 = vmatprep.subr.bf16.mxu0 %v1643
    %1748 = vmatpush1.bf16.msra.mxu0 %v1642
    %1749 = vmatprep.subr.bf16.mxu0 %v1639
    %1750 = vmatpush1.bf16.msra.mxu0 %v1638
    %1751 = vmatprep.subr.bf16.mxu0 %v1635
    %1752 = vmatpush1.bf16.msra.mxu0 %v1634
    %1753 = vmatprep.subr.bf16.mxu0 0
    %1754 = vmatpush2.bf16.msra.mxu0 0
    %1755 = vmatprep.subr.bf16.mxu0 0
    %1756 = vmatpush2.bf16.msra.mxu0 0
    %1757 = vmatprep.subr.bf16.mxu0 0
    %1758 = vmatpush2.bf16.msra.mxu0 0
    %1759 = vmatprep.subr.bf16.mxu0 0
    %1760 = vmatpush2.bf16.msra.mxu0 0
    %1761 = vmatprep.subr.bf16.mxu0 0
    %1762 = vmatpush2.bf16.msra.mxu0 0
    %1763 = vmatprep.subr.bf16.mxu0 0
    %1764 = vmatpush2.bf16.msra.mxu0 0
    %1765 = vmatprep.subr.bf16.mxu0 0
    %1766 = vmatpush2.bf16.msra.mxu0 0
    %1767 = vmatprep.subr.bf16.mxu0 0
    %1768 = vmatpush2.bf16.msra.mxu0 0
    %1769 = vmatprep.mubr.bf16.mxu0 0
    %1770 = vmatmul.mubr.bf16.gmra.mxu0 %v1503
    %v1771 = vpop.f32.mrf.mxu0
    %v1772 = vadd.f32 0.0, %v1771
    %v1773 = vpop.f32.mrf.mxu0
    %v1774 = vadd.f32 0.0, %v1773
    %v1775 = vpop.f32.mrf.mxu0
    %v1776 = vpop.f32.mrf.mxu0
    %1777 = vdwg.mxu0
    %v1778 = vadd.f32 %v1499, %v1731
    %v1779 = vadd.f32 %v1500, %v1733
    %v1780 = vadd.f32 %v1501, %v1772
    %v1781 = vadd.f32 %v1502, %v1774
    %v1782 = vxor.u32 %v1778, 2147483648
    %v1783 = vmul.f32 %v1782, 1.442695
    %v1784 = vpow.pop %v1783
    %v1785 = vadd.f32 %v1784, 1.0
    %v1786 = vrcp.pop %v1785
    %v1787 = vmul.f32 1.0, %v1786
    %v1788 = vxor.u32 %v1779, 2147483648
    %v1789 = vmul.f32 %v1788, 1.442695
    %v1790 = vpow.pop %v1789
    %v1791 = vadd.f32 %v1790, 1.0
    %v1792 = vrcp.pop %v1791
    %v1793 = vmul.f32 1.0, %v1792
    %v1794 = vtanh.pop %v1780
    %v1795 = vxor.u32 %v1781, 2147483648
    %v1796 = vmul.f32 %v1795, 1.442695
    %v1797 = vpow.pop %v1796
    %v1798 = vadd.f32 %v1797, 1.0
    %v1799 = vrcp.pop %v1798
    %v1800 = vmul.f32 1.0, %v1799
    %v1801 = vmul.f32 %v1793, %v1495
    %v1802 = vmul.f32 %v1787, %v1794
    %v1803 = vadd.f32 %v1801, %v1802
    %v1804 = vtanh.pop %v1803
    %v1805 = vmul.f32 %v1800, %v1804
    %vm1806 = vcmp.gt.s32.totalorder %v534, 3
    %v1807 = vsel %vm1806, %v1805, %v1494
    %1808 = vst [vmem:[#allocation4] sm:$0xff] %v1807
    %v1809 = vsel %vm1806, %v1803, %v1495
    %1810 = vst [vmem:[#allocation5] sm:$0xff] %v1809
    %v1811 = vsel %vm1806, %v1805, 0.0
    %s1812 = scalar_lea.vmem [#allocation3], 24
    %1813 = vst [vmem:[%s1812] sm:$0xff] %v1811
    %v1814 = vld [vmem:[#allocation4] sm:$0xff]
    %v1815 = vld [vmem:[#allocation5] sm:$0xff]
    %s1816 = smul.u32 4, 4
    %s1817 = smul.addr %s1816, 8
    %s1818 = scalar_lea.vmem [#allocation2], %s1817
    %v1819 = vld [vmem:[%s1818] sm:$0xff]
    %v1820 = vld [vmem:[%s1818 + $0x8] sm:$0xff]
    %v1821 = vld [vmem:[%s1818 + $0x10] sm:$0xff]
    %v1822 = vld [vmem:[%s1818 + $0x18] sm:$0xff]
    %v1823 = vpack.c.bf16 %v1814, %v1814
    %v1824 = vld [vmem:[#allocation11] sm:$0xff]
    %v1825 = vld [vmem:[#allocation11 + $0x8] sm:$0xff]
    %v1826 = vld [vmem:[#allocation11 + $0x10] sm:$0xff]
    %v1827 = vld [vmem:[#allocation11 + $0x18] sm:$0xff]
    %v1828 = vld [vmem:[#allocation11 + $0x20] sm:$0xff]
    %v1829 = vld [vmem:[#allocation11 + $0x28] sm:$0xff]
    %v1830 = vld [vmem:[#allocation11 + $0x30] sm:$0xff]
    %v1831 = vld [vmem:[#allocation11 + $0x38] sm:$0xff]
    %v1832 = vld [vmem:[#allocation11 + $0x40] sm:$0xff]
    %v1833 = vld [vmem:[#allocation11 + $0x48] sm:$0xff]
    %v1834 = vld [vmem:[#allocation11 + $0x50] sm:$0xff]
    %v1835 = vld [vmem:[#allocation11 + $0x58] sm:$0xff]
    %v1836 = vld [vmem:[#allocation11 + $0x60] sm:$0xff]
    %v1837 = vld [vmem:[#allocation11 + $0x68] sm:$0xff]
    %v1838 = vld [vmem:[#allocation11 + $0x70] sm:$0xff]
    %v1839 = vld [vmem:[#allocation11 + $0x78] sm:$0xff]
    %v1840 = vld [vmem:[#allocation11 + $0x80] sm:$0xff]
    %v1841 = vld [vmem:[#allocation11 + $0x88] sm:$0xff]
    %v1842 = vld [vmem:[#allocation11 + $0x90] sm:$0xff]
    %v1843 = vld [vmem:[#allocation11 + $0x98] sm:$0xff]
    %v1844 = vld [vmem:[#allocation11 + $0xa0] sm:$0xff]
    %v1845 = vld [vmem:[#allocation11 + $0xa8] sm:$0xff]
    %v1846 = vld [vmem:[#allocation11 + $0xb0] sm:$0xff]
    %v1847 = vld [vmem:[#allocation11 + $0xb8] sm:$0xff]
    %v1848 = vld [vmem:[#allocation11 + $0xc0] sm:$0xff]
    %v1849 = vld [vmem:[#allocation11 + $0xc8] sm:$0xff]
    %v1850 = vld [vmem:[#allocation11 + $0xd0] sm:$0xff]
    %v1851 = vld [vmem:[#allocation11 + $0xd8] sm:$0xff]
    %v1852 = vld [vmem:[#allocation11 + $0xe0] sm:$0xff]
    %v1853 = vld [vmem:[#allocation11 + $0xe8] sm:$0xff]
    %v1854 = vld [vmem:[#allocation11 + $0xf0] sm:$0xff]
    %v1855 = vld [vmem:[#allocation11 + $0xf8] sm:$0xff]
    %v1888 = vunpack.c.l.b16 %v1824
    %v1889 = vunpack.c.h.b16 %v1824
    %v1890 = vunpack.c.l.b16 %v1825
    %v1891 = vunpack.c.h.b16 %v1825
    %v1892 = vunpack.c.l.b16 %v1826
    %v1893 = vunpack.c.h.b16 %v1826
    %v1894 = vunpack.c.l.b16 %v1827
    %v1895 = vunpack.c.h.b16 %v1827
    %v1896 = vunpack.c.l.b16 %v1828
    %v1897 = vunpack.c.h.b16 %v1828
    %v1898 = vunpack.c.l.b16 %v1829
    %v1899 = vunpack.c.h.b16 %v1829
    %v1900 = vunpack.c.l.b16 %v1830
    %v1901 = vunpack.c.h.b16 %v1830
    %v1902 = vunpack.c.l.b16 %v1831
    %v1903 = vunpack.c.h.b16 %v1831
    %v1904 = vunpack.c.l.b16 %v1832
    %v1905 = vunpack.c.h.b16 %v1832
    %v1906 = vunpack.c.l.b16 %v1833
    %v1907 = vunpack.c.h.b16 %v1833
    %v1908 = vunpack.c.l.b16 %v1834
    %v1909 = vunpack.c.h.b16 %v1834
    %v1910 = vunpack.c.l.b16 %v1835
    %v1911 = vunpack.c.h.b16 %v1835
    %v1912 = vunpack.c.l.b16 %v1836
    %v1913 = vunpack.c.h.b16 %v1836
    %v1914 = vunpack.c.l.b16 %v1837
    %v1915 = vunpack.c.h.b16 %v1837
    %v1916 = vunpack.c.l.b16 %v1838
    %v1917 = vunpack.c.h.b16 %v1838
    %v1918 = vunpack.c.l.b16 %v1839
    %v1919 = vunpack.c.h.b16 %v1839
    %v1920 = vunpack.c.l.b16 %v1840
    %v1921 = vunpack.c.h.b16 %v1840
    %v1922 = vunpack.c.l.b16 %v1841
    %v1923 = vunpack.c.h.b16 %v1841
    %v1924 = vunpack.c.l.b16 %v1842
    %v1925 = vunpack.c.h.b16 %v1842
    %v1926 = vunpack.c.l.b16 %v1843
    %v1927 = vunpack.c.h.b16 %v1843
    %v1928 = vunpack.c.l.b16 %v1844
    %v1929 = vunpack.c.h.b16 %v1844
    %v1930 = vunpack.c.l.b16 %v1845
    %v1931 = vunpack.c.h.b16 %v1845
    %v1932 = vunpack.c.l.b16 %v1846
    %v1933 = vunpack.c.h.b16 %v1846
    %v1934 = vunpack.c.l.b16 %v1847
    %v1935 = vunpack.c.h.b16 %v1847
    %v1936 = vunpack.c.l.b16 %v1848
    %v1937 = vunpack.c.h.b16 %v1848
    %v1938 = vunpack.c.l.b16 %v1849
    %v1939 = vunpack.c.h.b16 %v1849
    %v1940 = vunpack.c.l.b16 %v1850
    %v1941 = vunpack.c.h.b16 %v1850
    %v1942 = vunpack.c.l.b16 %v1851
    %v1943 = vunpack.c.h.b16 %v1851
    %v1944 = vunpack.c.l.b16 %v1852
    %v1945 = vunpack.c.h.b16 %v1852
    %v1946 = vunpack.c.l.b16 %v1853
    %v1947 = vunpack.c.h.b16 %v1853
    %v1948 = vunpack.c.l.b16 %v1854
    %v1949 = vunpack.c.h.b16 %v1854
    %v1950 = vunpack.c.l.b16 %v1855
    %v1951 = vunpack.c.h.b16 %v1855
    %v1952 = vpack.c.b16 %v1892, %v1888
    %v1953 = vpack.c.b16 %v1893, %v1889
    %v1954 = vpack.c.b16 %v1894, %v1890
    %v1955 = vpack.c.b16 %v1895, %v1891
    %v1956 = vpack.c.b16 %v1900, %v1896
    %v1957 = vpack.c.b16 %v1901, %v1897
    %v1958 = vpack.c.b16 %v1902, %v1898
    %v1959 = vpack.c.b16 %v1903, %v1899
    %v1960 = vpack.c.b16 %v1908, %v1904
    %v1961 = vpack.c.b16 %v1909, %v1905
    %v1962 = vpack.c.b16 %v1910, %v1906
    %v1963 = vpack.c.b16 %v1911, %v1907
    %v1964 = vpack.c.b16 %v1916, %v1912
    %v1965 = vpack.c.b16 %v1917, %v1913
    %v1966 = vpack.c.b16 %v1918, %v1914
    %v1967 = vpack.c.b16 %v1919, %v1915
    %v1968 = vpack.c.b16 %v1924, %v1920
    %v1969 = vpack.c.b16 %v1925, %v1921
    %v1970 = vpack.c.b16 %v1926, %v1922
    %v1971 = vpack.c.b16 %v1927, %v1923
    %v1972 = vpack.c.b16 %v1932, %v1928
    %v1973 = vpack.c.b16 %v1933, %v1929
    %v1974 = vpack.c.b16 %v1934, %v1930
    %v1975 = vpack.c.b16 %v1935, %v1931
    %v1976 = vpack.c.b16 %v1940, %v1936
    %v1977 = vpack.c.b16 %v1941, %v1937
    %v1978 = vpack.c.b16 %v1942, %v1938
    %v1979 = vpack.c.b16 %v1943, %v1939
    %v1980 = vpack.c.b16 %v1948, %v1944
    %v1981 = vpack.c.b16 %v1949, %v1945
    %v1982 = vpack.c.b16 %v1950, %v1946
    %v1983 = vpack.c.b16 %v1951, %v1947
    %2016 = vmatprep.subr.bf16.mxu0 %v1981
    %2017 = vmatpush1.bf16.msra.mxu0 %v1980
    %2018 = vmatprep.subr.bf16.mxu0 %v1977
    %2019 = vmatpush1.bf16.msra.mxu0 %v1976
    %2020 = vmatprep.subr.bf16.mxu0 %v1973
    %2021 = vmatpush1.bf16.msra.mxu0 %v1972
    %2022 = vmatprep.subr.bf16.mxu0 %v1969
    %2023 = vmatpush1.bf16.msra.mxu0 %v1968
    %2024 = vmatprep.subr.bf16.mxu0 %v1965
    %2025 = vmatpush1.bf16.msra.mxu0 %v1964
    %2026 = vmatprep.subr.bf16.mxu0 %v1961
    %2027 = vmatpush1.bf16.msra.mxu0 %v1960
    %2028 = vmatprep.subr.bf16.mxu0 %v1957
    %2029 = vmatpush1.bf16.msra.mxu0 %v1956
    %2030 = vmatprep.subr.bf16.mxu0 %v1953
    %2031 = vmatpush1.bf16.msra.mxu0 %v1952
    %2032 = vmatprep.subr.bf16.mxu0 0
    %2033 = vmatpush2.bf16.msra.mxu0 0
    %2034 = vmatprep.subr.bf16.mxu0 0
    %2035 = vmatpush2.bf16.msra.mxu0 0
    %2036 = vmatprep.subr.bf16.mxu0 0
    %2037 = vmatpush2.bf16.msra.mxu0 0
    %2038 = vmatprep.subr.bf16.mxu0 0
    %2039 = vmatpush2.bf16.msra.mxu0 0
    %2040 = vmatprep.subr.bf16.mxu0 0
    %2041 = vmatpush2.bf16.msra.mxu0 0
    %2042 = vmatprep.subr.bf16.mxu0 0
    %2043 = vmatpush2.bf16.msra.mxu0 0
    %2044 = vmatprep.subr.bf16.mxu0 0
    %2045 = vmatpush2.bf16.msra.mxu0 0
    %2046 = vmatprep.subr.bf16.mxu0 0
    %2047 = vmatpush2.bf16.msra.mxu0 0
    %2048 = vmatprep.mubr.bf16.mxu0 0
    %2049 = vmatmul.mubr.bf16.gmra.mxu0 %v1823
    %v2050 = vpop.f32.mrf.mxu0
    %v2051 = vadd.f32 0.0, %v2050
    %v2052 = vpop.f32.mrf.mxu0
    %v2053 = vadd.f32 0.0, %v2052
    %v2054 = vpop.f32.mrf.mxu0
    %v2055 = vpop.f32.mrf.mxu0
    %2056 = vdwg.mxu0
    %2057 = vmatprep.subr.bf16.mxu0 %v1983
    %2058 = vmatpush1.bf16.msra.mxu0 %v1982
    %2059 = vmatprep.subr.bf16.mxu0 %v1979
    %2060 = vmatpush1.bf16.msra.mxu0 %v1978
    %2061 = vmatprep.subr.bf16.mxu0 %v1975
    %2062 = vmatpush1.bf16.msra.mxu0 %v1974
    %2063 = vmatprep.subr.bf16.mxu0 %v1971
    %2064 = vmatpush1.bf16.msra.mxu0 %v1970
    %2065 = vmatprep.subr.bf16.mxu0 %v1967
    %2066 = vmatpush1.bf16.msra.mxu0 %v1966
    %2067 = vmatprep.subr.bf16.mxu0 %v1963
    %2068 = vmatpush1.bf16.msra.mxu0 %v1962
    %2069 = vmatprep.subr.bf16.mxu0 %v1959
    %2070 = vmatpush1.bf16.msra.mxu0 %v1958
    %2071 = vmatprep.subr.bf16.mxu0 %v1955
    %2072 = vmatpush1.bf16.msra.mxu0 %v1954
    %2073 = vmatprep.subr.bf16.mxu0 0
    %2074 = vmatpush2.bf16.msra.mxu0 0
    %2075 = vmatprep.subr.bf16.mxu0 0
    %2076 = vmatpush2.bf16.msra.mxu0 0
    %2077 = vmatprep.subr.bf16.mxu0 0
    %2078 = vmatpush2.bf16.msra.mxu0 0
    %2079 = vmatprep.subr.bf16.mxu0 0
    %2080 = vmatpush2.bf16.msra.mxu0 0
    %2081 = vmatprep.subr.bf16.mxu0 0
    %2082 = vmatpush2.bf16.msra.mxu0 0
    %2083 = vmatprep.subr.bf16.mxu0 0
    %2084 = vmatpush2.bf16.msra.mxu0 0
    %2085 = vmatprep.subr.bf16.mxu0 0
    %2086 = vmatpush2.bf16.msra.mxu0 0
    %2087 = vmatprep.subr.bf16.mxu0 0
    %2088 = vmatpush2.bf16.msra.mxu0 0
    %2089 = vmatprep.mubr.bf16.mxu0 0
    %2090 = vmatmul.mubr.bf16.gmra.mxu0 %v1823
    %v2091 = vpop.f32.mrf.mxu0
    %v2092 = vadd.f32 0.0, %v2091
    %v2093 = vpop.f32.mrf.mxu0
    %v2094 = vadd.f32 0.0, %v2093
    %v2095 = vpop.f32.mrf.mxu0
    %v2096 = vpop.f32.mrf.mxu0
    %2097 = vdwg.mxu0
    %v2098 = vadd.f32 %v1819, %v2051
    %v2099 = vadd.f32 %v1820, %v2053
    %v2100 = vadd.f32 %v1821, %v2092
    %v2101 = vadd.f32 %v1822, %v2094
    %v2102 = vxor.u32 %v2098, 2147483648
    %v2103 = vmul.f32 %v2102, 1.442695
    %v2104 = vpow.pop %v2103
    %v2105 = vadd.f32 %v2104, 1.0
    %v2106 = vrcp.pop %v2105
    %v2107 = vmul.f32 1.0, %v2106
    %v2108 = vxor.u32 %v2099, 2147483648
    %v2109 = vmul.f32 %v2108, 1.442695
    %v2110 = vpow.pop %v2109
    %v2111 = vadd.f32 %v2110, 1.0
    %v2112 = vrcp.pop %v2111
    %v2113 = vmul.f32 1.0, %v2112
    %v2114 = vtanh.pop %v2100
    %v2115 = vxor.u32 %v2101, 2147483648
    %v2116 = vmul.f32 %v2115, 1.442695
    %v2117 = vpow.pop %v2116
    %v2118 = vadd.f32 %v2117, 1.0
    %v2119 = vrcp.pop %v2118
    %v2120 = vmul.f32 1.0, %v2119
    %v2121 = vmul.f32 %v2113, %v1815
    %v2122 = vmul.f32 %v2107, %v2114
    %v2123 = vadd.f32 %v2121, %v2122
    %v2124 = vtanh.pop %v2123
    %v2125 = vmul.f32 %v2120, %v2124
    %vm2126 = vcmp.gt.s32.totalorder %v534, 4
    %v2127 = vsel %vm2126, %v2125, %v1814
    %2128 = vst [vmem:[#allocation4] sm:$0xff] %v2127
    %v2129 = vsel %vm2126, %v2123, %v1815
    %2130 = vst [vmem:[#allocation5] sm:$0xff] %v2129
    %v2131 = vsel %vm2126, %v2125, 0.0
    %s2132 = scalar_lea.vmem [#allocation3], 32
    %2133 = vst [vmem:[%s2132] sm:$0xff] %v2131
    %v2134 = vld [vmem:[#allocation4] sm:$0xff]
    %v2135 = vld [vmem:[#allocation5] sm:$0xff]
    %s2136 = smul.u32 5, 4
    %s2137 = smul.addr %s2136, 8
    %s2138 = scalar_lea.vmem [#allocation2], %s2137
    %v2139 = vld [vmem:[%s2138] sm:$0xff]
    %v2140 = vld [vmem:[%s2138 + $0x8] sm:$0xff]
    %v2141 = vld [vmem:[%s2138 + $0x10] sm:$0xff]
    %v2142 = vld [vmem:[%s2138 + $0x18] sm:$0xff]
    %v2143 = vpack.c.bf16 %v2134, %v2134
    %v2144 = vld [vmem:[#allocation11] sm:$0xff]
    %v2145 = vld [vmem:[#allocation11 + $0x8] sm:$0xff]
    %v2146 = vld [vmem:[#allocation11 + $0x10] sm:$0xff]
    %v2147 = vld [vmem:[#allocation11 + $0x18] sm:$0xff]
    %v2148 = vld [vmem:[#allocation11 + $0x20] sm:$0xff]
    %v2149 = vld [vmem:[#allocation11 + $0x28] sm:$0xff]
    %v2150 = vld [vmem:[#allocation11 + $0x30] sm:$0xff]
    %v2151 = vld [vmem:[#allocation11 + $0x38] sm:$0xff]
    %v2152 = vld [vmem:[#allocation11 + $0x40] sm:$0xff]
    %v2153 = vld [vmem:[#allocation11 + $0x48] sm:$0xff]
    %v2154 = vld [vmem:[#allocation11 + $0x50] sm:$0xff]
    %v2155 = vld [vmem:[#allocation11 + $0x58] sm:$0xff]
    %v2156 = vld [vmem:[#allocation11 + $0x60] sm:$0xff]
    %v2157 = vld [vmem:[#allocation11 + $0x68] sm:$0xff]
    %v2158 = vld [vmem:[#allocation11 + $0x70] sm:$0xff]
    %v2159 = vld [vmem:[#allocation11 + $0x78] sm:$0xff]
    %v2160 = vld [vmem:[#allocation11 + $0x80] sm:$0xff]
    %v2161 = vld [vmem:[#allocation11 + $0x88] sm:$0xff]
    %v2162 = vld [vmem:[#allocation11 + $0x90] sm:$0xff]
    %v2163 = vld [vmem:[#allocation11 + $0x98] sm:$0xff]
    %v2164 = vld [vmem:[#allocation11 + $0xa0] sm:$0xff]
    %v2165 = vld [vmem:[#allocation11 + $0xa8] sm:$0xff]
    %v2166 = vld [vmem:[#allocation11 + $0xb0] sm:$0xff]
    %v2167 = vld [vmem:[#allocation11 + $0xb8] sm:$0xff]
    %v2168 = vld [vmem:[#allocation11 + $0xc0] sm:$0xff]
    %v2169 = vld [vmem:[#allocation11 + $0xc8] sm:$0xff]
    %v2170 = vld [vmem:[#allocation11 + $0xd0] sm:$0xff]
    %v2171 = vld [vmem:[#allocation11 + $0xd8] sm:$0xff]
    %v2172 = vld [vmem:[#allocation11 + $0xe0] sm:$0xff]
    %v2173 = vld [vmem:[#allocation11 + $0xe8] sm:$0xff]
    %v2174 = vld [vmem:[#allocation11 + $0xf0] sm:$0xff]
    %v2175 = vld [vmem:[#allocation11 + $0xf8] sm:$0xff]
    %v2208 = vunpack.c.l.b16 %v2144
    %v2209 = vunpack.c.h.b16 %v2144
    %v2210 = vunpack.c.l.b16 %v2145
    %v2211 = vunpack.c.h.b16 %v2145
    %v2212 = vunpack.c.l.b16 %v2146
    %v2213 = vunpack.c.h.b16 %v2146
    %v2214 = vunpack.c.l.b16 %v2147
    %v2215 = vunpack.c.h.b16 %v2147
    %v2216 = vunpack.c.l.b16 %v2148
    %v2217 = vunpack.c.h.b16 %v2148
    %v2218 = vunpack.c.l.b16 %v2149
    %v2219 = vunpack.c.h.b16 %v2149
    %v2220 = vunpack.c.l.b16 %v2150
    %v2221 = vunpack.c.h.b16 %v2150
    %v2222 = vunpack.c.l.b16 %v2151
    %v2223 = vunpack.c.h.b16 %v2151
    %v2224 = vunpack.c.l.b16 %v2152
    %v2225 = vunpack.c.h.b16 %v2152
    %v2226 = vunpack.c.l.b16 %v2153
    %v2227 = vunpack.c.h.b16 %v2153
    %v2228 = vunpack.c.l.b16 %v2154
    %v2229 = vunpack.c.h.b16 %v2154
    %v2230 = vunpack.c.l.b16 %v2155
    %v2231 = vunpack.c.h.b16 %v2155
    %v2232 = vunpack.c.l.b16 %v2156
    %v2233 = vunpack.c.h.b16 %v2156
    %v2234 = vunpack.c.l.b16 %v2157
    %v2235 = vunpack.c.h.b16 %v2157
    %v2236 = vunpack.c.l.b16 %v2158
    %v2237 = vunpack.c.h.b16 %v2158
    %v2238 = vunpack.c.l.b16 %v2159
    %v2239 = vunpack.c.h.b16 %v2159
    %v2240 = vunpack.c.l.b16 %v2160
    %v2241 = vunpack.c.h.b16 %v2160
    %v2242 = vunpack.c.l.b16 %v2161
    %v2243 = vunpack.c.h.b16 %v2161
    %v2244 = vunpack.c.l.b16 %v2162
    %v2245 = vunpack.c.h.b16 %v2162
    %v2246 = vunpack.c.l.b16 %v2163
    %v2247 = vunpack.c.h.b16 %v2163
    %v2248 = vunpack.c.l.b16 %v2164
    %v2249 = vunpack.c.h.b16 %v2164
    %v2250 = vunpack.c.l.b16 %v2165
    %v2251 = vunpack.c.h.b16 %v2165
    %v2252 = vunpack.c.l.b16 %v2166
    %v2253 = vunpack.c.h.b16 %v2166
    %v2254 = vunpack.c.l.b16 %v2167
    %v2255 = vunpack.c.h.b16 %v2167
    %v2256 = vunpack.c.l.b16 %v2168
    %v2257 = vunpack.c.h.b16 %v2168
    %v2258 = vunpack.c.l.b16 %v2169
    %v2259 = vunpack.c.h.b16 %v2169
    %v2260 = vunpack.c.l.b16 %v2170
    %v2261 = vunpack.c.h.b16 %v2170
    %v2262 = vunpack.c.l.b16 %v2171
    %v2263 = vunpack.c.h.b16 %v2171
    %v2264 = vunpack.c.l.b16 %v2172
    %v2265 = vunpack.c.h.b16 %v2172
    %v2266 = vunpack.c.l.b16 %v2173
    %v2267 = vunpack.c.h.b16 %v2173
    %v2268 = vunpack.c.l.b16 %v2174
    %v2269 = vunpack.c.h.b16 %v2174
    %v2270 = vunpack.c.l.b16 %v2175
    %v2271 = vunpack.c.h.b16 %v2175
    %v2272 = vpack.c.b16 %v2212, %v2208
    %v2273 = vpack.c.b16 %v2213, %v2209
    %v2274 = vpack.c.b16 %v2214, %v2210
    %v2275 = vpack.c.b16 %v2215, %v2211
    %v2276 = vpack.c.b16 %v2220, %v2216
    %v2277 = vpack.c.b16 %v2221, %v2217
    %v2278 = vpack.c.b16 %v2222, %v2218
    %v2279 = vpack.c.b16 %v2223, %v2219
    %v2280 = vpack.c.b16 %v2228, %v2224
    %v2281 = vpack.c.b16 %v2229, %v2225
    %v2282 = vpack.c.b16 %v2230, %v2226
    %v2283 = vpack.c.b16 %v2231, %v2227
    %v2284 = vpack.c.b16 %v2236, %v2232
    %v2285 = vpack.c.b16 %v2237, %v2233
    %v2286 = vpack.c.b16 %v2238, %v2234
    %v2287 = vpack.c.b16 %v2239, %v2235
    %v2288 = vpack.c.b16 %v2244, %v2240
    %v2289 = vpack.c.b16 %v2245, %v2241
    %v2290 = vpack.c.b16 %v2246, %v2242
    %v2291 = vpack.c.b16 %v2247, %v2243
    %v2292 = vpack.c.b16 %v2252, %v2248
    %v2293 = vpack.c.b16 %v2253, %v2249
    %v2294 = vpack.c.b16 %v2254, %v2250
    %v2295 = vpack.c.b16 %v2255, %v2251
    %v2296 = vpack.c.b16 %v2260, %v2256
    %v2297 = vpack.c.b16 %v2261, %v2257
    %v2298 = vpack.c.b16 %v2262, %v2258
    %v2299 = vpack.c.b16 %v2263, %v2259
    %v2300 = vpack.c.b16 %v2268, %v2264
    %v2301 = vpack.c.b16 %v2269, %v2265
    %v2302 = vpack.c.b16 %v2270, %v2266
    %v2303 = vpack.c.b16 %v2271, %v2267
    %2336 = vmatprep.subr.bf16.mxu0 %v2301
    %2337 = vmatpush1.bf16.msra.mxu0 %v2300
    %2338 = vmatprep.subr.bf16.mxu0 %v2297
    %2339 = vmatpush1.bf16.msra.mxu0 %v2296
    %2340 = vmatprep.subr.bf16.mxu0 %v2293
    %2341 = vmatpush1.bf16.msra.mxu0 %v2292
    %2342 = vmatprep.subr.bf16.mxu0 %v2289
    %2343 = vmatpush1.bf16.msra.mxu0 %v2288
    %2344 = vmatprep.subr.bf16.mxu0 %v2285
    %2345 = vmatpush1.bf16.msra.mxu0 %v2284
    %2346 = vmatprep.subr.bf16.mxu0 %v2281
    %2347 = vmatpush1.bf16.msra.mxu0 %v2280
    %2348 = vmatprep.subr.bf16.mxu0 %v2277
    %2349 = vmatpush1.bf16.msra.mxu0 %v2276
    %2350 = vmatprep.subr.bf16.mxu0 %v2273
    %2351 = vmatpush1.bf16.msra.mxu0 %v2272
    %2352 = vmatprep.subr.bf16.mxu0 0
    %2353 = vmatpush2.bf16.msra.mxu0 0
    %2354 = vmatprep.subr.bf16.mxu0 0
    %2355 = vmatpush2.bf16.msra.mxu0 0
    %2356 = vmatprep.subr.bf16.mxu0 0
    %2357 = vmatpush2.bf16.msra.mxu0 0
    %2358 = vmatprep.subr.bf16.mxu0 0
    %2359 = vmatpush2.bf16.msra.mxu0 0
    %2360 = vmatprep.subr.bf16.mxu0 0
    %2361 = vmatpush2.bf16.msra.mxu0 0
    %2362 = vmatprep.subr.bf16.mxu0 0
    %2363 = vmatpush2.bf16.msra.mxu0 0
    %2364 = vmatprep.subr.bf16.mxu0 0
    %2365 = vmatpush2.bf16.msra.mxu0 0
    %2366 = vmatprep.subr.bf16.mxu0 0
    %2367 = vmatpush2.bf16.msra.mxu0 0
    %2368 = vmatprep.mubr.bf16.mxu0 0
    %2369 = vmatmul.mubr.bf16.gmra.mxu0 %v2143
    %v2370 = vpop.f32.mrf.mxu0
    %v2371 = vadd.f32 0.0, %v2370
    %v2372 = vpop.f32.mrf.mxu0
    %v2373 = vadd.f32 0.0, %v2372
    %v2374 = vpop.f32.mrf.mxu0
    %v2375 = vpop.f32.mrf.mxu0
    %2376 = vdwg.mxu0
    %2377 = vmatprep.subr.bf16.mxu0 %v2303
    %2378 = vmatpush1.bf16.msra.mxu0 %v2302
    %2379 = vmatprep.subr.bf16.mxu0 %v2299
    %2380 = vmatpush1.bf16.msra.mxu0 %v2298
    %2381 = vmatprep.subr.bf16.mxu0 %v2295
    %2382 = vmatpush1.bf16.msra.mxu0 %v2294
    %2383 = vmatprep.subr.bf16.mxu0 %v2291
    %2384 = vmatpush1.bf16.msra.mxu0 %v2290
    %2385 = vmatprep.subr.bf16.mxu0 %v2287
    %2386 = vmatpush1.bf16.msra.mxu0 %v2286
    %2387 = vmatprep.subr.bf16.mxu0 %v2283
    %2388 = vmatpush1.bf16.msra.mxu0 %v2282
    %2389 = vmatprep.subr.bf16.mxu0 %v2279
    %2390 = vmatpush1.bf16.msra.mxu0 %v2278
    %2391 = vmatprep.subr.bf16.mxu0 %v2275
    %2392 = vmatpush1.bf16.msra.mxu0 %v2274
    %2393 = vmatprep.subr.bf16.mxu0 0
    %2394 = vmatpush2.bf16.msra.mxu0 0
    %2395 = vmatprep.subr.bf16.mxu0 0
    %2396 = vmatpush2.bf16.msra.mxu0 0
    %2397 = vmatprep.subr.bf16.mxu0 0
    %2398 = vmatpush2.bf16.msra.mxu0 0
    %2399 = vmatprep.subr.bf16.mxu0 0
    %2400 = vmatpush2.bf16.msra.mxu0 0
    %2401 = vmatprep.subr.bf16.mxu0 0
    %2402 = vmatpush2.bf16.msra.mxu0 0
    %2403 = vmatprep.subr.bf16.mxu0 0
    %2404 = vmatpush2.bf16.msra.mxu0 0
    %2405 = vmatprep.subr.bf16.mxu0 0
    %2406 = vmatpush2.bf16.msra.mxu0 0
    %2407 = vmatprep.subr.bf16.mxu0 0
    %2408 = vmatpush2.bf16.msra.mxu0 0
    %2409 = vmatprep.mubr.bf16.mxu0 0
    %2410 = vmatmul.mubr.bf16.gmra.mxu0 %v2143
    %v2411 = vpop.f32.mrf.mxu0
    %v2412 = vadd.f32 0.0, %v2411
    %v2413 = vpop.f32.mrf.mxu0
    %v2414 = vadd.f32 0.0, %v2413
    %v2415 = vpop.f32.mrf.mxu0
    %v2416 = vpop.f32.mrf.mxu0
    %2417 = vdwg.mxu0
    %v2418 = vadd.f32 %v2139, %v2371
    %v2419 = vadd.f32 %v2140, %v2373
    %v2420 = vadd.f32 %v2141, %v2412
    %v2421 = vadd.f32 %v2142, %v2414
    %v2422 = vxor.u32 %v2418, 2147483648
    %v2423 = vmul.f32 %v2422, 1.442695
    %v2424 = vpow.pop %v2423
    %v2425 = vadd.f32 %v2424, 1.0
    %v2426 = vrcp.pop %v2425
    %v2427 = vmul.f32 1.0, %v2426
    %v2428 = vxor.u32 %v2419, 2147483648
    %v2429 = vmul.f32 %v2428, 1.442695
    %v2430 = vpow.pop %v2429
    %v2431 = vadd.f32 %v2430, 1.0
    %v2432 = vrcp.pop %v2431
    %v2433 = vmul.f32 1.0, %v2432
    %v2434 = vtanh.pop %v2420
    %v2435 = vxor.u32 %v2421, 2147483648
    %v2436 = vmul.f32 %v2435, 1.442695
    %v2437 = vpow.pop %v2436
    %v2438 = vadd.f32 %v2437, 1.0
    %v2439 = vrcp.pop %v2438
    %v2440 = vmul.f32 1.0, %v2439
    %v2441 = vmul.f32 %v2433, %v2135
    %v2442 = vmul.f32 %v2427, %v2434
    %v2443 = vadd.f32 %v2441, %v2442
    %v2444 = vtanh.pop %v2443
    %v2445 = vmul.f32 %v2440, %v2444
    %vm2446 = vcmp.gt.s32.totalorder %v534, 5
    %v2447 = vsel %vm2446, %v2445, %v2134
    %2448 = vst [vmem:[#allocation4] sm:$0xff] %v2447
    %v2449 = vsel %vm2446, %v2443, %v2135
    %2450 = vst [vmem:[#allocation5] sm:$0xff] %v2449
    %v2451 = vsel %vm2446, %v2445, 0.0
    %s2452 = scalar_lea.vmem [#allocation3], 40
    %2453 = vst [vmem:[%s2452] sm:$0xff] %v2451
    %v2454 = vld [vmem:[#allocation4] sm:$0xff]
    %v2455 = vld [vmem:[#allocation5] sm:$0xff]
    %s2456 = smul.u32 6, 4
    %s2457 = smul.addr %s2456, 8
    %s2458 = scalar_lea.vmem [#allocation2], %s2457
    %v2459 = vld [vmem:[%s2458] sm:$0xff]
    %v2460 = vld [vmem:[%s2458 + $0x8] sm:$0xff]
    %v2461 = vld [vmem:[%s2458 + $0x10] sm:$0xff]
    %v2462 = vld [vmem:[%s2458 + $0x18] sm:$0xff]
    %v2463 = vpack.c.bf16 %v2454, %v2454
    %v2464 = vld [vmem:[#allocation11] sm:$0xff]
    %v2465 = vld [vmem:[#allocation11 + $0x8] sm:$0xff]
    %v2466 = vld [vmem:[#allocation11 + $0x10] sm:$0xff]
    %v2467 = vld [vmem:[#allocation11 + $0x18] sm:$0xff]
    %v2468 = vld [vmem:[#allocation11 + $0x20] sm:$0xff]
    %v2469 = vld [vmem:[#allocation11 + $0x28] sm:$0xff]
    %v2470 = vld [vmem:[#allocation11 + $0x30] sm:$0xff]
    %v2471 = vld [vmem:[#allocation11 + $0x38] sm:$0xff]
    %v2472 = vld [vmem:[#allocation11 + $0x40] sm:$0xff]
    %v2473 = vld [vmem:[#allocation11 + $0x48] sm:$0xff]
    %v2474 = vld [vmem:[#allocation11 + $0x50] sm:$0xff]
    %v2475 = vld [vmem:[#allocation11 + $0x58] sm:$0xff]
    %v2476 = vld [vmem:[#allocation11 + $0x60] sm:$0xff]
    %v2477 = vld [vmem:[#allocation11 + $0x68] sm:$0xff]
    %v2478 = vld [vmem:[#allocation11 + $0x70] sm:$0xff]
    %v2479 = vld [vmem:[#allocation11 + $0x78] sm:$0xff]
    %v2480 = vld [vmem:[#allocation11 + $0x80] sm:$0xff]
    %v2481 = vld [vmem:[#allocation11 + $0x88] sm:$0xff]
    %v2482 = vld [vmem:[#allocation11 + $0x90] sm:$0xff]
    %v2483 = vld [vmem:[#allocation11 + $0x98] sm:$0xff]
    %v2484 = vld [vmem:[#allocation11 + $0xa0] sm:$0xff]
    %v2485 = vld [vmem:[#allocation11 + $0xa8] sm:$0xff]
    %v2486 = vld [vmem:[#allocation11 + $0xb0] sm:$0xff]
    %v2487 = vld [vmem:[#allocation11 + $0xb8] sm:$0xff]
    %v2488 = vld [vmem:[#allocation11 + $0xc0] sm:$0xff]
    %v2489 = vld [vmem:[#allocation11 + $0xc8] sm:$0xff]
    %v2490 = vld [vmem:[#allocation11 + $0xd0] sm:$0xff]
    %v2491 = vld [vmem:[#allocation11 + $0xd8] sm:$0xff]
    %v2492 = vld [vmem:[#allocation11 + $0xe0] sm:$0xff]
    %v2493 = vld [vmem:[#allocation11 + $0xe8] sm:$0xff]
    %v2494 = vld [vmem:[#allocation11 + $0xf0] sm:$0xff]
    %v2495 = vld [vmem:[#allocation11 + $0xf8] sm:$0xff]
    %v2528 = vunpack.c.l.b16 %v2464
    %v2529 = vunpack.c.h.b16 %v2464
    %v2530 = vunpack.c.l.b16 %v2465
    %v2531 = vunpack.c.h.b16 %v2465
    %v2532 = vunpack.c.l.b16 %v2466
    %v2533 = vunpack.c.h.b16 %v2466
    %v2534 = vunpack.c.l.b16 %v2467
    %v2535 = vunpack.c.h.b16 %v2467
    %v2536 = vunpack.c.l.b16 %v2468
    %v2537 = vunpack.c.h.b16 %v2468
    %v2538 = vunpack.c.l.b16 %v2469
    %v2539 = vunpack.c.h.b16 %v2469
    %v2540 = vunpack.c.l.b16 %v2470
    %v2541 = vunpack.c.h.b16 %v2470
    %v2542 = vunpack.c.l.b16 %v2471
    %v2543 = vunpack.c.h.b16 %v2471
    %v2544 = vunpack.c.l.b16 %v2472
    %v2545 = vunpack.c.h.b16 %v2472
    %v2546 = vunpack.c.l.b16 %v2473
    %v2547 = vunpack.c.h.b16 %v2473
    %v2548 = vunpack.c.l.b16 %v2474
    %v2549 = vunpack.c.h.b16 %v2474
    %v2550 = vunpack.c.l.b16 %v2475
    %v2551 = vunpack.c.h.b16 %v2475
    %v2552 = vunpack.c.l.b16 %v2476
    %v2553 = vunpack.c.h.b16 %v2476
    %v2554 = vunpack.c.l.b16 %v2477
    %v2555 = vunpack.c.h.b16 %v2477
    %v2556 = vunpack.c.l.b16 %v2478
    %v2557 = vunpack.c.h.b16 %v2478
    %v2558 = vunpack.c.l.b16 %v2479
    %v2559 = vunpack.c.h.b16 %v2479
    %v2560 = vunpack.c.l.b16 %v2480
    %v2561 = vunpack.c.h.b16 %v2480
    %v2562 = vunpack.c.l.b16 %v2481
    %v2563 = vunpack.c.h.b16 %v2481
    %v2564 = vunpack.c.l.b16 %v2482
    %v2565 = vunpack.c.h.b16 %v2482
    %v2566 = vunpack.c.l.b16 %v2483
    %v2567 = vunpack.c.h.b16 %v2483
    %v2568 = vunpack.c.l.b16 %v2484
    %v2569 = vunpack.c.h.b16 %v2484
    %v2570 = vunpack.c.l.b16 %v2485
    %v2571 = vunpack.c.h.b16 %v2485
    %v2572 = vunpack.c.l.b16 %v2486
    %v2573 = vunpack.c.h.b16 %v2486
    %v2574 = vunpack.c.l.b16 %v2487
    %v2575 = vunpack.c.h.b16 %v2487
    %v2576 = vunpack.c.l.b16 %v2488
    %v2577 = vunpack.c.h.b16 %v2488
    %v2578 = vunpack.c.l.b16 %v2489
    %v2579 = vunpack.c.h.b16 %v2489
    %v2580 = vunpack.c.l.b16 %v2490
    %v2581 = vunpack.c.h.b16 %v2490
    %v2582 = vunpack.c.l.b16 %v2491
    %v2583 = vunpack.c.h.b16 %v2491
    %v2584 = vunpack.c.l.b16 %v2492
    %v2585 = vunpack.c.h.b16 %v2492
    %v2586 = vunpack.c.l.b16 %v2493
    %v2587 = vunpack.c.h.b16 %v2493
    %v2588 = vunpack.c.l.b16 %v2494
    %v2589 = vunpack.c.h.b16 %v2494
    %v2590 = vunpack.c.l.b16 %v2495
    %v2591 = vunpack.c.h.b16 %v2495
    %v2592 = vpack.c.b16 %v2532, %v2528
    %v2593 = vpack.c.b16 %v2533, %v2529
    %v2594 = vpack.c.b16 %v2534, %v2530
    %v2595 = vpack.c.b16 %v2535, %v2531
    %v2596 = vpack.c.b16 %v2540, %v2536
    %v2597 = vpack.c.b16 %v2541, %v2537
    %v2598 = vpack.c.b16 %v2542, %v2538
    %v2599 = vpack.c.b16 %v2543, %v2539
    %v2600 = vpack.c.b16 %v2548, %v2544
    %v2601 = vpack.c.b16 %v2549, %v2545
    %v2602 = vpack.c.b16 %v2550, %v2546
    %v2603 = vpack.c.b16 %v2551, %v2547
    %v2604 = vpack.c.b16 %v2556, %v2552
    %v2605 = vpack.c.b16 %v2557, %v2553
    %v2606 = vpack.c.b16 %v2558, %v2554
    %v2607 = vpack.c.b16 %v2559, %v2555
    %v2608 = vpack.c.b16 %v2564, %v2560
    %v2609 = vpack.c.b16 %v2565, %v2561
    %v2610 = vpack.c.b16 %v2566, %v2562
    %v2611 = vpack.c.b16 %v2567, %v2563
    %v2612 = vpack.c.b16 %v2572, %v2568
    %v2613 = vpack.c.b16 %v2573, %v2569
    %v2614 = vpack.c.b16 %v2574, %v2570
    %v2615 = vpack.c.b16 %v2575, %v2571
    %v2616 = vpack.c.b16 %v2580, %v2576
    %v2617 = vpack.c.b16 %v2581, %v2577
    %v2618 = vpack.c.b16 %v2582, %v2578
    %v2619 = vpack.c.b16 %v2583, %v2579
    %v2620 = vpack.c.b16 %v2588, %v2584
    %v2621 = vpack.c.b16 %v2589, %v2585
    %v2622 = vpack.c.b16 %v2590, %v2586
    %v2623 = vpack.c.b16 %v2591, %v2587
    %2656 = vmatprep.subr.bf16.mxu0 %v2621
    %2657 = vmatpush1.bf16.msra.mxu0 %v2620
    %2658 = vmatprep.subr.bf16.mxu0 %v2617
    %2659 = vmatpush1.bf16.msra.mxu0 %v2616
    %2660 = vmatprep.subr.bf16.mxu0 %v2613
    %2661 = vmatpush1.bf16.msra.mxu0 %v2612
    %2662 = vmatprep.subr.bf16.mxu0 %v2609
    %2663 = vmatpush1.bf16.msra.mxu0 %v2608
    %2664 = vmatprep.subr.bf16.mxu0 %v2605
    %2665 = vmatpush1.bf16.msra.mxu0 %v2604
    %2666 = vmatprep.subr.bf16.mxu0 %v2601
    %2667 = vmatpush1.bf16.msra.mxu0 %v2600
    %2668 = vmatprep.subr.bf16.mxu0 %v2597
    %2669 = vmatpush1.bf16.msra.mxu0 %v2596
    %2670 = vmatprep.subr.bf16.mxu0 %v2593
    %2671 = vmatpush1.bf16.msra.mxu0 %v2592
    %2672 = vmatprep.subr.bf16.mxu0 0
    %2673 = vmatpush2.bf16.msra.mxu0 0
    %2674 = vmatprep.subr.bf16.mxu0 0
    %2675 = vmatpush2.bf16.msra.mxu0 0
    %2676 = vmatprep.subr.bf16.mxu0 0
    %2677 = vmatpush2.bf16.msra.mxu0 0
    %2678 = vmatprep.subr.bf16.mxu0 0
    %2679 = vmatpush2.bf16.msra.mxu0 0
    %2680 = vmatprep.subr.bf16.mxu0 0
    %2681 = vmatpush2.bf16.msra.mxu0 0
    %2682 = vmatprep.subr.bf16.mxu0 0
    %2683 = vmatpush2.bf16.msra.mxu0 0
    %2684 = vmatprep.subr.bf16.mxu0 0
    %2685 = vmatpush2.bf16.msra.mxu0 0
    %2686 = vmatprep.subr.bf16.mxu0 0
    %2687 = vmatpush2.bf16.msra.mxu0 0
    %2688 = vmatprep.mubr.bf16.mxu0 0
    %2689 = vmatmul.mubr.bf16.gmra.mxu0 %v2463
    %v2690 = vpop.f32.mrf.mxu0
    %v2691 = vadd.f32 0.0, %v2690
    %v2692 = vpop.f32.mrf.mxu0
    %v2693 = vadd.f32 0.0, %v2692
    %v2694 = vpop.f32.mrf.mxu0
    %v2695 = vpop.f32.mrf.mxu0
    %2696 = vdwg.mxu0
    %2697 = vmatprep.subr.bf16.mxu0 %v2623
    %2698 = vmatpush1.bf16.msra.mxu0 %v2622
    %2699 = vmatprep.subr.bf16.mxu0 %v2619
    %2700 = vmatpush1.bf16.msra.mxu0 %v2618
    %2701 = vmatprep.subr.bf16.mxu0 %v2615
    %2702 = vmatpush1.bf16.msra.mxu0 %v2614
    %2703 = vmatprep.subr.bf16.mxu0 %v2611
    %2704 = vmatpush1.bf16.msra.mxu0 %v2610
    %2705 = vmatprep.subr.bf16.mxu0 %v2607
    %2706 = vmatpush1.bf16.msra.mxu0 %v2606
    %2707 = vmatprep.subr.bf16.mxu0 %v2603
    %2708 = vmatpush1.bf16.msra.mxu0 %v2602
    %2709 = vmatprep.subr.bf16.mxu0 %v2599
    %2710 = vmatpush1.bf16.msra.mxu0 %v2598
    %2711 = vmatprep.subr.bf16.mxu0 %v2595
    %2712 = vmatpush1.bf16.msra.mxu0 %v2594
    %2713 = vmatprep.subr.bf16.mxu0 0
    %2714 = vmatpush2.bf16.msra.mxu0 0
    %2715 = vmatprep.subr.bf16.mxu0 0
    %2716 = vmatpush2.bf16.msra.mxu0 0
    %2717 = vmatprep.subr.bf16.mxu0 0
    %2718 = vmatpush2.bf16.msra.mxu0 0
    %2719 = vmatprep.subr.bf16.mxu0 0
    %2720 = vmatpush2.bf16.msra.mxu0 0
    %2721 = vmatprep.subr.bf16.mxu0 0
    %2722 = vmatpush2.bf16.msra.mxu0 0
    %2723 = vmatprep.subr.bf16.mxu0 0
    %2724 = vmatpush2.bf16.msra.mxu0 0
    %2725 = vmatprep.subr.bf16.mxu0 0
    %2726 = vmatpush2.bf16.msra.mxu0 0
    %2727 = vmatprep.subr.bf16.mxu0 0
    %2728 = vmatpush2.bf16.msra.mxu0 0
    %2729 = vmatprep.mubr.bf16.mxu0 0
    %2730 = vmatmul.mubr.bf16.gmra.mxu0 %v2463
    %v2731 = vpop.f32.mrf.mxu0
    %v2732 = vadd.f32 0.0, %v2731
    %v2733 = vpop.f32.mrf.mxu0
    %v2734 = vadd.f32 0.0, %v2733
    %v2735 = vpop.f32.mrf.mxu0
    %v2736 = vpop.f32.mrf.mxu0
    %2737 = vdwg.mxu0
    %v2738 = vadd.f32 %v2459, %v2691
    %v2739 = vadd.f32 %v2460, %v2693
    %v2740 = vadd.f32 %v2461, %v2732
    %v2741 = vadd.f32 %v2462, %v2734
    %v2742 = vxor.u32 %v2738, 2147483648
    %v2743 = vmul.f32 %v2742, 1.442695
    %v2744 = vpow.pop %v2743
    %v2745 = vadd.f32 %v2744, 1.0
    %v2746 = vrcp.pop %v2745
    %v2747 = vmul.f32 1.0, %v2746
    %v2748 = vxor.u32 %v2739, 2147483648
    %v2749 = vmul.f32 %v2748, 1.442695
    %v2750 = vpow.pop %v2749
    %v2751 = vadd.f32 %v2750, 1.0
    %v2752 = vrcp.pop %v2751
    %v2753 = vmul.f32 1.0, %v2752
    %v2754 = vtanh.pop %v2740
    %v2755 = vxor.u32 %v2741, 2147483648
    %v2756 = vmul.f32 %v2755, 1.442695
    %v2757 = vpow.pop %v2756
    %v2758 = vadd.f32 %v2757, 1.0
    %v2759 = vrcp.pop %v2758
    %v2760 = vmul.f32 1.0, %v2759
    %v2761 = vmul.f32 %v2753, %v2455
    %v2762 = vmul.f32 %v2747, %v2754
    %v2763 = vadd.f32 %v2761, %v2762
    %v2764 = vtanh.pop %v2763
    %v2765 = vmul.f32 %v2760, %v2764
    %vm2766 = vcmp.gt.s32.totalorder %v534, 6
    %v2767 = vsel %vm2766, %v2765, %v2454
    %2768 = vst [vmem:[#allocation4] sm:$0xff] %v2767
    %v2769 = vsel %vm2766, %v2763, %v2455
    %2770 = vst [vmem:[#allocation5] sm:$0xff] %v2769
    %v2771 = vsel %vm2766, %v2765, 0.0
    %s2772 = scalar_lea.vmem [#allocation3], 48
    %2773 = vst [vmem:[%s2772] sm:$0xff] %v2771
    %v2774 = vld [vmem:[#allocation4] sm:$0xff]
    %v2775 = vld [vmem:[#allocation5] sm:$0xff]
    %s2776 = smul.u32 7, 4
    %s2777 = smul.addr %s2776, 8
    %s2778 = scalar_lea.vmem [#allocation2], %s2777
    %v2779 = vld [vmem:[%s2778] sm:$0xff]
    %v2780 = vld [vmem:[%s2778 + $0x8] sm:$0xff]
    %v2781 = vld [vmem:[%s2778 + $0x10] sm:$0xff]
    %v2782 = vld [vmem:[%s2778 + $0x18] sm:$0xff]
    %v2783 = vpack.c.bf16 %v2774, %v2774
    %v2784 = vld [vmem:[#allocation11] sm:$0xff]
    %v2785 = vld [vmem:[#allocation11 + $0x8] sm:$0xff]
    %v2786 = vld [vmem:[#allocation11 + $0x10] sm:$0xff]
    %v2787 = vld [vmem:[#allocation11 + $0x18] sm:$0xff]
    %v2788 = vld [vmem:[#allocation11 + $0x20] sm:$0xff]
    %v2789 = vld [vmem:[#allocation11 + $0x28] sm:$0xff]
    %v2790 = vld [vmem:[#allocation11 + $0x30] sm:$0xff]
    %v2791 = vld [vmem:[#allocation11 + $0x38] sm:$0xff]
    %v2792 = vld [vmem:[#allocation11 + $0x40] sm:$0xff]
    %v2793 = vld [vmem:[#allocation11 + $0x48] sm:$0xff]
    %v2794 = vld [vmem:[#allocation11 + $0x50] sm:$0xff]
    %v2795 = vld [vmem:[#allocation11 + $0x58] sm:$0xff]
    %v2796 = vld [vmem:[#allocation11 + $0x60] sm:$0xff]
    %v2797 = vld [vmem:[#allocation11 + $0x68] sm:$0xff]
    %v2798 = vld [vmem:[#allocation11 + $0x70] sm:$0xff]
    %v2799 = vld [vmem:[#allocation11 + $0x78] sm:$0xff]
    %v2800 = vld [vmem:[#allocation11 + $0x80] sm:$0xff]
    %v2801 = vld [vmem:[#allocation11 + $0x88] sm:$0xff]
    %v2802 = vld [vmem:[#allocation11 + $0x90] sm:$0xff]
    %v2803 = vld [vmem:[#allocation11 + $0x98] sm:$0xff]
    %v2804 = vld [vmem:[#allocation11 + $0xa0] sm:$0xff]
    %v2805 = vld [vmem:[#allocation11 + $0xa8] sm:$0xff]
    %v2806 = vld [vmem:[#allocation11 + $0xb0] sm:$0xff]
    %v2807 = vld [vmem:[#allocation11 + $0xb8] sm:$0xff]
    %v2808 = vld [vmem:[#allocation11 + $0xc0] sm:$0xff]
    %v2809 = vld [vmem:[#allocation11 + $0xc8] sm:$0xff]
    %v2810 = vld [vmem:[#allocation11 + $0xd0] sm:$0xff]
    %v2811 = vld [vmem:[#allocation11 + $0xd8] sm:$0xff]
    %v2812 = vld [vmem:[#allocation11 + $0xe0] sm:$0xff]
    %v2813 = vld [vmem:[#allocation11 + $0xe8] sm:$0xff]
    %v2814 = vld [vmem:[#allocation11 + $0xf0] sm:$0xff]
    %v2815 = vld [vmem:[#allocation11 + $0xf8] sm:$0xff]
    %v2848 = vunpack.c.l.b16 %v2784
    %v2849 = vunpack.c.h.b16 %v2784
    %v2850 = vunpack.c.l.b16 %v2785
    %v2851 = vunpack.c.h.b16 %v2785
    %v2852 = vunpack.c.l.b16 %v2786
    %v2853 = vunpack.c.h.b16 %v2786
    %v2854 = vunpack.c.l.b16 %v2787
    %v2855 = vunpack.c.h.b16 %v2787
    %v2856 = vunpack.c.l.b16 %v2788
    %v2857 = vunpack.c.h.b16 %v2788
    %v2858 = vunpack.c.l.b16 %v2789
    %v2859 = vunpack.c.h.b16 %v2789
    %v2860 = vunpack.c.l.b16 %v2790
    %v2861 = vunpack.c.h.b16 %v2790
    %v2862 = vunpack.c.l.b16 %v2791
    %v2863 = vunpack.c.h.b16 %v2791
    %v2864 = vunpack.c.l.b16 %v2792
    %v2865 = vunpack.c.h.b16 %v2792
    %v2866 = vunpack.c.l.b16 %v2793
    %v2867 = vunpack.c.h.b16 %v2793
    %v2868 = vunpack.c.l.b16 %v2794
    %v2869 = vunpack.c.h.b16 %v2794
    %v2870 = vunpack.c.l.b16 %v2795
    %v2871 = vunpack.c.h.b16 %v2795
    %v2872 = vunpack.c.l.b16 %v2796
    %v2873 = vunpack.c.h.b16 %v2796
    %v2874 = vunpack.c.l.b16 %v2797
    %v2875 = vunpack.c.h.b16 %v2797
    %v2876 = vunpack.c.l.b16 %v2798
    %v2877 = vunpack.c.h.b16 %v2798
    %v2878 = vunpack.c.l.b16 %v2799
    %v2879 = vunpack.c.h.b16 %v2799
    %v2880 = vunpack.c.l.b16 %v2800
    %v2881 = vunpack.c.h.b16 %v2800
    %v2882 = vunpack.c.l.b16 %v2801
    %v2883 = vunpack.c.h.b16 %v2801
    %v2884 = vunpack.c.l.b16 %v2802
    %v2885 = vunpack.c.h.b16 %v2802
    %v2886 = vunpack.c.l.b16 %v2803
    %v2887 = vunpack.c.h.b16 %v2803
    %v2888 = vunpack.c.l.b16 %v2804
    %v2889 = vunpack.c.h.b16 %v2804
    %v2890 = vunpack.c.l.b16 %v2805
    %v2891 = vunpack.c.h.b16 %v2805
    %v2892 = vunpack.c.l.b16 %v2806
    %v2893 = vunpack.c.h.b16 %v2806
    %v2894 = vunpack.c.l.b16 %v2807
    %v2895 = vunpack.c.h.b16 %v2807
    %v2896 = vunpack.c.l.b16 %v2808
    %v2897 = vunpack.c.h.b16 %v2808
    %v2898 = vunpack.c.l.b16 %v2809
    %v2899 = vunpack.c.h.b16 %v2809
    %v2900 = vunpack.c.l.b16 %v2810
    %v2901 = vunpack.c.h.b16 %v2810
    %v2902 = vunpack.c.l.b16 %v2811
    %v2903 = vunpack.c.h.b16 %v2811
    %v2904 = vunpack.c.l.b16 %v2812
    %v2905 = vunpack.c.h.b16 %v2812
    %v2906 = vunpack.c.l.b16 %v2813
    %v2907 = vunpack.c.h.b16 %v2813
    %v2908 = vunpack.c.l.b16 %v2814
    %v2909 = vunpack.c.h.b16 %v2814
    %v2910 = vunpack.c.l.b16 %v2815
    %v2911 = vunpack.c.h.b16 %v2815
    %v2912 = vpack.c.b16 %v2852, %v2848
    %v2913 = vpack.c.b16 %v2853, %v2849
    %v2914 = vpack.c.b16 %v2854, %v2850
    %v2915 = vpack.c.b16 %v2855, %v2851
    %v2916 = vpack.c.b16 %v2860, %v2856
    %v2917 = vpack.c.b16 %v2861, %v2857
    %v2918 = vpack.c.b16 %v2862, %v2858
    %v2919 = vpack.c.b16 %v2863, %v2859
    %v2920 = vpack.c.b16 %v2868, %v2864
    %v2921 = vpack.c.b16 %v2869, %v2865
    %v2922 = vpack.c.b16 %v2870, %v2866
    %v2923 = vpack.c.b16 %v2871, %v2867
    %v2924 = vpack.c.b16 %v2876, %v2872
    %v2925 = vpack.c.b16 %v2877, %v2873
    %v2926 = vpack.c.b16 %v2878, %v2874
    %v2927 = vpack.c.b16 %v2879, %v2875
    %v2928 = vpack.c.b16 %v2884, %v2880
    %v2929 = vpack.c.b16 %v2885, %v2881
    %v2930 = vpack.c.b16 %v2886, %v2882
    %v2931 = vpack.c.b16 %v2887, %v2883
    %v2932 = vpack.c.b16 %v2892, %v2888
    %v2933 = vpack.c.b16 %v2893, %v2889
    %v2934 = vpack.c.b16 %v2894, %v2890
    %v2935 = vpack.c.b16 %v2895, %v2891
    %v2936 = vpack.c.b16 %v2900, %v2896
    %v2937 = vpack.c.b16 %v2901, %v2897
    %v2938 = vpack.c.b16 %v2902, %v2898
    %v2939 = vpack.c.b16 %v2903, %v2899
    %v2940 = vpack.c.b16 %v2908, %v2904
    %v2941 = vpack.c.b16 %v2909, %v2905
    %v2942 = vpack.c.b16 %v2910, %v2906
    %v2943 = vpack.c.b16 %v2911, %v2907
    %2976 = vmatprep.subr.bf16.mxu0 %v2941
    %2977 = vmatpush1.bf16.msra.mxu0 %v2940
    %2978 = vmatprep.subr.bf16.mxu0 %v2937
    %2979 = vmatpush1.bf16.msra.mxu0 %v2936
    %2980 = vmatprep.subr.bf16.mxu0 %v2933
    %2981 = vmatpush1.bf16.msra.mxu0 %v2932
    %2982 = vmatprep.subr.bf16.mxu0 %v2929
    %2983 = vmatpush1.bf16.msra.mxu0 %v2928
    %2984 = vmatprep.subr.bf16.mxu0 %v2925
    %2985 = vmatpush1.bf16.msra.mxu0 %v2924
    %2986 = vmatprep.subr.bf16.mxu0 %v2921
    %2987 = vmatpush1.bf16.msra.mxu0 %v2920
    %2988 = vmatprep.subr.bf16.mxu0 %v2917
    %2989 = vmatpush1.bf16.msra.mxu0 %v2916
    %2990 = vmatprep.subr.bf16.mxu0 %v2913
    %2991 = vmatpush1.bf16.msra.mxu0 %v2912
    %2992 = vmatprep.subr.bf16.mxu0 0
    %2993 = vmatpush2.bf16.msra.mxu0 0
    %2994 = vmatprep.subr.bf16.mxu0 0
    %2995 = vmatpush2.bf16.msra.mxu0 0
    %2996 = vmatprep.subr.bf16.mxu0 0
    %2997 = vmatpush2.bf16.msra.mxu0 0
    %2998 = vmatprep.subr.bf16.mxu0 0
    %2999 = vmatpush2.bf16.msra.mxu0 0
    %3000 = vmatprep.subr.bf16.mxu0 0
    %3001 = vmatpush2.bf16.msra.mxu0 0
    %3002 = vmatprep.subr.bf16.mxu0 0
    %3003 = vmatpush2.bf16.msra.mxu0 0
    %3004 = vmatprep.subr.bf16.mxu0 0
    %3005 = vmatpush2.bf16.msra.mxu0 0
    %3006 = vmatprep.subr.bf16.mxu0 0
    %3007 = vmatpush2.bf16.msra.mxu0 0
    %3008 = vmatprep.mubr.bf16.mxu0 0
    %3009 = vmatmul.mubr.bf16.gmra.mxu0 %v2783
    %v3010 = vpop.f32.mrf.mxu0
    %v3011 = vadd.f32 0.0, %v3010
    %v3012 = vpop.f32.mrf.mxu0
    %v3013 = vadd.f32 0.0, %v3012
    %v3014 = vpop.f32.mrf.mxu0
    %v3015 = vpop.f32.mrf.mxu0
    %3016 = vdwg.mxu0
    %3017 = vmatprep.subr.bf16.mxu0 %v2943
    %3018 = vmatpush1.bf16.msra.mxu0 %v2942
    %3019 = vmatprep.subr.bf16.mxu0 %v2939
    %3020 = vmatpush1.bf16.msra.mxu0 %v2938
    %3021 = vmatprep.subr.bf16.mxu0 %v2935
    %3022 = vmatpush1.bf16.msra.mxu0 %v2934
    %3023 = vmatprep.subr.bf16.mxu0 %v2931
    %3024 = vmatpush1.bf16.msra.mxu0 %v2930
    %3025 = vmatprep.subr.bf16.mxu0 %v2927
    %3026 = vmatpush1.bf16.msra.mxu0 %v2926
    %3027 = vmatprep.subr.bf16.mxu0 %v2923
    %3028 = vmatpush1.bf16.msra.mxu0 %v2922
    %3029 = vmatprep.subr.bf16.mxu0 %v2919
    %3030 = vmatpush1.bf16.msra.mxu0 %v2918
    %3031 = vmatprep.subr.bf16.mxu0 %v2915
    %3032 = vmatpush1.bf16.msra.mxu0 %v2914
    %3033 = vmatprep.subr.bf16.mxu0 0
    %3034 = vmatpush2.bf16.msra.mxu0 0
    %3035 = vmatprep.subr.bf16.mxu0 0
    %3036 = vmatpush2.bf16.msra.mxu0 0
    %3037 = vmatprep.subr.bf16.mxu0 0
    %3038 = vmatpush2.bf16.msra.mxu0 0
    %3039 = vmatprep.subr.bf16.mxu0 0
    %3040 = vmatpush2.bf16.msra.mxu0 0
    %3041 = vmatprep.subr.bf16.mxu0 0
    %3042 = vmatpush2.bf16.msra.mxu0 0
    %3043 = vmatprep.subr.bf16.mxu0 0
    %3044 = vmatpush2.bf16.msra.mxu0 0
    %3045 = vmatprep.subr.bf16.mxu0 0
    %3046 = vmatpush2.bf16.msra.mxu0 0
    %3047 = vmatprep.subr.bf16.mxu0 0
    %3048 = vmatpush2.bf16.msra.mxu0 0
    %3049 = vmatprep.mubr.bf16.mxu0 0
    %3050 = vmatmul.mubr.bf16.gmra.mxu0 %v2783
    %v3051 = vpop.f32.mrf.mxu0
    %v3052 = vadd.f32 0.0, %v3051
    %v3053 = vpop.f32.mrf.mxu0
    %v3054 = vadd.f32 0.0, %v3053
    %v3055 = vpop.f32.mrf.mxu0
    %v3056 = vpop.f32.mrf.mxu0
    %3057 = vdwg.mxu0
    %v3058 = vadd.f32 %v2779, %v3011
    %v3059 = vadd.f32 %v2780, %v3013
    %v3060 = vadd.f32 %v2781, %v3052
    %v3061 = vadd.f32 %v2782, %v3054
    %v3062 = vxor.u32 %v3058, 2147483648
    %v3063 = vmul.f32 %v3062, 1.442695
    %v3064 = vpow.pop %v3063
    %v3065 = vadd.f32 %v3064, 1.0
    %v3066 = vrcp.pop %v3065
    %v3067 = vmul.f32 1.0, %v3066
    %v3068 = vxor.u32 %v3059, 2147483648
    %v3069 = vmul.f32 %v3068, 1.442695
    %v3070 = vpow.pop %v3069
    %v3071 = vadd.f32 %v3070, 1.0
    %v3072 = vrcp.pop %v3071
    %v3073 = vmul.f32 1.0, %v3072
    %v3074 = vtanh.pop %v3060
    %v3075 = vxor.u32 %v3061, 2147483648
    %v3076 = vmul.f32 %v3075, 1.442695
    %v3077 = vpow.pop %v3076
    %v3078 = vadd.f32 %v3077, 1.0
    %v3079 = vrcp.pop %v3078
    %v3080 = vmul.f32 1.0, %v3079
    %v3081 = vmul.f32 %v3073, %v2775
    %v3082 = vmul.f32 %v3067, %v3074
    %v3083 = vadd.f32 %v3081, %v3082
    %v3084 = vtanh.pop %v3083
    %v3085 = vmul.f32 %v3080, %v3084
    %vm3086 = vcmp.gt.s32.totalorder %v534, 7
    %v3087 = vsel %vm3086, %v3085, %v2774
    %3088 = vst [vmem:[#allocation4] sm:$0xff] %v3087
    %v3089 = vsel %vm3086, %v3083, %v2775
    %3090 = vst [vmem:[#allocation5] sm:$0xff] %v3089
    %v3091 = vsel %vm3086, %v3085, 0.0
    %s3092 = scalar_lea.vmem [#allocation3], 56
    %3093 = vst [vmem:[%s3092] sm:$0xff] %v3091
    %v3094 = vld [vmem:[#allocation3] sm:$0xff]
    %v3095 = vld [vmem:[#allocation3 + $0x8] sm:$0xff]
    %v3096 = vld [vmem:[#allocation3 + $0x10] sm:$0xff]
    %v3097 = vld [vmem:[#allocation3 + $0x18] sm:$0xff]
    %v3098 = vld [vmem:[#allocation3 + $0x20] sm:$0xff]
    %v3099 = vld [vmem:[#allocation3 + $0x28] sm:$0xff]
    %v3100 = vld [vmem:[#allocation3 + $0x30] sm:$0xff]
    %v3101 = vld [vmem:[#allocation3 + $0x38] sm:$0xff]
    %v3102 = vpack.c.bf16 %v3095, %v3094
    %v3103 = vpack.c.bf16 %v3097, %v3096
    %v3104 = vpack.c.bf16 %v3099, %v3098
    %v3105 = vpack.c.bf16 %v3101, %v3100
    %v3106 = vld [vmem:[#allocation12] sm:$0xf]
    %v3107 = vld [vmem:[#allocation12 + $0x4] sm:$0xf]
    %v3108 = vld [vmem:[#allocation12 + $0x8] sm:$0xf]
    %v3109 = vld [vmem:[#allocation12 + $0xc] sm:$0xf]
    %v3110 = vld [vmem:[#allocation12 + $0x10] sm:$0xf]
    %v3111 = vld [vmem:[#allocation12 + $0x14] sm:$0xf]
    %v3112 = vld [vmem:[#allocation12 + $0x18] sm:$0xf]
    %v3113 = vld [vmem:[#allocation12 + $0x1c] sm:$0xf]
    %v3114 = vld [vmem:[#allocation12 + $0x20] sm:$0xf]
    %v3115 = vld [vmem:[#allocation12 + $0x24] sm:$0xf]
    %v3116 = vld [vmem:[#allocation12 + $0x28] sm:$0xf]
    %v3117 = vld [vmem:[#allocation12 + $0x2c] sm:$0xf]
    %v3118 = vld [vmem:[#allocation12 + $0x30] sm:$0xf]
    %v3119 = vld [vmem:[#allocation12 + $0x34] sm:$0xf]
    %v3120 = vld [vmem:[#allocation12 + $0x38] sm:$0xf]
    %v3121 = vld [vmem:[#allocation12 + $0x3c] sm:$0xf]
    %v3122 = vld [vmem:[%s6] sm:$0x1]
    %v3124 = vlaneseq
    %v3125 = vshrl.u32 %v3124, 7
    %v3126 = vsub.s32 0, %v3125
    %v3127 = vrot.slane %v3122, %v3126
    %v3145 = vunpack.c.l.b16 %v3106
    %v3146 = vunpack.c.l.b16 %v3107
    %v3147 = vunpack.c.l.b16 %v3108
    %v3148 = vunpack.c.l.b16 %v3109
    %v3149 = vunpack.c.l.b16 %v3110
    %v3150 = vunpack.c.l.b16 %v3111
    %v3151 = vunpack.c.l.b16 %v3112
    %v3152 = vunpack.c.l.b16 %v3113
    %v3153 = vunpack.c.l.b16 %v3114
    %v3154 = vunpack.c.l.b16 %v3115
    %v3155 = vunpack.c.l.b16 %v3116
    %v3156 = vunpack.c.l.b16 %v3117
    %v3157 = vunpack.c.l.b16 %v3118
    %v3158 = vunpack.c.l.b16 %v3119
    %v3159 = vunpack.c.l.b16 %v3120
    %v3160 = vunpack.c.l.b16 %v3121
    %v3161 = vpack.c.b16 %v3146, %v3145
    %v3162 = vpack.c.b16 %v3148, %v3147
    %v3163 = vpack.c.b16 %v3150, %v3149
    %v3164 = vpack.c.b16 %v3152, %v3151
    %v3165 = vpack.c.b16 %v3154, %v3153
    %v3166 = vpack.c.b16 %v3156, %v3155
    %v3167 = vpack.c.b16 %v3158, %v3157
    %v3168 = vpack.c.b16 %v3160, %v3159
    %3177 = vmatprep.subr.bf16.mxu0 0
    %3178 = vmatpush1.bf16.msra.mxu0 %v3168
    %3179 = vmatprep.subr.bf16.mxu0 0
    %3180 = vmatpush1.bf16.msra.mxu0 %v3167
    %3181 = vmatprep.subr.bf16.mxu0 0
    %3182 = vmatpush1.bf16.msra.mxu0 %v3166
    %3183 = vmatprep.subr.bf16.mxu0 0
    %3184 = vmatpush1.bf16.msra.mxu0 %v3165
    %3185 = vmatprep.subr.bf16.mxu0 0
    %3186 = vmatpush1.bf16.msra.mxu0 %v3164
    %3187 = vmatprep.subr.bf16.mxu0 0
    %3188 = vmatpush1.bf16.msra.mxu0 %v3163
    %3189 = vmatprep.subr.bf16.mxu0 0
    %3190 = vmatpush1.bf16.msra.mxu0 %v3162
    %3191 = vmatprep.subr.bf16.mxu0 0
    %3192 = vmatpush1.bf16.msra.mxu0 %v3161
    %3193 = vmatprep.subr.bf16.mxu0 0
    %3194 = vmatpush2.bf16.msra.mxu0 0
    %3195 = vmatprep.subr.bf16.mxu0 0
    %3196 = vmatpush2.bf16.msra.mxu0 0
    %3197 = vmatprep.subr.bf16.mxu0 0
    %3198 = vmatpush2.bf16.msra.mxu0 0
    %3199 = vmatprep.subr.bf16.mxu0 0
    %3200 = vmatpush2.bf16.msra.mxu0 0
    %3201 = vmatprep.subr.bf16.mxu0 0
    %3202 = vmatpush2.bf16.msra.mxu0 0
    %3203 = vmatprep.subr.bf16.mxu0 0
    %3204 = vmatpush2.bf16.msra.mxu0 0
    %3205 = vmatprep.subr.bf16.mxu0 0
    %3206 = vmatpush2.bf16.msra.mxu0 0
    %3207 = vmatprep.subr.bf16.mxu0 0
    %3208 = vmatpush2.bf16.msra.mxu0 0
    %3209 = vmatprep.mubr.bf16.mxu0 0
    %3210 = vmatmul.mubr.bf16.gmra.mxu0 %v3102
    %v3211 = vpop.f32.mrf.mxu0
    %v3212 = vadd.f32 %v3127, %v3211
    %v3213 = vpop.f32.mrf.mxu0
    %v3214 = vpop.f32.mrf.mxu0
    %v3215 = vadd.f32 %v3127, %v3214
    %v3216 = vpop.f32.mrf.mxu0
    %3217 = vmatprep.mubr.bf16.mxu0 0
    %3218 = vmatmul.mubr.bf16.gmra.mxu0 %v3103
    %v3219 = vpop.f32.mrf.mxu0
    %v3220 = vadd.f32 %v3127, %v3219
    %v3221 = vpop.f32.mrf.mxu0
    %v3222 = vpop.f32.mrf.mxu0
    %v3223 = vadd.f32 %v3127, %v3222
    %v3224 = vpop.f32.mrf.mxu0
    %3225 = vmatprep.mubr.bf16.mxu0 0
    %3226 = vmatmul.mubr.bf16.gmra.mxu0 %v3104
    %v3227 = vpop.f32.mrf.mxu0
    %v3228 = vadd.f32 %v3127, %v3227
    %v3229 = vpop.f32.mrf.mxu0
    %v3230 = vpop.f32.mrf.mxu0
    %v3231 = vadd.f32 %v3127, %v3230
    %v3232 = vpop.f32.mrf.mxu0
    %3233 = vmatprep.mubr.bf16.mxu0 0
    %3234 = vmatmul.mubr.bf16.gmra.mxu0 %v3105
    %v3235 = vpop.f32.mrf.mxu0
    %v3236 = vadd.f32 %v3127, %v3235
    %v3237 = vpop.f32.mrf.mxu0
    %v3238 = vpop.f32.mrf.mxu0
    %v3239 = vadd.f32 %v3127, %v3238
    %v3240 = vpop.f32.mrf.mxu0
    %3241 = vdwg.mxu0
    %3242 = vst [vmem:[#allocation15] sm:$0xff] %v3212
    %3243 = vst [vmem:[#allocation15 + $0x8] sm:$0xff] %v3215
    %3244 = vst [vmem:[#allocation15 + $0x10] sm:$0xff] %v3220
    %3245 = vst [vmem:[#allocation15 + $0x18] sm:$0xff] %v3223
    %3246 = vst [vmem:[#allocation15 + $0x20] sm:$0xff] %v3228
    %3247 = vst [vmem:[#allocation15 + $0x28] sm:$0xff] %v3231
    %3248 = vst [vmem:[#allocation15 + $0x30] sm:$0xff] %v3236
    %3249 = vst [vmem:[#allocation15 + $0x38] sm:$0xff] %v3239
    %v3250 = vld [vmem:[#allocation4] sm:$0xff]
    %v3251 = vpack.c.bf16 %v3250, %v3250
    %v3252 = vld [vmem:[#allocation14] sm:$0xf]
    %v3253 = vld [vmem:[#allocation14 + $0x4] sm:$0xf]
    %v3254 = vld [vmem:[#allocation14 + $0x8] sm:$0xf]
    %v3255 = vld [vmem:[#allocation14 + $0xc] sm:$0xf]
    %v3256 = vld [vmem:[#allocation14 + $0x10] sm:$0xf]
    %v3257 = vld [vmem:[#allocation14 + $0x14] sm:$0xf]
    %v3258 = vld [vmem:[#allocation14 + $0x18] sm:$0xf]
    %v3259 = vld [vmem:[#allocation14 + $0x1c] sm:$0xf]
    %v3260 = vld [vmem:[#allocation14 + $0x20] sm:$0xf]
    %v3261 = vld [vmem:[#allocation14 + $0x24] sm:$0xf]
    %v3262 = vld [vmem:[#allocation14 + $0x28] sm:$0xf]
    %v3263 = vld [vmem:[#allocation14 + $0x2c] sm:$0xf]
    %v3264 = vld [vmem:[#allocation14 + $0x30] sm:$0xf]
    %v3265 = vld [vmem:[#allocation14 + $0x34] sm:$0xf]
    %v3266 = vld [vmem:[#allocation14 + $0x38] sm:$0xf]
    %v3267 = vld [vmem:[#allocation14 + $0x3c] sm:$0xf]
    %v3268 = vld [vmem:[%s8] sm:$0x1]
    %v3270 = vlaneseq
    %v3271 = vshrl.u32 %v3270, 7
    %v3272 = vsub.s32 0, %v3271
    %v3273 = vrot.slane %v3268, %v3272
    %v3291 = vunpack.c.l.b16 %v3252
    %v3292 = vunpack.c.l.b16 %v3253
    %v3293 = vunpack.c.l.b16 %v3254
    %v3294 = vunpack.c.l.b16 %v3255
    %v3295 = vunpack.c.l.b16 %v3256
    %v3296 = vunpack.c.l.b16 %v3257
    %v3297 = vunpack.c.l.b16 %v3258
    %v3298 = vunpack.c.l.b16 %v3259
    %v3299 = vunpack.c.l.b16 %v3260
    %v3300 = vunpack.c.l.b16 %v3261
    %v3301 = vunpack.c.l.b16 %v3262
    %v3302 = vunpack.c.l.b16 %v3263
    %v3303 = vunpack.c.l.b16 %v3264
    %v3304 = vunpack.c.l.b16 %v3265
    %v3305 = vunpack.c.l.b16 %v3266
    %v3306 = vunpack.c.l.b16 %v3267
    %v3307 = vpack.c.b16 %v3292, %v3291
    %v3308 = vpack.c.b16 %v3294, %v3293
    %v3309 = vpack.c.b16 %v3296, %v3295
    %v3310 = vpack.c.b16 %v3298, %v3297
    %v3311 = vpack.c.b16 %v3300, %v3299
    %v3312 = vpack.c.b16 %v3302, %v3301
    %v3313 = vpack.c.b16 %v3304, %v3303
    %v3314 = vpack.c.b16 %v3306, %v3305
    %3323 = vmatprep.subr.bf16.mxu0 0
    %3324 = vmatpush1.bf16.msra.mxu0 %v3314
    %3325 = vmatprep.subr.bf16.mxu0 0
    %3326 = vmatpush1.bf16.msra.mxu0 %v3313
    %3327 = vmatprep.subr.bf16.mxu0 0
    %3328 = vmatpush1.bf16.msra.mxu0 %v3312
    %3329 = vmatprep.subr.bf16.mxu0 0
    %3330 = vmatpush1.bf16.msra.mxu0 %v3311
    %3331 = vmatprep.subr.bf16.mxu0 0
    %3332 = vmatpush1.bf16.msra.mxu0 %v3310
    %3333 = vmatprep.subr.bf16.mxu0 0
    %3334 = vmatpush1.bf16.msra.mxu0 %v3309
    %3335 = vmatprep.subr.bf16.mxu0 0
    %3336 = vmatpush1.bf16.msra.mxu0 %v3308
    %3337 = vmatprep.subr.bf16.mxu0 0
    %3338 = vmatpush1.bf16.msra.mxu0 %v3307
    %3339 = vmatprep.subr.bf16.mxu0 0
    %3340 = vmatpush2.bf16.msra.mxu0 0
    %3341 = vmatprep.subr.bf16.mxu0 0
    %3342 = vmatpush2.bf16.msra.mxu0 0
    %3343 = vmatprep.subr.bf16.mxu0 0
    %3344 = vmatpush2.bf16.msra.mxu0 0
    %3345 = vmatprep.subr.bf16.mxu0 0
    %3346 = vmatpush2.bf16.msra.mxu0 0
    %3347 = vmatprep.subr.bf16.mxu0 0
    %3348 = vmatpush2.bf16.msra.mxu0 0
    %3349 = vmatprep.subr.bf16.mxu0 0
    %3350 = vmatpush2.bf16.msra.mxu0 0
    %3351 = vmatprep.subr.bf16.mxu0 0
    %3352 = vmatpush2.bf16.msra.mxu0 0
    %3353 = vmatprep.subr.bf16.mxu0 0
    %3354 = vmatpush2.bf16.msra.mxu0 0
    %3355 = vmatprep.mubr.bf16.mxu0 0
    %3356 = vmatmul.mubr.bf16.gmra.mxu0 %v3251
    %v3357 = vpop.f32.mrf.mxu0
    %v3358 = vadd.f32 %v3273, %v3357
    %v3359 = vpop.f32.mrf.mxu0
    %v3360 = vpop.f32.mrf.mxu0
    %v3361 = vpop.f32.mrf.mxu0
    %3362 = vdwg.mxu0
    %3363 = vst [vmem:[#allocation16] sm:$0xff] %v3358
    // Predicated region
    $region58: #{tpu_custom_call.1} parent=1 // pred_check
      _
    $region59: #{tpu_custom_call.1} parent=1 // pred_check_branch
      %3365 = sbr.rel (0) target = $region61
    $region60: #{tpu_custom_call.1} parent=1 // pred_region
      %s3367 = ssub.s32 1024, 1024
      %3368 = vsyncadd [#allocation8], %s3367
      %s3369 = sshll.u32 [#allocation15], 4
      %s3370 = int_to_ptr.vmem [resolvable:$true] %s3369
      %3375 = dma.vmem_to_hbm [thread:$0]  %s3370, 1024, %s9, [#allocation8], 128, 128, 8
    $region61: #{tpu_custom_call.1} parent=1 // pred_fallthru
      _
    // Predicated region
    $region62: #{tpu_custom_call.1} parent=1 // pred_check
      _
    $region63: #{tpu_custom_call.1} parent=1 // pred_check_branch
      %3377 = sbr.rel (0) target = $region65
    $region64: #{tpu_custom_call.1} parent=1 // pred_region
      %s3379 = ssub.s32 128, 128
      %3380 = vsyncadd [#allocation17], %s3379
      %s3382 = sshll.u32 [#allocation16], 4
      %s3383 = int_to_ptr.vmem [resolvable:$true] %s3382
      %3385 = dma.vmem_to_hbm [thread:$0]  %s3383, 128, %s10, [#allocation17]
    $region65: #{tpu_custom_call.1} parent=1 // pred_fallthru
      _
    // Predicated region
    $region66: #{tpu_custom_call.1} parent=1 // pred_check
      _
    $region67: #{tpu_custom_call.1} parent=1 // pred_check_branch
      %3387 = sbr.rel (0) target = $region69
    $region68: #{tpu_custom_call.1} parent=1 // pred_region
      %3388 = dma.done [#allocation8], 1024
    $region69: #{tpu_custom_call.1} parent=1 // pred_fallthru
      _
    // Predicated region
    $region70: #{tpu_custom_call.1} parent=1 // pred_check
      _
    $region71: #{tpu_custom_call.1} parent=1 // pred_check_branch
      %3390 = sbr.rel (0) target = $region73
    $region72: #{tpu_custom_call.1} parent=1 // pred_region
      %3391 = dma.done [#allocation17], 128
    $region73: #{tpu_custom_call.1} parent=1 // pred_fallthru
      _
    %3392 = vsyncpa [#allocation7], 1
    %3393 = vsyncpa [#allocation10], 1
    %3394 = vsyncpa [#allocation13], 1
    %3395 = vsyncpa [#allocation8], 1
    %3396 = vsyncpa [#allocation17], 1

</llo_original>
